<compile_context>
chip_gen: v5e
topology: v5e:2x2
jax: 0.10.0
libtpu: 0.0.40
codegen_flags: <defaults>
</compile_context>

<pallas_src>
import math
from functools import partial

import jax
import jax.numpy as jnp
from jax import lax
from jax.experimental import pallas as pl
from jax.experimental.pallas import tpu as pltpu

RMS_EPS = 1.1920929e-07  # torch.finfo(float32).eps -- F.rms_norm default for eps=None


def _round_up(a, b):
    return (a + b - 1) // b * b


def _rms(z):
    z = z.astype(jnp.float32)
    return z * lax.rsqrt(jnp.mean(z * z, axis=-1, keepdims=True) + RMS_EPS)


# ----------------------------- Pallas kernels -----------------------------

def _proj_kernel(x_ref, wqa_ref, wqbn_ref, wqbr_ref, wqbrs_ref,
                 wkvl_ref, wkr_ref, wkrs_ref, wkvb_ref,
                 cq_ref, sq_ref, ck_ref, sk_ref,
                 h_ref, qn_ref, kv_ref, rope_ref):
    """One batch element: pre-norm + Q/KV projections + fused RoPE.

    Interleaved-complex RoPE:
        out[2p]   = x[2p]*cos - x[2p+1]*sin
        out[2p+1] = x[2p]*sin + x[2p+1]*cos
    The pair-swapped partner (x[2p+1], x[2p]) is obtained by an extra matmul against
    pair-swapped weight columns, so the rotation is x*cos_tab + x_swapped*sin_signed_tab
    (pure VPU elementwise -- no strided slices, no lane rolls, MXU is idle anyway).
    """
    S = x_ref.shape[0]
    h = _rms(x_ref[...])                                  # DecoderBlock pre-norm (f32)
    h_ref[...] = h.astype(h_ref.dtype)
    hb = h.astype(jnp.bfloat16)

    # ---- Query path ----
    q_lat = jnp.dot(hb, wqa_ref[...], preferred_element_type=jnp.float32)
    qln = _rms(q_lat).astype(jnp.bfloat16)
    qn_ref[...] = jnp.dot(qln, wqbn_ref[...],
                          preferred_element_type=jnp.float32).astype(qn_ref.dtype)
    q_rope = jnp.dot(qln, wqbr_ref[...], preferred_element_type=jnp.float32)
    q_rope_sw = jnp.dot(qln, wqbrs_ref[...], preferred_element_type=jnp.float32)
    q_roped = q_rope * cq_ref[...] + q_rope_sw * sq_ref[...]

    # ---- KV path ----
    kv_lat = jnp.dot(hb, wkvl_ref[...], preferred_element_type=jnp.float32)
    kvn = _rms(kv_lat).astype(jnp.bfloat16)
    kv_ref[...] = jnp.dot(kvn, wkvb_ref[...],
                          preferred_element_type=jnp.float32).astype(kv_ref.dtype)
    k_rope = jnp.dot(hb, wkr_ref[...], preferred_element_type=jnp.float32)
    k_rope_sw = jnp.dot(hb, wkrs_ref[...], preferred_element_type=jnp.float32)
    k_roped = k_rope * ck_ref[...] + k_rope_sw * sk_ref[...]

    # Lane-dense (multiple of 128) rope slab: [roped q (H*dr) | roped k (dr) | zero pad].
    pad = rope_ref.shape[-1] - q_roped.shape[-1] - k_roped.shape[-1]
    parts = [q_roped, k_roped]
    if pad:
        parts.append(jnp.zeros((S, pad), jnp.float32))
    rope_ref[...] = jnp.concatenate(parts, axis=-1).astype(rope_ref.dtype)


def _attn_tail_kernel(qn_ref, rope_ref, kv_ref, h_ref, wo_ref, w1_ref, w2_ref,
                      o_ref, acc_ref, *, H, KVH, dn, dr, dv, scale):
    """One batch element: causal GQA attention + W_o + residual + rms + relu^2 MLP + residual.

    qn_ref  : (S, H*dn)  bf16 q_nope, head-packed
    rope_ref: (S, >=H*dr+dr) bf16 [roped q_rope | roped k_rope | pad]
    kv_ref  : (S, KVH*(dn+dv)) bf16 per-kv-head [k_nope | v]
    h_ref   : (S, E) f32 rms(x)  (residual input)
    acc_ref : (S, H*dv) f32 VMEM scratch for per-head attention outputs
    """
    # TODO(synk): for long sequences, switch to flash-style KV-block tiling (online softmax).
    S = qn_ref.shape[0]
    group = H // KVH
    kr = rope_ref[:, H * dr:H * dr + dr]                   # shared roped k_rope (S, dr)
    row = lax.broadcasted_iota(jnp.int32, (S, S), 0)
    col = lax.broadcasted_iota(jnp.int32, (S, S), 1)
    causal = col <= row                                    # hoisted out of the head loop

    for g in range(KVH):                                   # static: KVH is small
        base = g * (dn + dv)
        k_n = kv_ref[:, base:base + dn]                    # (S, dn) bf16
        v_g = kv_ref[:, base + dn:base + dn + dv]          # (S, dv) bf16
        for hh in range(group):                            # static: group is small
            hd = g * group + hh
            q_n = qn_ref[:, hd * dn:(hd + 1) * dn]
            q_r = rope_ref[:, hd * dr:(hd + 1) * dr]
            s = lax.dot_general(q_n, k_n, (((1,), (1,)), ((), ())),
                                preferred_element_type=jnp.float32)
            s = s + lax.dot_general(q_r, kr, (((1,), (1,)), ((), ())),
                                    preferred_element_type=jnp.float32)
            s = jnp.where(causal, s * scale, -jnp.inf)     # diagonal always unmasked
            m = jnp.max(s, axis=-1, keepdims=True)
            p = jnp.exp(s - m)
            l = jnp.sum(p, axis=-1, keepdims=True)
            o = jnp.dot(p.astype(jnp.bfloat16), v_g, preferred_element_type=jnp.float32)
            acc_ref[:, hd * dv:(hd + 1) * dv] = o / l      # write per head -> bounded vregs

    # ---- fused tail: W_o + residual + rms + relu^2 MLP + residual ----
    ao = jnp.dot(acc_ref[...].astype(jnp.bfloat16), wo_ref[...],
                 preferred_element_type=jnp.float32)
    y1 = h_ref[...] + ao                                   # residual around attention
    h2 = _rms(y1)                                          # second pre-norm
    hid = jnp.dot(h2.astype(jnp.bfloat16), w1_ref[...], preferred_element_type=jnp.float32)
    hid = jnp.square(jnp.maximum(hid, 0.0))                # relu(z)^2 in f32
    mlp = jnp.dot(hid.astype(jnp.bfloat16), w2_ref[...], preferred_element_type=jnp.float32)
    o_ref[...] = (h2 + mlp).astype(o_ref.dtype)            # residual around MLP


# ------------------------------- host-side prep ---------------------------

def make_freqs(context_length, rope_dim, theta=10000.0):
    inv = 1.0 / (theta ** (jnp.arange(0, rope_dim, 2, dtype=jnp.float32) / rope_dim))
    t = jnp.arange(context_length, dtype=jnp.float32)
    ang = jnp.outer(t, inv)                                # [ctx, rope_dim/2]
    return jnp.cos(ang), jnp.sin(ang)


def prepare_params(params, cfg):
    """One-time prep (hoisted out of the forward): bf16 weight cast, per-head nope/rope
    weight slabs, pair-swapped rope weight columns, and per-lane cos/sin tables."""
    H = cfg["num_heads"]
    dn, dr = cfg["qk_nope_head_dim"], cfg["qk_rope_head_dim"]
    dqk = dn + dr
    Lq, Lkv = cfg["q_lora_rank"], cfg["kv_lora_rank"]
    ctx = cfg["context_length"]

    def swap_pairs_cols(w):        # swap columns 2p <-> 2p+1 (the RoPE pair partner)
        return w.reshape(w.shape[0], -1, 2)[:, :, ::-1].reshape(w.shape[0], -1)

    bf = lambda a: a.astype(jnp.bfloat16)

    wqb = params["Q_b"].reshape(Lq, H, dqk)
    wqb_nope = wqb[:, :, :dn].reshape(Lq, H * dn)
    wqb_rope = wqb[:, :, dn:].reshape(Lq, H * dr)
    wkva = params["KV_a"]
    wka_rope = wkva[:, Lkv:]

    cos_h, sin_h = make_freqs(ctx, dr)                     # (ctx, dr/2)
    cos_i = jnp.repeat(cos_h, 2, axis=-1)                  # per-lane cos (pairs duplicated)
    sin_i = jnp.repeat(sin_h, 2, axis=-1)
    sign = jnp.tile(jnp.array([-1.0, 1.0], jnp.float32), (dr // 2,))
    sin_s = sin_i * sign                                   # -sin on even lanes, +sin on odd

    return dict(
        wqa=bf(params["Q_a"]),
        wqb_nope=bf(wqb_nope),
        wqb_rope=bf(wqb_rope),
        wqb_rope_sw=bf(swap_pairs_cols(wqb_rope)),
        wkva_lat=bf(wkva[:, :Lkv]),
        wka_rope=bf(wka_rope),
        wka_rope_sw=bf(swap_pairs_cols(wka_rope)),
        wkvb=bf(params["KV_b"]),
        wo=bf(params["W_o"]),
        w1=bf(params["W1"]),
        w2=bf(params["W2"]),
        cos_q=jnp.tile(cos_i, (1, H)),                     # (ctx, H*dr)
        sin_q=jnp.tile(sin_s, (1, H)),
        cos_k=cos_i,                                       # (ctx, dr)
        sin_k=sin_s,
    )


# ------------------------------- forward ----------------------------------

def decoder_block_forward(prep, x, cfg):
    B, S, E = x.shape
    H, KVH = cfg["num_heads"], cfg["num_kv_heads"]
    dn, dr, dv = cfg["qk_nope_head_dim"], cfg["qk_rope_head_dim"], cfg["v_head_dim"]
    Fd = cfg["feedforward_dim"]
    scale = 1.0 / math.sqrt(dn + dr)
    kvw = KVH * (dn + dv)
    RP = _round_up(H * dr + dr, 128)

    full2d = lambda a: pl.BlockSpec(a.shape, lambda b: (0, 0))
    row3d = lambda w: pl.BlockSpec((None, S, w), lambda b: (b, 0, 0))

    # ---- K1: fused pre-norm + Q/KV projections + RoPE ----
    h, qn, kv, rope = pl.pallas_call(
        _proj_kernel,
        out_shape=(
            jax.ShapeDtypeStruct((B, S, E), jnp.float32),        # h (f32 for residual)
            jax.ShapeDtypeStruct((B, S, H * dn), jnp.bfloat16),  # q_nope
            jax.ShapeDtypeStruct((B, S, kvw), jnp.bfloat16),     # per-kv-head [k_nope | v]
            jax.ShapeDtypeStruct((B, S, RP), jnp.bfloat16),      # [roped q | roped k | pad]
        ),
        grid=(B,),
        in_specs=[
            row3d(E),
            full2d(prep["wqa"]), full2d(prep["wqb_nope"]),
            full2d(prep["wqb_rope"]), full2d(prep["wqb_rope_sw"]),
            full2d(prep["wkva_lat"]), full2d(prep["wka_rope"]), full2d(prep["wka_rope_sw"]),
            full2d(prep["wkvb"]),
            pl.BlockSpec((S, H * dr), lambda b: (0, 0)),
            pl.BlockSpec((S, H * dr), lambda b: (0, 0)),
            pl.BlockSpec((S, dr), lambda b: (0, 0)),
            pl.BlockSpec((S, dr), lambda b: (0, 0)),
        ],
        out_specs=(row3d(E), row3d(H * dn), row3d(kvw), row3d(RP)),
        compiler_params=pltpu.CompilerParams(dimension_semantics=("parallel",)),
    )(x, prep["wqa"], prep["wqb_nope"], prep["wqb_rope"], prep["wqb_rope_sw"],
      prep["wkva_lat"], prep["wka_rope"], prep["wka_rope_sw"], prep["wkvb"],
      prep["cos_q"], prep["sin_q"], prep["cos_k"], prep["sin_k"])

    # ---- K2: fused causal GQA attention + W_o + residual + rms + MLP + residual ----
    # TODO(synk): attention_dropout_p / residual Dropout are treated as inference (identity).
    out = pl.pallas_call(
        partial(_attn_tail_kernel, H=H, KVH=KVH, dn=dn, dr=dr, dv=dv, scale=scale),
        out_shape=jax.ShapeDtypeStruct((B, S, E), jnp.float32),
        grid=(B,),
        in_specs=[
            row3d(H * dn), row3d(RP), row3d(kvw), row3d(E),
            full2d(prep["wo"]), full2d(prep["w1"]), full2d(prep["w2"]),
        ],
        out_specs=row3d(E),
        scratch_shapes=[pltpu.VMEM((S, H * dv), jnp.float32)],
        compiler_params=pltpu.CompilerParams(dimension_semantics=("parallel",)),
    )(qn, rope, kv, h, prep["wo"], prep["w1"], prep["w2"])
    return out


# --------------------------- pure-JAX reference ----------------------------

def apply_rope(x, cos, sin):
    """x: [B,S,H,D] with interleaved (real, imag) pairs along D (torch.view_as_complex)."""
    B, S, H, D = x.shape
    x = x.astype(jnp.float32)
    xr = x[..., 0::2]
    xi = x[..., 1::2]
    c = cos[:S][None, :, None, :]
    s = sin[:S][None, :, None, :]
    out_r = xr * c - xi * s
    out_i = xr * s + xi * c
    return jnp.stack([out_r, out_i], axis=-1).reshape(B, S, H, D)


def reference_forward(params, x, cos, sin, cfg):
    """Pure-JAX DecoderBlock reference with bf16 MXU operands (mirrors kernel precision)."""
    B, S, E = x.shape
    H, KVH = cfg["num_heads"], cfg["num_kv_heads"]
    dn, dr, dv = cfg["qk_nope_head_dim"], cfg["qk_rope_head_dim"], cfg["v_head_dim"]
    dqk = dn + dr
    Lq, Lkv = cfg["q_lora_rank"], cfg["kv_lora_rank"]
    scale = 1.0 / math.sqrt(dqk)

    def bdot(a, b):
        return jnp.dot(a.astype(jnp.bfloat16), b.astype(jnp.bfloat16),
                       preferred_element_type=jnp.float32)

    h = _rms(x)
    h2d = h.reshape(B * S, E)

    q = bdot(_rms(bdot(h2d, params["Q_a"])), params["Q_b"]).reshape(B, S, H, dqk)
    q = jnp.concatenate([q[..., :dn], apply_rope(q[..., dn:], cos, sin)], axis=-1)
    q = q.transpose(0, 2, 1, 3)

    kv_lr = bdot(h2d, params["KV_a"]).reshape(B, S, Lkv + dr)
    k_rope = apply_rope(kv_lr[..., Lkv:].reshape(B, S, 1, dr), cos, sin)
    k_rope = jnp.broadcast_to(k_rope, (B, S, KVH, dr)).transpose(0, 2, 1, 3)
    kv = bdot(_rms(kv_lr[..., :Lkv]).reshape(B * S, Lkv), params["KV_b"])
    kv = kv.reshape(B, S, KVH, dn + dv).transpose(0, 2, 1, 3)
    k = jnp.concatenate([kv[..., :dn], k_rope], axis=-1)
    v = kv[..., dn:]

    group = H // KVH
    k = jnp.repeat(k, group, axis=1)
    v = jnp.repeat(v, group, axis=1)
    s = jnp.einsum("bhqd,bhkd->bhqk", q.astype(jnp.bfloat16), k.astype(jnp.bfloat16),
                   preferred_element_type=jnp.float32) * scale
    mask = jnp.tril(jnp.ones((S, S), dtype=bool))
    s = jnp.where(mask[None, None], s, -jnp.inf)
    m = jnp.max(s, axis=-1, keepdims=True)
    p = jnp.exp(s - m)
    l = jnp.sum(p, axis=-1, keepdims=True)
    o = jnp.einsum("bhqk,bhkd->bhqd", p.astype(jnp.bfloat16), v.astype(jnp.bfloat16),
                   preferred_element_type=jnp.float32) / l
    attn = o.transpose(0, 2, 1, 3).reshape(B * S, H * dv)

    y1 = h2d + bdot(attn, params["W_o"])
    h2 = _rms(y1)
    hid = jnp.square(jnp.maximum(bdot(h2, params["W1"]), 0.0))
    out = h2 + bdot(hid, params["W2"])
    return out.reshape(B, S, E)


# ---------------------------------- main -----------------------------------

if __name__ == "__main__":
    cfg = dict(
        embedding_dim=128, num_heads=4, num_kv_heads=2,
        q_lora_rank=64, kv_lora_rank=64,
        qk_nope_head_dim=32, qk_rope_head_dim=16, v_head_dim=32,
        context_length=16, feedforward_dim=256,
    )
    B, S = 2, 16
    dqk = cfg["qk_nope_head_dim"] + cfg["qk_rope_head_dim"]

    key = jax.random.PRNGKey(0)
    ks = jax.random.split(key, 8)
    wscale = 0.05
    # Weights stored [in, out] (== transposed nn.Linear.weight).
    # NOTE: the module zero-inits output_proj; we use a nonzero deterministic init so the
    # attention path produces a non-trivial, checkable contribution.
    params = {
        "Q_a": wscale * jax.random.normal(ks[0], (cfg["embedding_dim"], cfg["q_lora_rank"]), jnp.float32),
        "Q_b": wscale * jax.random.normal(ks[1], (cfg["q_lora_rank"], cfg["num_heads"] * dqk), jnp.float32),
        "KV_a": wscale * jax.random.normal(ks[2], (cfg["embedding_dim"], cfg["kv_lora_rank"] + cfg["qk_rope_head_dim"]), jnp.float32),
        "KV_b": wscale * jax.random.normal(ks[3], (cfg["kv_lora_rank"], cfg["num_kv_heads"] * (cfg["qk_nope_head_dim"] + cfg["v_head_dim"])), jnp.float32),
        "W_o": wscale * jax.random.normal(ks[4], (cfg["num_heads"] * cfg["v_head_dim"], cfg["embedding_dim"]), jnp.float32),
        "W1": wscale * jax.random.normal(ks[5], (cfg["embedding_dim"], cfg["feedforward_dim"]), jnp.float32),
        "W2": wscale * jax.random.normal(ks[6], (cfg["feedforward_dim"], cfg["embedding_dim"]), jnp.float32),
    }
    x = jax.random.normal(ks[7], (B, S, cfg["embedding_dim"]), jnp.float32)
    cos, sin = make_freqs(cfg["context_length"], cfg["qk_rope_head_dim"])

    prep = prepare_params(params, cfg)        # one-time: bf16 cast + slab splits + rope tables
    fwd = jax.jit(partial(decoder_block_forward, cfg=cfg))

    out = jax.block_until_ready(fwd(prep, x))
    ref = jax.block_until_ready(reference_forward(params, x, cos, sin, cfg))

    assert out.shape == (B, S, cfg["embedding_dim"])
    max_err = float(jnp.max(jnp.abs(out - ref)))
    assert jnp.allclose(out, ref, rtol=1e-2, atol=1e-2), max_err
    print("KERNEL_OK")
</pallas_src>

<mosaic_0001>
module attributes {stable_mosaic.version = 11 : i64} {
  func.func @_proj_kernel(%arg0: i32, %arg1: memref<1x16x128xf32, #tpu.memory_space<vmem>>, %arg2: memref<128x64xbf16, #tpu.memory_space<vmem>>, %arg3: memref<64x128xbf16, #tpu.memory_space<vmem>>, %arg4: memref<64x64xbf16, #tpu.memory_space<vmem>>, %arg5: memref<64x64xbf16, #tpu.memory_space<vmem>>, %arg6: memref<128x64xbf16, #tpu.memory_space<vmem>>, %arg7: memref<128x16xbf16, #tpu.memory_space<vmem>>, %arg8: memref<128x16xbf16, #tpu.memory_space<vmem>>, %arg9: memref<64x128xbf16, #tpu.memory_space<vmem>>, %arg10: memref<16x64xf32, #tpu.memory_space<vmem>>, %arg11: memref<16x64xf32, #tpu.memory_space<vmem>>, %arg12: memref<16x16xf32, #tpu.memory_space<vmem>>, %arg13: memref<16x16xf32, #tpu.memory_space<vmem>>, %arg14: memref<1x16x128xf32, #tpu.memory_space<vmem>>, %arg15: memref<1x16x128xbf16, #tpu.memory_space<vmem>>, %arg16: memref<1x16x128xbf16, #tpu.memory_space<vmem>>, %arg17: memref<1x16x128xbf16, #tpu.memory_space<vmem>>) attributes {dimension_semantics = [#tpu.dimension_semantics<parallel>], iteration_bounds = array<i64: 2>, scalar_prefetch = 0 : i64, scratch_operands = 0 : i64, tpu.core_type = #tpu.core_type<tc>, window_params = [{transform_indices = @transform_0, window_bounds = array<i64: 1, 16, 128>}, {pipeline_mode = #tpu.pipeline_mode<synchronous>, transform_indices = @transform_1, window_bounds = array<i64: 128, 64>}, {pipeline_mode = #tpu.pipeline_mode<synchronous>, transform_indices = @transform_2, window_bounds = array<i64: 64, 128>}, {pipeline_mode = #tpu.pipeline_mode<synchronous>, transform_indices = @transform_3, window_bounds = array<i64: 64, 64>}, {pipeline_mode = #tpu.pipeline_mode<synchronous>, transform_indices = @transform_4, window_bounds = array<i64: 64, 64>}, {pipeline_mode = #tpu.pipeline_mode<synchronous>, transform_indices = @transform_5, window_bounds = array<i64: 128, 64>}, {pipeline_mode = #tpu.pipeline_mode<synchronous>, transform_indices = @transform_6, window_bounds = array<i64: 128, 16>}, {pipeline_mode = #tpu.pipeline_mode<synchronous>, transform_indices = @transform_7, window_bounds = array<i64: 128, 16>}, {pipeline_mode = #tpu.pipeline_mode<synchronous>, transform_indices = @transform_8, window_bounds = array<i64: 64, 128>}, {pipeline_mode = #tpu.pipeline_mode<synchronous>, transform_indices = @transform_9, window_bounds = array<i64: 16, 64>}, {pipeline_mode = #tpu.pipeline_mode<synchronous>, transform_indices = @transform_10, window_bounds = array<i64: 16, 64>}, {pipeline_mode = #tpu.pipeline_mode<synchronous>, transform_indices = @transform_11, window_bounds = array<i64: 16, 16>}, {pipeline_mode = #tpu.pipeline_mode<synchronous>, transform_indices = @transform_12, window_bounds = array<i64: 16, 16>}, {transform_indices = @transform_13, window_bounds = array<i64: 1, 16, 128>}, {transform_indices = @transform_14, window_bounds = array<i64: 1, 16, 128>}, {transform_indices = @transform_15, window_bounds = array<i64: 1, 16, 128>}, {transform_indices = @transform_16, window_bounds = array<i64: 1, 16, 128>}]} {
    %c0 = arith.constant 0 : index
    %c0_0 = arith.constant 0 : index
    %c0_1 = arith.constant 0 : index
    %0 = vector.load %arg1[%c0, %c0_0, %c0_1] : memref<1x16x128xf32, #tpu.memory_space<vmem>>, vector<1x16x128xf32>
    %1 = vector.shape_cast %0 : vector<1x16x128xf32> to vector<16x128xf32>
    %2 = arith.mulf %1, %1 : vector<16x128xf32>
    %cst = arith.constant dense<0.000000e+00> : vector<16xf32>
    %3 = vector.multi_reduction <add>, %2, %cst [1] : vector<16x128xf32> to vector<16xf32>
    %4 = vector.shape_cast %3 : vector<16xf32> to vector<16x1xf32>
    %cst_2 = arith.constant 1.280000e+02 : f32
    %5 = vector.broadcast %cst_2 : f32 to vector<16x1xf32>
    %6 = arith.divf %4, %5 : vector<16x1xf32>
    %cst_3 = arith.constant 1.1920929E-7 : f32
    %7 = vector.broadcast %cst_3 : f32 to vector<16x1xf32>
    %8 = arith.addf %6, %7 : vector<16x1xf32>
    %9 = math.rsqrt %8 : vector<16x1xf32>
    %10 = vector.broadcast %9 : vector<16x1xf32> to vector<16x128xf32>
    %11 = arith.mulf %1, %10 : vector<16x128xf32>
    %c0_4 = arith.constant 0 : index
    %c0_5 = arith.constant 0 : index
    %c0_6 = arith.constant 0 : index
    %12 = vector.load %arg14[%c0_4, %c0_5, %c0_6] : memref<1x16x128xf32, #tpu.memory_space<vmem>>, vector<1x16x128xf32>
    %13 = vector.shape_cast %12 : vector<1x16x128xf32> to vector<16x128xf32>
    %14 = vector.shape_cast %11 : vector<16x128xf32> to vector<1x16x128xf32>
    tpu.vector_store %arg14[%c0_4, %c0_5, %c0_6], %14 {strides = array<i32>} : memref<1x16x128xf32, #tpu.memory_space<vmem>>, vector<1x16x128xf32>,
    %15 = arith.truncf %11 : vector<16x128xf32> to vector<16x128xbf16>
    %c0_7 = arith.constant 0 : index
    %c0_8 = arith.constant 0 : index
    %16 = vector.load %arg2[%c0_7, %c0_8] : memref<128x64xbf16, #tpu.memory_space<vmem>>, vector<128x64xbf16>
    %cst_9 = arith.constant dense<0.000000e+00> : vector<16x64xf32>
    %17 = tpu.matmul %15, %16, %cst_9 {dimension_numbers = #tpu.dot_dimension_numbers<[1], [0], [0], [1], [0, 0, 1, 1], [], []>} : vector<16x128xbf16>, vector<128x64xbf16>, vector<16x64xf32> -> vector<16x64xf32>
    %18 = arith.mulf %17, %17 : vector<16x64xf32>
    %cst_10 = arith.constant dense<0.000000e+00> : vector<16xf32>
    %19 = vector.multi_reduction <add>, %18, %cst_10 [1] : vector<16x64xf32> to vector<16xf32>
    %20 = vector.shape_cast %19 : vector<16xf32> to vector<16x1xf32>
    %cst_11 = arith.constant 6.400000e+01 : f32
    %21 = vector.broadcast %cst_11 : f32 to vector<16x1xf32>
    %22 = arith.divf %20, %21 : vector<16x1xf32>
    %cst_12 = arith.constant 1.1920929E-7 : f32
    %23 = vector.broadcast %cst_12 : f32 to vector<16x1xf32>
    %24 = arith.addf %22, %23 : vector<16x1xf32>
    %25 = math.rsqrt %24 : vector<16x1xf32>
    %26 = vector.broadcast %25 : vector<16x1xf32> to vector<16x64xf32>
    %27 = arith.mulf %17, %26 : vector<16x64xf32>
    %28 = arith.truncf %27 : vector<16x64xf32> to vector<16x64xbf16>
    %c0_13 = arith.constant 0 : index
    %c0_14 = arith.constant 0 : index
    %29 = vector.load %arg3[%c0_13, %c0_14] : memref<64x128xbf16, #tpu.memory_space<vmem>>, vector<64x128xbf16>
    %cst_15 = arith.constant dense<0.000000e+00> : vector<16x128xf32>
    %30 = tpu.matmul %28, %29, %cst_15 {dimension_numbers = #tpu.dot_dimension_numbers<[1], [0], [0], [1], [0, 0, 1, 1], [], []>} : vector<16x64xbf16>, vector<64x128xbf16>, vector<16x128xf32> -> vector<16x128xf32>
    %31 = arith.truncf %30 : vector<16x128xf32> to vector<16x128xbf16>
    %c0_16 = arith.constant 0 : index
    %c0_17 = arith.constant 0 : index
    %c0_18 = arith.constant 0 : index
    %32 = vector.load %arg15[%c0_16, %c0_17, %c0_18] : memref<1x16x128xbf16, #tpu.memory_space<vmem>>, vector<1x16x128xbf16>
    %33 = vector.shape_cast %32 : vector<1x16x128xbf16> to vector<16x128xbf16>
    %34 = vector.shape_cast %31 : vector<16x128xbf16> to vector<1x16x128xbf16>
    tpu.vector_store %arg15[%c0_16, %c0_17, %c0_18], %34 {strides = array<i32>} : memref<1x16x128xbf16, #tpu.memory_space<vmem>>, vector<1x16x128xbf16>,
    %c0_19 = arith.constant 0 : index
    %c0_20 = arith.constant 0 : index
    %35 = vector.load %arg4[%c0_19, %c0_20] : memref<64x64xbf16, #tpu.memory_space<vmem>>, vector<64x64xbf16>
    %cst_21 = arith.constant dense<0.000000e+00> : vector<16x64xf32>
    %36 = tpu.matmul %28, %35, %cst_21 {dimension_numbers = #tpu.dot_dimension_numbers<[1], [0], [0], [1], [0, 0, 1, 1], [], []>} : vector<16x64xbf16>, vector<64x64xbf16>, vector<16x64xf32> -> vector<16x64xf32>
    %c0_22 = arith.constant 0 : index
    %c0_23 = arith.constant 0 : index
    %37 = vector.load %arg5[%c0_22, %c0_23] : memref<64x64xbf16, #tpu.memory_space<vmem>>, vector<64x64xbf16>
    %cst_24 = arith.constant dense<0.000000e+00> : vector<16x64xf32>
    %38 = tpu.matmul %28, %37, %cst_24 {dimension_numbers = #tpu.dot_dimension_numbers<[1], [0], [0], [1], [0, 0, 1, 1], [], []>} : vector<16x64xbf16>, vector<64x64xbf16>, vector<16x64xf32> -> vector<16x64xf32>
    %c0_25 = arith.constant 0 : index
    %c0_26 = arith.constant 0 : index
    %39 = vector.load %arg10[%c0_25, %c0_26] : memref<16x64xf32, #tpu.memory_space<vmem>>, vector<16x64xf32>
    %40 = arith.mulf %36, %39 : vector<16x64xf32>
    %c0_27 = arith.constant 0 : index
    %c0_28 = arith.constant 0 : index
    %41 = vector.load %arg11[%c0_27, %c0_28] : memref<16x64xf32, #tpu.memory_space<vmem>>, vector<16x64xf32>
    %42 = arith.mulf %38, %41 : vector<16x64xf32>
    %43 = arith.addf %40, %42 : vector<16x64xf32>
    %c0_29 = arith.constant 0 : index
    %c0_30 = arith.constant 0 : index
    %44 = vector.load %arg6[%c0_29, %c0_30] : memref<128x64xbf16, #tpu.memory_space<vmem>>, vector<128x64xbf16>
    %cst_31 = arith.constant dense<0.000000e+00> : vector<16x64xf32>
    %45 = tpu.matmul %15, %44, %cst_31 {dimension_numbers = #tpu.dot_dimension_numbers<[1], [0], [0], [1], [0, 0, 1, 1], [], []>} : vector<16x128xbf16>, vector<128x64xbf16>, vector<16x64xf32> -> vector<16x64xf32>
    %46 = arith.mulf %45, %45 : vector<16x64xf32>
    %cst_32 = arith.constant dense<0.000000e+00> : vector<16xf32>
    %47 = vector.multi_reduction <add>, %46, %cst_32 [1] : vector<16x64xf32> to vector<16xf32>
    %48 = vector.shape_cast %47 : vector<16xf32> to vector<16x1xf32>
    %cst_33 = arith.constant 6.400000e+01 : f32
    %49 = vector.broadcast %cst_33 : f32 to vector<16x1xf32>
    %50 = arith.divf %48, %49 : vector<16x1xf32>
    %cst_34 = arith.constant 1.1920929E-7 : f32
    %51 = vector.broadcast %cst_34 : f32 to vector<16x1xf32>
    %52 = arith.addf %50, %51 : vector<16x1xf32>
    %53 = math.rsqrt %52 : vector<16x1xf32>
    %54 = vector.broadcast %53 : vector<16x1xf32> to vector<16x64xf32>
    %55 = arith.mulf %45, %54 : vector<16x64xf32>
    %56 = arith.truncf %55 : vector<16x64xf32> to vector<16x64xbf16>
    %c0_35 = arith.constant 0 : index
    %c0_36 = arith.constant 0 : index
    %57 = vector.load %arg9[%c0_35, %c0_36] : memref<64x128xbf16, #tpu.memory_space<vmem>>, vector<64x128xbf16>
    %cst_37 = arith.constant dense<0.000000e+00> : vector<16x128xf32>
    %58 = tpu.matmul %56, %57, %cst_37 {dimension_numbers = #tpu.dot_dimension_numbers<[1], [0], [0], [1], [0, 0, 1, 1], [], []>} : vector<16x64xbf16>, vector<64x128xbf16>, vector<16x128xf32> -> vector<16x128xf32>
    %59 = arith.truncf %58 : vector<16x128xf32> to vector<16x128xbf16>
    %c0_38 = arith.constant 0 : index
    %c0_39 = arith.constant 0 : index
    %c0_40 = arith.constant 0 : index
    %60 = vector.load %arg16[%c0_38, %c0_39, %c0_40] : memref<1x16x128xbf16, #tpu.memory_space<vmem>>, vector<1x16x128xbf16>
    %61 = vector.shape_cast %60 : vector<1x16x128xbf16> to vector<16x128xbf16>
    %62 = vector.shape_cast %59 : vector<16x128xbf16> to vector<1x16x128xbf16>
    tpu.vector_store %arg16[%c0_38, %c0_39, %c0_40], %62 {strides = array<i32>} : memref<1x16x128xbf16, #tpu.memory_space<vmem>>, vector<1x16x128xbf16>,
    %c0_41 = arith.constant 0 : index
    %c0_42 = arith.constant 0 : index
    %63 = vector.load %arg7[%c0_41, %c0_42] : memref<128x16xbf16, #tpu.memory_space<vmem>>, vector<128x16xbf16>
    %cst_43 = arith.constant dense<0.000000e+00> : vector<16x16xf32>
    %64 = tpu.matmul %15, %63, %cst_43 {dimension_numbers = #tpu.dot_dimension_numbers<[1], [0], [0], [1], [0, 0, 1, 1], [], []>} : vector<16x128xbf16>, vector<128x16xbf16>, vector<16x16xf32> -> vector<16x16xf32>
    %c0_44 = arith.constant 0 : index
    %c0_45 = arith.constant 0 : index
    %65 = vector.load %arg8[%c0_44, %c0_45] : memref<128x16xbf16, #tpu.memory_space<vmem>>, vector<128x16xbf16>
    %cst_46 = arith.constant dense<0.000000e+00> : vector<16x16xf32>
    %66 = tpu.matmul %15, %65, %cst_46 {dimension_numbers = #tpu.dot_dimension_numbers<[1], [0], [0], [1], [0, 0, 1, 1], [], []>} : vector<16x128xbf16>, vector<128x16xbf16>, vector<16x16xf32> -> vector<16x16xf32>
    %c0_47 = arith.constant 0 : index
    %c0_48 = arith.constant 0 : index
    %67 = vector.load %arg12[%c0_47, %c0_48] : memref<16x16xf32, #tpu.memory_space<vmem>>, vector<16x16xf32>
    %68 = arith.mulf %64, %67 : vector<16x16xf32>
    %c0_49 = arith.constant 0 : index
    %c0_50 = arith.constant 0 : index
    %69 = vector.load %arg13[%c0_49, %c0_50] : memref<16x16xf32, #tpu.memory_space<vmem>>, vector<16x16xf32>
    %70 = arith.mulf %66, %69 : vector<16x16xf32>
    %71 = arith.addf %68, %70 : vector<16x16xf32>
    %cst_51 = arith.constant 0.000000e+00 : f32
    %72 = vector.broadcast %cst_51 : f32 to vector<16x48xf32>
    %73 = tpu.concatenate %43, %71, %72 in 1 : vector<16x64xf32>, vector<16x16xf32>, vector<16x48xf32> -> vector<16x128xf32>
    %74 = arith.truncf %73 : vector<16x128xf32> to vector<16x128xbf16>
    %c0_52 = arith.constant 0 : index
    %c0_53 = arith.constant 0 : index
    %c0_54 = arith.constant 0 : index
    %75 = vector.load %arg17[%c0_52, %c0_53, %c0_54] : memref<1x16x128xbf16, #tpu.memory_space<vmem>>, vector<1x16x128xbf16>
    %76 = vector.shape_cast %75 : vector<1x16x128xbf16> to vector<16x128xbf16>
    %77 = vector.shape_cast %74 : vector<16x128xbf16> to vector<1x16x128xbf16>
    tpu.vector_store %arg17[%c0_52, %c0_53, %c0_54], %77 {strides = array<i32>} : memref<1x16x128xbf16, #tpu.memory_space<vmem>>, vector<1x16x128xbf16>,
    return
  }
  func.func @transform_0(%arg0: i32) -> (i32, i32, i32) {
    %c0_i32 = arith.constant 0 : i32
    %c0_i32_0 = arith.constant 0 : i32
    %c0_i32_1 = arith.constant 0 : i32
    return %arg0, %c0_i32, %c0_i32_0 : i32, i32, i32
  }
  func.func @transform_1(%arg0: i32) -> (i32, i32) {
    %c0_i32 = arith.constant 0 : i32
    %c0_i32_0 = arith.constant 0 : i32
    %c0_i32_1 = arith.constant 0 : i32
    return %c0_i32, %c0_i32_0 : i32, i32
  }
  func.func @transform_2(%arg0: i32) -> (i32, i32) {
    %c0_i32 = arith.constant 0 : i32
    %c0_i32_0 = arith.constant 0 : i32
    %c0_i32_1 = arith.constant 0 : i32
    return %c0_i32, %c0_i32_0 : i32, i32
  }
  func.func @transform_3(%arg0: i32) -> (i32, i32) {
    %c0_i32 = arith.constant 0 : i32
    %c0_i32_0 = arith.constant 0 : i32
    %c0_i32_1 = arith.constant 0 : i32
    return %c0_i32, %c0_i32_0 : i32, i32
  }
  func.func @transform_4(%arg0: i32) -> (i32, i32) {
    %c0_i32 = arith.constant 0 : i32
    %c0_i32_0 = arith.constant 0 : i32
    %c0_i32_1 = arith.constant 0 : i32
    return %c0_i32, %c0_i32_0 : i32, i32
  }
  func.func @transform_5(%arg0: i32) -> (i32, i32) {
    %c0_i32 = arith.constant 0 : i32
    %c0_i32_0 = arith.constant 0 : i32
    %c0_i32_1 = arith.constant 0 : i32
    return %c0_i32, %c0_i32_0 : i32, i32
  }
  func.func @transform_6(%arg0: i32) -> (i32, i32) {
    %c0_i32 = arith.constant 0 : i32
    %c0_i32_0 = arith.constant 0 : i32
    %c0_i32_1 = arith.constant 0 : i32
    return %c0_i32, %c0_i32_0 : i32, i32
  }
  func.func @transform_7(%arg0: i32) -> (i32, i32) {
    %c0_i32 = arith.constant 0 : i32
    %c0_i32_0 = arith.constant 0 : i32
    %c0_i32_1 = arith.constant 0 : i32
    return %c0_i32, %c0_i32_0 : i32, i32
  }
  func.func @transform_8(%arg0: i32) -> (i32, i32) {
    %c0_i32 = arith.constant 0 : i32
    %c0_i32_0 = arith.constant 0 : i32
    %c0_i32_1 = arith.constant 0 : i32
    return %c0_i32, %c0_i32_0 : i32, i32
  }
  func.func @transform_9(%arg0: i32) -> (i32, i32) {
    %c0_i32 = arith.constant 0 : i32
    %c0_i32_0 = arith.constant 0 : i32
    %c0_i32_1 = arith.constant 0 : i32
    return %c0_i32, %c0_i32_0 : i32, i32
  }
  func.func @transform_10(%arg0: i32) -> (i32, i32) {
    %c0_i32 = arith.constant 0 : i32
    %c0_i32_0 = arith.constant 0 : i32
    %c0_i32_1 = arith.constant 0 : i32
    return %c0_i32, %c0_i32_0 : i32, i32
  }
  func.func @transform_11(%arg0: i32) -> (i32, i32) {
    %c0_i32 = arith.constant 0 : i32
    %c0_i32_0 = arith.constant 0 : i32
    %c0_i32_1 = arith.constant 0 : i32
    return %c0_i32, %c0_i32_0 : i32, i32
  }
  func.func @transform_12(%arg0: i32) -> (i32, i32) {
    %c0_i32 = arith.constant 0 : i32
    %c0_i32_0 = arith.constant 0 : i32
    %c0_i32_1 = arith.constant 0 : i32
    return %c0_i32, %c0_i32_0 : i32, i32
  }
  func.func @transform_13(%arg0: i32) -> (i32, i32, i32) {
    %c0_i32 = arith.constant 0 : i32
    %c0_i32_0 = arith.constant 0 : i32
    %c0_i32_1 = arith.constant 0 : i32
    return %arg0, %c0_i32, %c0_i32_0 : i32, i32, i32
  }
  func.func @transform_14(%arg0: i32) -> (i32, i32, i32) {
    %c0_i32 = arith.constant 0 : i32
    %c0_i32_0 = arith.constant 0 : i32
    %c0_i32_1 = arith.constant 0 : i32
    return %arg0, %c0_i32, %c0_i32_0 : i32, i32, i32
  }
  func.func @transform_15(%arg0: i32) -> (i32, i32, i32) {
    %c0_i32 = arith.constant 0 : i32
    %c0_i32_0 = arith.constant 0 : i32
    %c0_i32_1 = arith.constant 0 : i32
    return %arg0, %c0_i32, %c0_i32_0 : i32, i32, i32
  }
  func.func @transform_16(%arg0: i32) -> (i32, i32, i32) {
    %c0_i32 = arith.constant 0 : i32
    %c0_i32_0 = arith.constant 0 : i32
    %c0_i32_1 = arith.constant 0 : i32
    return %arg0, %c0_i32, %c0_i32_0 : i32, i32, i32
  }
}

module attributes {stable_mosaic.version = 11 : i64} {
  func.func @_attn_tail_kernel(%arg0: i32, %arg1: memref<1x16x128xbf16, #tpu.memory_space<vmem>>, %arg2: memref<1x16x128xbf16, #tpu.memory_space<vmem>>, %arg3: memref<1x16x128xbf16, #tpu.memory_space<vmem>>, %arg4: memref<1x16x128xf32, #tpu.memory_space<vmem>>, %arg5: memref<128x128xbf16, #tpu.memory_space<vmem>>, %arg6: memref<128x256xbf16, #tpu.memory_space<vmem>>, %arg7: memref<256x128xbf16, #tpu.memory_space<vmem>>, %arg8: memref<1x16x128xf32, #tpu.memory_space<vmem>>, %arg9: memref<16x128xf32, #tpu.memory_space<vmem>>) attributes {dimension_semantics = [#tpu.dimension_semantics<parallel>], iteration_bounds = array<i64: 2>, scalar_prefetch = 0 : i64, scratch_operands = 1 : i64, tpu.core_type = #tpu.core_type<tc>, window_params = [{transform_indices = @transform_0, window_bounds = array<i64: 1, 16, 128>}, {transform_indices = @transform_1, window_bounds = array<i64: 1, 16, 128>}, {transform_indices = @transform_2, window_bounds = array<i64: 1, 16, 128>}, {transform_indices = @transform_3, window_bounds = array<i64: 1, 16, 128>}, {pipeline_mode = #tpu.pipeline_mode<synchronous>, transform_indices = @transform_4, window_bounds = array<i64: 128, 128>}, {pipeline_mode = #tpu.pipeline_mode<synchronous>, transform_indices = @transform_5, window_bounds = array<i64: 128, 256>}, {pipeline_mode = #tpu.pipeline_mode<synchronous>, transform_indices = @transform_6, window_bounds = array<i64: 256, 128>}, {transform_indices = @transform_7, window_bounds = array<i64: 1, 16, 128>}]} {
    %c0 = arith.constant 0 : index
    %c0_0 = arith.constant 0 : index
    %c64 = arith.constant 64 : index
    %0 = vector.load %arg2[%c0, %c0_0, %c64] : memref<1x16x128xbf16, #tpu.memory_space<vmem>>, vector<1x16x16xbf16>
    %1 = vector.shape_cast %0 : vector<1x16x16xbf16> to vector<16x16xbf16>
    %2 = tpu.iota {dimensions = array<i32: 0>} : vector<16x16xi32>
    %3 = tpu.iota {dimensions = array<i32: 1>} : vector<16x16xi32>
    %4 = arith.cmpi sle, %3, %2 : vector<16x16xi32>
    %c0_1 = arith.constant 0 : index
    %c0_2 = arith.constant 0 : index
    %c0_3 = arith.constant 0 : index
    %5 = vector.load %arg3[%c0_1, %c0_2, %c0_3] : memref<1x16x128xbf16, #tpu.memory_space<vmem>>, vector<1x16x32xbf16>
    %6 = vector.shape_cast %5 : vector<1x16x32xbf16> to vector<16x32xbf16>
    %c0_4 = arith.constant 0 : index
    %c0_5 = arith.constant 0 : index
    %c32 = arith.constant 32 : index
    %7 = vector.load %arg3[%c0_4, %c0_5, %c32] : memref<1x16x128xbf16, #tpu.memory_space<vmem>>, vector<1x16x32xbf16>
    %8 = vector.shape_cast %7 : vector<1x16x32xbf16> to vector<16x32xbf16>
    %c0_6 = arith.constant 0 : index
    %c0_7 = arith.constant 0 : index
    %c0_8 = arith.constant 0 : index
    %9 = vector.load %arg1[%c0_6, %c0_7, %c0_8] : memref<1x16x128xbf16, #tpu.memory_space<vmem>>, vector<1x16x32xbf16>
    %10 = vector.shape_cast %9 : vector<1x16x32xbf16> to vector<16x32xbf16>
    %c0_9 = arith.constant 0 : index
    %c0_10 = arith.constant 0 : index
    %c0_11 = arith.constant 0 : index
    %11 = vector.load %arg2[%c0_9, %c0_10, %c0_11] : memref<1x16x128xbf16, #tpu.memory_space<vmem>>, vector<1x16x16xbf16>
    %12 = vector.shape_cast %11 : vector<1x16x16xbf16> to vector<16x16xbf16>
    %cst = arith.constant dense<0.000000e+00> : vector<16x16xf32>
    %13 = tpu.matmul %10, %6, %cst {dimension_numbers = #tpu.dot_dimension_numbers<[1], [1], [0], [0], [0, 0, 1, 0], [], []>} : vector<16x32xbf16>, vector<16x32xbf16>, vector<16x16xf32> -> vector<16x16xf32>
    %cst_12 = arith.constant dense<0.000000e+00> : vector<16x16xf32>
    %14 = tpu.matmul %12, %1, %cst_12 {dimension_numbers = #tpu.dot_dimension_numbers<[1], [1], [0], [0], [0, 0, 1, 0], [], []>} : vector<16x16xbf16>, vector<16x16xbf16>, vector<16x16xf32> -> vector<16x16xf32>
    %15 = arith.addf %13, %14 : vector<16x16xf32>
    %cst_13 = arith.constant 0.144337565 : f32
    %16 = vector.broadcast %cst_13 : f32 to vector<16x16xf32>
    %17 = arith.mulf %15, %16 : vector<16x16xf32>
    %cst_14 = arith.constant 0xFF800000 : f32
    %18 = vector.broadcast %cst_14 : f32 to vector<16x16xf32>
    %19 = arith.select %4, %17, %18 : vector<16x16xi1>, vector<16x16xf32>
    %cst_15 = arith.constant dense<0xFF800000> : vector<16xf32>
    %20 = vector.multi_reduction <maximumf>, %19, %cst_15 [1] : vector<16x16xf32> to vector<16xf32>
    %21 = vector.shape_cast %20 : vector<16xf32> to vector<16x1xf32>
    %22 = vector.broadcast %21 : vector<16x1xf32> to vector<16x16xf32>
    %23 = arith.subf %19, %22 : vector<16x16xf32>
    %24 = math.exp %23 : vector<16x16xf32>
    %cst_16 = arith.constant dense<0.000000e+00> : vector<16xf32>
    %25 = vector.multi_reduction <add>, %24, %cst_16 [1] : vector<16x16xf32> to vector<16xf32>
    %26 = vector.shape_cast %25 : vector<16xf32> to vector<16x1xf32>
    %27 = arith.truncf %24 : vector<16x16xf32> to vector<16x16xbf16>
    %cst_17 = arith.constant dense<0.000000e+00> : vector<16x32xf32>
    %28 = tpu.matmul %27, %8, %cst_17 {dimension_numbers = #tpu.dot_dimension_numbers<[1], [0], [0], [1], [0, 0, 1, 1], [], []>} : vector<16x16xbf16>, vector<16x32xbf16>, vector<16x32xf32> -> vector<16x32xf32>
    %29 = vector.broadcast %26 : vector<16x1xf32> to vector<16x32xf32>
    %30 = arith.divf %28, %29 : vector<16x32xf32>
    %c0_18 = arith.constant 0 : index
    %c0_19 = arith.constant 0 : index
    %31 = vector.load %arg9[%c0_18, %c0_19] : memref<16x128xf32, #tpu.memory_space<vmem>>, vector<16x32xf32>
    tpu.vector_store %arg9[%c0_18, %c0_19], %30 {strides = array<i32>} : memref<16x128xf32, #tpu.memory_space<vmem>>, vector<16x32xf32>,
    %c0_20 = arith.constant 0 : index
    %c0_21 = arith.constant 0 : index
    %c32_22 = arith.constant 32 : index
    %32 = vector.load %arg1[%c0_20, %c0_21, %c32_22] : memref<1x16x128xbf16, #tpu.memory_space<vmem>>, vector<1x16x32xbf16>
    %33 = vector.shape_cast %32 : vector<1x16x32xbf16> to vector<16x32xbf16>
    %c0_23 = arith.constant 0 : index
    %c0_24 = arith.constant 0 : index
    %c16 = arith.constant 16 : index
    %34 = vector.load %arg2[%c0_23, %c0_24, %c16] : memref<1x16x128xbf16, #tpu.memory_space<vmem>>, vector<1x16x16xbf16>
    %35 = vector.shape_cast %34 : vector<1x16x16xbf16> to vector<16x16xbf16>
    %cst_25 = arith.constant dense<0.000000e+00> : vector<16x16xf32>
    %36 = tpu.matmul %33, %6, %cst_25 {dimension_numbers = #tpu.dot_dimension_numbers<[1], [1], [0], [0], [0, 0, 1, 0], [], []>} : vector<16x32xbf16>, vector<16x32xbf16>, vector<16x16xf32> -> vector<16x16xf32>
    %cst_26 = arith.constant dense<0.000000e+00> : vector<16x16xf32>
    %37 = tpu.matmul %35, %1, %cst_26 {dimension_numbers = #tpu.dot_dimension_numbers<[1], [1], [0], [0], [0, 0, 1, 0], [], []>} : vector<16x16xbf16>, vector<16x16xbf16>, vector<16x16xf32> -> vector<16x16xf32>
    %38 = arith.addf %36, %37 : vector<16x16xf32>
    %cst_27 = arith.constant 0.144337565 : f32
    %39 = vector.broadcast %cst_27 : f32 to vector<16x16xf32>
    %40 = arith.mulf %38, %39 : vector<16x16xf32>
    %cst_28 = arith.constant 0xFF800000 : f32
    %41 = vector.broadcast %cst_28 : f32 to vector<16x16xf32>
    %42 = arith.select %4, %40, %41 : vector<16x16xi1>, vector<16x16xf32>
    %cst_29 = arith.constant dense<0xFF800000> : vector<16xf32>
    %43 = vector.multi_reduction <maximumf>, %42, %cst_29 [1] : vector<16x16xf32> to vector<16xf32>
    %44 = vector.shape_cast %43 : vector<16xf32> to vector<16x1xf32>
    %45 = vector.broadcast %44 : vector<16x1xf32> to vector<16x16xf32>
    %46 = arith.subf %42, %45 : vector<16x16xf32>
    %47 = math.exp %46 : vector<16x16xf32>
    %cst_30 = arith.constant dense<0.000000e+00> : vector<16xf32>
    %48 = vector.multi_reduction <add>, %47, %cst_30 [1] : vector<16x16xf32> to vector<16xf32>
    %49 = vector.shape_cast %48 : vector<16xf32> to vector<16x1xf32>
    %50 = arith.truncf %47 : vector<16x16xf32> to vector<16x16xbf16>
    %cst_31 = arith.constant dense<0.000000e+00> : vector<16x32xf32>
    %51 = tpu.matmul %50, %8, %cst_31 {dimension_numbers = #tpu.dot_dimension_numbers<[1], [0], [0], [1], [0, 0, 1, 1], [], []>} : vector<16x16xbf16>, vector<16x32xbf16>, vector<16x32xf32> -> vector<16x32xf32>
    %52 = vector.broadcast %49 : vector<16x1xf32> to vector<16x32xf32>
    %53 = arith.divf %51, %52 : vector<16x32xf32>
    %c0_32 = arith.constant 0 : index
    %c32_33 = arith.constant 32 : index
    %54 = vector.load %arg9[%c0_32, %c32_33] : memref<16x128xf32, #tpu.memory_space<vmem>>, vector<16x32xf32>
    tpu.vector_store %arg9[%c0_32, %c32_33], %53 {strides = array<i32>} : memref<16x128xf32, #tpu.memory_space<vmem>>, vector<16x32xf32>,
    %c0_34 = arith.constant 0 : index
    %c0_35 = arith.constant 0 : index
    %c64_36 = arith.constant 64 : index
    %55 = vector.load %arg3[%c0_34, %c0_35, %c64_36] : memref<1x16x128xbf16, #tpu.memory_space<vmem>>, vector<1x16x32xbf16>
    %56 = vector.shape_cast %55 : vector<1x16x32xbf16> to vector<16x32xbf16>
    %c0_37 = arith.constant 0 : index
    %c0_38 = arith.constant 0 : index
    %c96 = arith.constant 96 : index
    %57 = vector.load %arg3[%c0_37, %c0_38, %c96] : memref<1x16x128xbf16, #tpu.memory_space<vmem>>, vector<1x16x32xbf16>
    %58 = vector.shape_cast %57 : vector<1x16x32xbf16> to vector<16x32xbf16>
    %c0_39 = arith.constant 0 : index
    %c0_40 = arith.constant 0 : index
    %c64_41 = arith.constant 64 : index
    %59 = vector.load %arg1[%c0_39, %c0_40, %c64_41] : memref<1x16x128xbf16, #tpu.memory_space<vmem>>, vector<1x16x32xbf16>
    %60 = vector.shape_cast %59 : vector<1x16x32xbf16> to vector<16x32xbf16>
    %c0_42 = arith.constant 0 : index
    %c0_43 = arith.constant 0 : index
    %c32_44 = arith.constant 32 : index
    %61 = vector.load %arg2[%c0_42, %c0_43, %c32_44] : memref<1x16x128xbf16, #tpu.memory_space<vmem>>, vector<1x16x16xbf16>
    %62 = vector.shape_cast %61 : vector<1x16x16xbf16> to vector<16x16xbf16>
    %cst_45 = arith.constant dense<0.000000e+00> : vector<16x16xf32>
    %63 = tpu.matmul %60, %56, %cst_45 {dimension_numbers = #tpu.dot_dimension_numbers<[1], [1], [0], [0], [0, 0, 1, 0], [], []>} : vector<16x32xbf16>, vector<16x32xbf16>, vector<16x16xf32> -> vector<16x16xf32>
    %cst_46 = arith.constant dense<0.000000e+00> : vector<16x16xf32>
    %64 = tpu.matmul %62, %1, %cst_46 {dimension_numbers = #tpu.dot_dimension_numbers<[1], [1], [0], [0], [0, 0, 1, 0], [], []>} : vector<16x16xbf16>, vector<16x16xbf16>, vector<16x16xf32> -> vector<16x16xf32>
    %65 = arith.addf %63, %64 : vector<16x16xf32>
    %cst_47 = arith.constant 0.144337565 : f32
    %66 = vector.broadcast %cst_47 : f32 to vector<16x16xf32>
    %67 = arith.mulf %65, %66 : vector<16x16xf32>
    %cst_48 = arith.constant 0xFF800000 : f32
    %68 = vector.broadcast %cst_48 : f32 to vector<16x16xf32>
    %69 = arith.select %4, %67, %68 : vector<16x16xi1>, vector<16x16xf32>
    %cst_49 = arith.constant dense<0xFF800000> : vector<16xf32>
    %70 = vector.multi_reduction <maximumf>, %69, %cst_49 [1] : vector<16x16xf32> to vector<16xf32>
    %71 = vector.shape_cast %70 : vector<16xf32> to vector<16x1xf32>
    %72 = vector.broadcast %71 : vector<16x1xf32> to vector<16x16xf32>
    %73 = arith.subf %69, %72 : vector<16x16xf32>
    %74 = math.exp %73 : vector<16x16xf32>
    %cst_50 = arith.constant dense<0.000000e+00> : vector<16xf32>
    %75 = vector.multi_reduction <add>, %74, %cst_50 [1] : vector<16x16xf32> to vector<16xf32>
    %76 = vector.shape_cast %75 : vector<16xf32> to vector<16x1xf32>
    %77 = arith.truncf %74 : vector<16x16xf32> to vector<16x16xbf16>
    %cst_51 = arith.constant dense<0.000000e+00> : vector<16x32xf32>
    %78 = tpu.matmul %77, %58, %cst_51 {dimension_numbers = #tpu.dot_dimension_numbers<[1], [0], [0], [1], [0, 0, 1, 1], [], []>} : vector<16x16xbf16>, vector<16x32xbf16>, vector<16x32xf32> -> vector<16x32xf32>
    %79 = vector.broadcast %76 : vector<16x1xf32> to vector<16x32xf32>
    %80 = arith.divf %78, %79 : vector<16x32xf32>
    %c0_52 = arith.constant 0 : index
    %c64_53 = arith.constant 64 : index
    %81 = vector.load %arg9[%c0_52, %c64_53] : memref<16x128xf32, #tpu.memory_space<vmem>>, vector<16x32xf32>
    tpu.vector_store %arg9[%c0_52, %c64_53], %80 {strides = array<i32>} : memref<16x128xf32, #tpu.memory_space<vmem>>, vector<16x32xf32>,
    %c0_54 = arith.constant 0 : index
    %c0_55 = arith.constant 0 : index
    %c96_56 = arith.constant 96 : index
    %82 = vector.load %arg1[%c0_54, %c0_55, %c96_56] : memref<1x16x128xbf16, #tpu.memory_space<vmem>>, vector<1x16x32xbf16>
    %83 = vector.shape_cast %82 : vector<1x16x32xbf16> to vector<16x32xbf16>
    %c0_57 = arith.constant 0 : index
    %c0_58 = arith.constant 0 : index
    %c48 = arith.constant 48 : index
    %84 = vector.load %arg2[%c0_57, %c0_58, %c48] : memref<1x16x128xbf16, #tpu.memory_space<vmem>>, vector<1x16x16xbf16>
    %85 = vector.shape_cast %84 : vector<1x16x16xbf16> to vector<16x16xbf16>
    %cst_59 = arith.constant dense<0.000000e+00> : vector<16x16xf32>
    %86 = tpu.matmul %83, %56, %cst_59 {dimension_numbers = #tpu.dot_dimension_numbers<[1], [1], [0], [0], [0, 0, 1, 0], [], []>} : vector<16x32xbf16>, vector<16x32xbf16>, vector<16x16xf32> -> vector<16x16xf32>
    %cst_60 = arith.constant dense<0.000000e+00> : vector<16x16xf32>
    %87 = tpu.matmul %85, %1, %cst_60 {dimension_numbers = #tpu.dot_dimension_numbers<[1], [1], [0], [0], [0, 0, 1, 0], [], []>} : vector<16x16xbf16>, vector<16x16xbf16>, vector<16x16xf32> -> vector<16x16xf32>
    %88 = arith.addf %86, %87 : vector<16x16xf32>
    %cst_61 = arith.constant 0.144337565 : f32
    %89 = vector.broadcast %cst_61 : f32 to vector<16x16xf32>
    %90 = arith.mulf %88, %89 : vector<16x16xf32>
    %cst_62 = arith.constant 0xFF800000 : f32
    %91 = vector.broadcast %cst_62 : f32 to vector<16x16xf32>
    %92 = arith.select %4, %90, %91 : vector<16x16xi1>, vector<16x16xf32>
    %cst_63 = arith.constant dense<0xFF800000> : vector<16xf32>
    %93 = vector.multi_reduction <maximumf>, %92, %cst_63 [1] : vector<16x16xf32> to vector<16xf32>
    %94 = vector.shape_cast %93 : vector<16xf32> to vector<16x1xf32>
    %95 = vector.broadcast %94 : vector<16x1xf32> to vector<16x16xf32>
    %96 = arith.subf %92, %95 : vector<16x16xf32>
    %97 = math.exp %96 : vector<16x16xf32>
    %cst_64 = arith.constant dense<0.000000e+00> : vector<16xf32>
    %98 = vector.multi_reduction <add>, %97, %cst_64 [1] : vector<16x16xf32> to vector<16xf32>
    %99 = vector.shape_cast %98 : vector<16xf32> to vector<16x1xf32>
    %100 = arith.truncf %97 : vector<16x16xf32> to vector<16x16xbf16>
    %cst_65 = arith.constant dense<0.000000e+00> : vector<16x32xf32>
    %101 = tpu.matmul %100, %58, %cst_65 {dimension_numbers = #tpu.dot_dimension_numbers<[1], [0], [0], [1], [0, 0, 1, 1], [], []>} : vector<16x16xbf16>, vector<16x32xbf16>, vector<16x32xf32> -> vector<16x32xf32>
    %102 = vector.broadcast %99 : vector<16x1xf32> to vector<16x32xf32>
    %103 = arith.divf %101, %102 : vector<16x32xf32>
    %c0_66 = arith.constant 0 : index
    %c96_67 = arith.constant 96 : index
    %104 = vector.load %arg9[%c0_66, %c96_67] : memref<16x128xf32, #tpu.memory_space<vmem>>, vector<16x32xf32>
    tpu.vector_store %arg9[%c0_66, %c96_67], %103 {strides = array<i32>} : memref<16x128xf32, #tpu.memory_space<vmem>>, vector<16x32xf32>,
    %c0_68 = arith.constant 0 : index
    %c0_69 = arith.constant 0 : index
    %105 = vector.load %arg9[%c0_68, %c0_69] : memref<16x128xf32, #tpu.memory_space<vmem>>, vector<16x128xf32>
    %106 = arith.truncf %105 : vector<16x128xf32> to vector<16x128xbf16>
    %c0_70 = arith.constant 0 : index
    %c0_71 = arith.constant 0 : index
    %107 = vector.load %arg5[%c0_70, %c0_71] : memref<128x128xbf16, #tpu.memory_space<vmem>>, vector<128x128xbf16>
    %cst_72 = arith.constant dense<0.000000e+00> : vector<16x128xf32>
    %108 = tpu.matmul %106, %107, %cst_72 {dimension_numbers = #tpu.dot_dimension_numbers<[1], [0], [0], [1], [0, 0, 1, 1], [], []>} : vector<16x128xbf16>, vector<128x128xbf16>, vector<16x128xf32> -> vector<16x128xf32>
    %c0_73 = arith.constant 0 : index
    %c0_74 = arith.constant 0 : index
    %c0_75 = arith.constant 0 : index
    %109 = vector.load %arg4[%c0_73, %c0_74, %c0_75] : memref<1x16x128xf32, #tpu.memory_space<vmem>>, vector<1x16x128xf32>
    %110 = vector.shape_cast %109 : vector<1x16x128xf32> to vector<16x128xf32>
    %111 = arith.addf %110, %108 : vector<16x128xf32>
    %112 = arith.mulf %111, %111 : vector<16x128xf32>
    %cst_76 = arith.constant dense<0.000000e+00> : vector<16xf32>
    %113 = vector.multi_reduction <add>, %112, %cst_76 [1] : vector<16x128xf32> to vector<16xf32>
    %114 = vector.shape_cast %113 : vector<16xf32> to vector<16x1xf32>
    %cst_77 = arith.constant 1.280000e+02 : f32
    %115 = vector.broadcast %cst_77 : f32 to vector<16x1xf32>
    %116 = arith.divf %114, %115 : vector<16x1xf32>
    %cst_78 = arith.constant 1.1920929E-7 : f32
    %117 = vector.broadcast %cst_78 : f32 to vector<16x1xf32>
    %118 = arith.addf %116, %117 : vector<16x1xf32>
    %119 = math.rsqrt %118 : vector<16x1xf32>
    %120 = vector.broadcast %119 : vector<16x1xf32> to vector<16x128xf32>
    %121 = arith.mulf %111, %120 : vector<16x128xf32>
    %122 = arith.truncf %121 : vector<16x128xf32> to vector<16x128xbf16>
    %c0_79 = arith.constant 0 : index
    %c0_80 = arith.constant 0 : index
    %123 = vector.load %arg6[%c0_79, %c0_80] : memref<128x256xbf16, #tpu.memory_space<vmem>>, vector<128x256xbf16>
    %cst_81 = arith.constant dense<0.000000e+00> : vector<16x256xf32>
    %124 = tpu.matmul %122, %123, %cst_81 {dimension_numbers = #tpu.dot_dimension_numbers<[1], [0], [0], [1], [0, 0, 1, 1], [], []>} : vector<16x128xbf16>, vector<128x256xbf16>, vector<16x256xf32> -> vector<16x256xf32>
    %cst_82 = arith.constant 0.000000e+00 : f32
    %125 = vector.broadcast %cst_82 : f32 to vector<16x256xf32>
    %126 = arith.maximumf %124, %125 : vector<16x256xf32>
    %127 = arith.mulf %126, %126 : vector<16x256xf32>
    %128 = arith.truncf %127 : vector<16x256xf32> to vector<16x256xbf16>
    %c0_83 = arith.constant 0 : index
    %c0_84 = arith.constant 0 : index
    %129 = vector.load %arg7[%c0_83, %c0_84] : memref<256x128xbf16, #tpu.memory_space<vmem>>, vector<256x128xbf16>
    %cst_85 = arith.constant dense<0.000000e+00> : vector<16x128xf32>
    %130 = tpu.matmul %128, %129, %cst_85 {dimension_numbers = #tpu.dot_dimension_numbers<[1], [0], [0], [1], [0, 0, 1, 1], [], []>} : vector<16x256xbf16>, vector<256x128xbf16>, vector<16x128xf32> -> vector<16x128xf32>
    %131 = arith.addf %121, %130 : vector<16x128xf32>
    %c0_86 = arith.constant 0 : index
    %c0_87 = arith.constant 0 : index
    %c0_88 = arith.constant 0 : index
    %132 = vector.load %arg8[%c0_86, %c0_87, %c0_88] : memref<1x16x128xf32, #tpu.memory_space<vmem>>, vector<1x16x128xf32>
    %133 = vector.shape_cast %132 : vector<1x16x128xf32> to vector<16x128xf32>
    %134 = vector.shape_cast %131 : vector<16x128xf32> to vector<1x16x128xf32>
    tpu.vector_store %arg8[%c0_86, %c0_87, %c0_88], %134 {strides = array<i32>} : memref<1x16x128xf32, #tpu.memory_space<vmem>>, vector<1x16x128xf32>,
    return
  }
  func.func @transform_0(%arg0: i32) -> (i32, i32, i32) {
    %c0_i32 = arith.constant 0 : i32
    %c0_i32_0 = arith.constant 0 : i32
    %c0_i32_1 = arith.constant 0 : i32
    return %arg0, %c0_i32, %c0_i32_0 : i32, i32, i32
  }
  func.func @transform_1(%arg0: i32) -> (i32, i32, i32) {
    %c0_i32 = arith.constant 0 : i32
    %c0_i32_0 = arith.constant 0 : i32
    %c0_i32_1 = arith.constant 0 : i32
    return %arg0, %c0_i32, %c0_i32_0 : i32, i32, i32
  }
  func.func @transform_2(%arg0: i32) -> (i32, i32, i32) {
    %c0_i32 = arith.constant 0 : i32
    %c0_i32_0 = arith.constant 0 : i32
    %c0_i32_1 = arith.constant 0 : i32
    return %arg0, %c0_i32, %c0_i32_0 : i32, i32, i32
  }
  func.func @transform_3(%arg0: i32) -> (i32, i32, i32) {
    %c0_i32 = arith.constant 0 : i32
    %c0_i32_0 = arith.constant 0 : i32
    %c0_i32_1 = arith.constant 0 : i32
    return %arg0, %c0_i32, %c0_i32_0 : i32, i32, i32
  }
  func.func @transform_4(%arg0: i32) -> (i32, i32) {
    %c0_i32 = arith.constant 0 : i32
    %c0_i32_0 = arith.constant 0 : i32
    %c0_i32_1 = arith.constant 0 : i32
    return %c0_i32, %c0_i32_0 : i32, i32
  }
  func.func @transform_5(%arg0: i32) -> (i32, i32) {
    %c0_i32 = arith.constant 0 : i32
    %c0_i32_0 = arith.constant 0 : i32
    %c0_i32_1 = arith.constant 0 : i32
    return %c0_i32, %c0_i32_0 : i32, i32
  }
  func.func @transform_6(%arg0: i32) -> (i32, i32) {
    %c0_i32 = arith.constant 0 : i32
    %c0_i32_0 = arith.constant 0 : i32
    %c0_i32_1 = arith.constant 0 : i32
    return %c0_i32, %c0_i32_0 : i32, i32
  }
  func.func @transform_7(%arg0: i32) -> (i32, i32, i32) {
    %c0_i32 = arith.constant 0 : i32
    %c0_i32_0 = arith.constant 0 : i32
    %c0_i32_1 = arith.constant 0 : i32
    return %arg0, %c0_i32, %c0_i32_0 : i32, i32, i32
  }
}

</mosaic_0001>

<llo_original>
// kernel: decoder_block_forward.2
$region0: #{decoder_block_forward.2}
  #allocation0 [shape = 'u32[]', space=smem, size = 0x4, offset = 0x4, fixed_abs, tag = 'smem constant byte address 0x4 - core index']
  #allocation1 [shape = 'u32[72,128]{1,0:T(1,128)}', space=vmem, size = 0x9000, scoped, tag = 'internal scratch']
  %s0 = inlined_call_operand.vmem [shape: f32[2,16,128], index: 0, kind: input, shape index: {}]
  %s1 = inlined_call_operand.vmem [shape: bf16[128,64], index: 1, kind: input, shape index: {}]
  %s2 = inlined_call_operand.vmem [shape: bf16[64,128], index: 2, kind: input, shape index: {}]
  %s3 = inlined_call_operand.hbm [shape: bf16[64,64], index: 3, kind: input, shape index: {}]
  %s4 = inlined_call_operand.hbm [shape: bf16[64,64], index: 4, kind: input, shape index: {}]
  %s5 = inlined_call_operand.vmem [shape: bf16[128,64], index: 5, kind: input, shape index: {}]
  %s6 = inlined_call_operand.vmem [shape: bf16[128,16], index: 6, kind: input, shape index: {}]
  %s7 = inlined_call_operand.vmem [shape: bf16[128,16], index: 7, kind: input, shape index: {}]
  %s8 = inlined_call_operand.hbm [shape: bf16[64,128], index: 8, kind: input, shape index: {}]
  %s9 = inlined_call_operand.hbm [shape: f32[16,64], index: 9, kind: input, shape index: {}]
  %s10 = inlined_call_operand.hbm [shape: f32[16,64], index: 10, kind: input, shape index: {}]
  %s11 = inlined_call_operand.hbm [shape: f32[16,16], index: 11, kind: input, shape index: {}]
  %s12 = inlined_call_operand.hbm [shape: f32[16,16], index: 12, kind: input, shape index: {}]
  %s13 = inlined_call_operand.vmem [shape: f32[2,16,128], index: 13, kind: output, shape index: {0}]
  %s14 = inlined_call_operand.vmem [shape: bf16[2,16,128], index: 14, kind: output, shape index: {1}]
  %s15 = inlined_call_operand.vmem [shape: bf16[2,16,128], index: 15, kind: output, shape index: {2}]
  %s16 = inlined_call_operand.vmem [shape: bf16[2,16,128], index: 16, kind: output, shape index: {3}]
  %17 = xla_tuple %s13, %s14, %s15, %s16
  %s18 = sld [smem:[#allocation0]]
  $region137: #{decoder_block_forward.2} parent=0
    _
  %s20 = ssub.s32 1, %s18
  %s21 = scalar_select 0, %s20, %s18
  $region1: #{decoder_block_forward.2} parent=0
    #allocation2 [shape = 'u8[16384]{0}', space=vmem, size = 0x4000, scoped, tag = 'input window, operand 3, single buffered']
    #allocation3 [shape = 's32[2]{0}', space=sflag, size = 0x8, scoped, tag = 'scoped memory for decoder_block_forward.2']
    #allocation4 [shape = 'u8[16384]{0}', space=vmem, size = 0x4000, scoped, tag = 'input window, operand 4, single buffered']
    #allocation5 [shape = 's32[1]{0}', space=sflag, size = 0x4, scoped, tag = 'scoped memory for decoder_block_forward.2']
    #allocation6 [shape = 'u8[16384]{0}', space=vmem, size = 0x4000, scoped, tag = 'input window, operand 8, single buffered']
    #allocation7 [shape = 'u8[8192]{0}', space=vmem, size = 0x2000, scoped, tag = 'input window, operand 9, single buffered']
    #allocation8 [shape = 's32[1]{0}', space=sflag, size = 0x4, scoped, tag = 'scoped memory for decoder_block_forward.2']
    #allocation9 [shape = 'u8[8192]{0}', space=vmem, size = 0x2000, scoped, tag = 'input window, operand 10, single buffered']
    #allocation10 [shape = 'u8[8192]{0}', space=vmem, size = 0x2000, scoped, tag = 'input window, operand 11, single buffered']
    #allocation11 [shape = 's32[1]{0}', space=sflag, size = 0x4, scoped, tag = 'scoped memory for decoder_block_forward.2']
    #allocation12 [shape = 'u8[8192]{0}', space=vmem, size = 0x2000, scoped, tag = 'input window, operand 12, single buffered']
    %22 = vsyncpa [#allocation3], 0
    %23 = vsyncpa [#allocation5], 0
    %24 = vsyncpa [#allocation8], 0
    %25 = vsyncpa [#allocation11], 0
    loop: start=0, step=1, limit=4
    $region2: #{decoder_block_forward.2} parent=1 // loop_pre_header
      _
    $region3: #{decoder_block_forward.2} parent=1 // loop_header
      %s27 = sphi 0, %s31
      %p28 = scmp.ge.s32.totalorder %s27, 4
      %s37 = sphi 0, %s39
      %s40 = sphi 0, %s37
      %s41 = sphi 0, %s40
      %s57 = sphi 0, %s41
      %s61 = sphi 0, %s61
      %s63 = sphi 0, %s61
      %s64 = sphi 0, %s63
      %s78 = sphi 0, %s64
      %s82 = sphi 0, %s82
      %s84 = sphi 0, %s82
      %s85 = sphi 0, %s84
      %s99 = sphi 0, %s85
      %s103 = sphi 0, %s103
      %s105 = sphi 0, %s103
      %s106 = sphi 0, %s105
      %s120 = sphi 0, %s106
      %s124 = sphi 0, %s124
      %s126 = sphi 0, %s124
      %s127 = sphi 0, %s126
      %s141 = sphi 0, %s127
      %s145 = sphi 0, %s145
      %s147 = sphi 0, %s145
      %s148 = sphi 0, %s147
      %s162 = sphi 0, %s148
      %s166 = sphi 0, %s166
      %s168 = sphi 0, %s166
      %s169 = sphi 0, %s168
      %s183 = sphi 0, %s169
      %s187 = sphi 0, %s187
      %s189 = sphi 0, %s187
      %s190 = sphi 0, %s189
      %s204 = sphi 0, %s190
      %s208 = sphi 0, %s208
      %s210 = sphi 0, %s208
      %s211 = sphi 0, %s210
      %s225 = sphi 0, %s211
      %s229 = sphi 0, %s229
      %s231 = sphi 0, %s229
      %s232 = sphi 0, %s231
      %s246 = sphi 0, %s232
      %s250 = sphi 0, %s250
      %s252 = sphi 0, %s250
      %s253 = sphi 0, %s252
      %s267 = sphi 0, %s253
      %s271 = sphi 0, %s271
      %s273 = sphi 0, %s271
      %s274 = sphi 0, %s273
      %s288 = sphi 0, %s274
      %s292 = sphi 0, %s292
      %s294 = sphi 0, %s292
      %s295 = sphi 0, %s294
      %s309 = sphi 0, %s295
      %s315 = sphi 0, %s317
      %s318 = sphi 0, %s315
      %s319 = sphi 0, %s318
      %s335 = sphi 0, %s319
      %s341 = sphi 0, %s343
      %s344 = sphi 0, %s341
      %s345 = sphi 0, %s344
      %s361 = sphi 0, %s345
      %s367 = sphi 0, %s369
      %s370 = sphi 0, %s367
      %s371 = sphi 0, %s370
      %s387 = sphi 0, %s371
      %s393 = sphi 0, %s395
      %s396 = sphi 0, %s393
      %s397 = sphi 0, %s396
      %s413 = sphi 0, %s397
    $region4: #{decoder_block_forward.2} parent=1 // loop_header_branch
      %30 = sbr.rel (%p28) target = $region8
    $region5: #{decoder_block_forward.2} parent=1 // loop_body
      %s32 = ssub.s32 %s27, 1
      %s33 = ssub.s32 %s27, 2
      %s34 = sadd.s32 %s27, 1
      %s35 = ssub.s32 %s27, %s34
      %p36 = scmp.eq.s32.totalorder %s35, 0
      %s38 = sadd.s32 %s37, 1
      %s39 = scalar_select %p36, %s37, %s38
      %p42 = pneg %p36
      %p43 = scmp.eq.s32.totalorder %s27, 1
      %p44 = por %p42, %p43
      %p45 = scmp.ne.s32.totalorder %s37, %s40
      %p46 = scmp.eq.s32.totalorder %s27, 0
      %p47 = por %p45, %p46
      %p48 = scmp.ne.s32.totalorder %s37, %s40
      %p49 = scmp.eq.s32.totalorder %s32, 1
      %p50 = por %p48, %p49
      %p51 = scmp.ne.s32.totalorder %s40, %s41
      %p52 = scmp.eq.s32.totalorder %s32, 0
      %p53 = por %p51, %p52
      %p54 = scmp.ne.s32.totalorder %s40, %s41
      %p55 = scmp.eq.s32.totalorder %s33, 1
      %p56 = por %p54, %p55
      %p58 = scmp.ne.s32.totalorder %s41, %s57
      %p59 = scmp.eq.s32.totalorder %s33, 0
      %p60 = por %p58, %p59
      %s62 = sadd.s32 %s61, 1
      %p65 = scmp.eq.s32.totalorder %s27, 1
      %p66 = scmp.ne.s32.totalorder %s61, %s63
      %p67 = scmp.eq.s32.totalorder %s27, 0
      %p68 = por %p66, %p67
      %p69 = scmp.ne.s32.totalorder %s61, %s63
      %p70 = scmp.eq.s32.totalorder %s32, 1
      %p71 = por %p69, %p70
      %p72 = scmp.ne.s32.totalorder %s63, %s64
      %p73 = scmp.eq.s32.totalorder %s32, 0
      %p74 = por %p72, %p73
      %p75 = scmp.ne.s32.totalorder %s63, %s64
      %p76 = scmp.eq.s32.totalorder %s33, 1
      %p77 = por %p75, %p76
      %p79 = scmp.ne.s32.totalorder %s64, %s78
      %p80 = scmp.eq.s32.totalorder %s33, 0
      %p81 = por %p79, %p80
      %s83 = sadd.s32 %s82, 1
      %p86 = scmp.eq.s32.totalorder %s27, 1
      %p87 = scmp.ne.s32.totalorder %s82, %s84
      %p88 = scmp.eq.s32.totalorder %s27, 0
      %p89 = por %p87, %p88
      %p90 = scmp.ne.s32.totalorder %s82, %s84
      %p91 = scmp.eq.s32.totalorder %s32, 1
      %p92 = por %p90, %p91
      %p93 = scmp.ne.s32.totalorder %s84, %s85
      %p94 = scmp.eq.s32.totalorder %s32, 0
      %p95 = por %p93, %p94
      %p96 = scmp.ne.s32.totalorder %s84, %s85
      %p97 = scmp.eq.s32.totalorder %s33, 1
      %p98 = por %p96, %p97
      %p100 = scmp.ne.s32.totalorder %s85, %s99
      %p101 = scmp.eq.s32.totalorder %s33, 0
      %p102 = por %p100, %p101
      %s104 = sadd.s32 %s103, 1
      %p107 = scmp.eq.s32.totalorder %s27, 1
      %p108 = scmp.ne.s32.totalorder %s103, %s105
      %p109 = scmp.eq.s32.totalorder %s27, 0
      %p110 = por %p108, %p109
      %p111 = scmp.ne.s32.totalorder %s103, %s105
      %p112 = scmp.eq.s32.totalorder %s32, 1
      %p113 = por %p111, %p112
      %p114 = scmp.ne.s32.totalorder %s105, %s106
      %p115 = scmp.eq.s32.totalorder %s32, 0
      %p116 = por %p114, %p115
      %p117 = scmp.ne.s32.totalorder %s105, %s106
      %p118 = scmp.eq.s32.totalorder %s33, 1
      %p119 = por %p117, %p118
      %p121 = scmp.ne.s32.totalorder %s106, %s120
      %p122 = scmp.eq.s32.totalorder %s33, 0
      %p123 = por %p121, %p122
      %s125 = sadd.s32 %s124, 1
      %p128 = scmp.eq.s32.totalorder %s27, 1
      %p129 = scmp.ne.s32.totalorder %s124, %s126
      %p130 = scmp.eq.s32.totalorder %s27, 0
      %p131 = por %p129, %p130
      %p132 = scmp.ne.s32.totalorder %s124, %s126
      %p133 = scmp.eq.s32.totalorder %s32, 1
      %p134 = por %p132, %p133
      %p135 = scmp.ne.s32.totalorder %s126, %s127
      %p136 = scmp.eq.s32.totalorder %s32, 0
      %p137 = por %p135, %p136
      %p138 = scmp.ne.s32.totalorder %s126, %s127
      %p139 = scmp.eq.s32.totalorder %s33, 1
      %p140 = por %p138, %p139
      %p142 = scmp.ne.s32.totalorder %s127, %s141
      %p143 = scmp.eq.s32.totalorder %s33, 0
      %p144 = por %p142, %p143
      %s146 = sadd.s32 %s145, 1
      %p149 = scmp.eq.s32.totalorder %s27, 1
      %p150 = scmp.ne.s32.totalorder %s145, %s147
      %p151 = scmp.eq.s32.totalorder %s27, 0
      %p152 = por %p150, %p151
      %p153 = scmp.ne.s32.totalorder %s145, %s147
      %p154 = scmp.eq.s32.totalorder %s32, 1
      %p155 = por %p153, %p154
      %p156 = scmp.ne.s32.totalorder %s147, %s148
      %p157 = scmp.eq.s32.totalorder %s32, 0
      %p158 = por %p156, %p157
      %p159 = scmp.ne.s32.totalorder %s147, %s148
      %p160 = scmp.eq.s32.totalorder %s33, 1
      %p161 = por %p159, %p160
      %p163 = scmp.ne.s32.totalorder %s148, %s162
      %p164 = scmp.eq.s32.totalorder %s33, 0
      %p165 = por %p163, %p164
      %s167 = sadd.s32 %s166, 1
      %p170 = scmp.eq.s32.totalorder %s27, 1
      %p171 = scmp.ne.s32.totalorder %s166, %s168
      %p172 = scmp.eq.s32.totalorder %s27, 0
      %p173 = por %p171, %p172
      %p174 = scmp.ne.s32.totalorder %s166, %s168
      %p175 = scmp.eq.s32.totalorder %s32, 1
      %p176 = por %p174, %p175
      %p177 = scmp.ne.s32.totalorder %s168, %s169
      %p178 = scmp.eq.s32.totalorder %s32, 0
      %p179 = por %p177, %p178
      %p180 = scmp.ne.s32.totalorder %s168, %s169
      %p181 = scmp.eq.s32.totalorder %s33, 1
      %p182 = por %p180, %p181
      %p184 = scmp.ne.s32.totalorder %s169, %s183
      %p185 = scmp.eq.s32.totalorder %s33, 0
      %p186 = por %p184, %p185
      %s188 = sadd.s32 %s187, 1
      %p191 = scmp.eq.s32.totalorder %s27, 1
      %p192 = scmp.ne.s32.totalorder %s187, %s189
      %p193 = scmp.eq.s32.totalorder %s27, 0
      %p194 = por %p192, %p193
      %p195 = scmp.ne.s32.totalorder %s187, %s189
      %p196 = scmp.eq.s32.totalorder %s32, 1
      %p197 = por %p195, %p196
      %p198 = scmp.ne.s32.totalorder %s189, %s190
      %p199 = scmp.eq.s32.totalorder %s32, 0
      %p200 = por %p198, %p199
      %p201 = scmp.ne.s32.totalorder %s189, %s190
      %p202 = scmp.eq.s32.totalorder %s33, 1
      %p203 = por %p201, %p202
      %p205 = scmp.ne.s32.totalorder %s190, %s204
      %p206 = scmp.eq.s32.totalorder %s33, 0
      %p207 = por %p205, %p206
      %s209 = sadd.s32 %s208, 1
      %p212 = scmp.eq.s32.totalorder %s27, 1
      %p213 = scmp.ne.s32.totalorder %s208, %s210
      %p214 = scmp.eq.s32.totalorder %s27, 0
      %p215 = por %p213, %p214
      %p216 = scmp.ne.s32.totalorder %s208, %s210
      %p217 = scmp.eq.s32.totalorder %s32, 1
      %p218 = por %p216, %p217
      %p219 = scmp.ne.s32.totalorder %s210, %s211
      %p220 = scmp.eq.s32.totalorder %s32, 0
      %p221 = por %p219, %p220
      %p222 = scmp.ne.s32.totalorder %s210, %s211
      %p223 = scmp.eq.s32.totalorder %s33, 1
      %p224 = por %p222, %p223
      %p226 = scmp.ne.s32.totalorder %s211, %s225
      %p227 = scmp.eq.s32.totalorder %s33, 0
      %p228 = por %p226, %p227
      %s230 = sadd.s32 %s229, 1
      %p233 = scmp.eq.s32.totalorder %s27, 1
      %p234 = scmp.ne.s32.totalorder %s229, %s231
      %p235 = scmp.eq.s32.totalorder %s27, 0
      %p236 = por %p234, %p235
      %p237 = scmp.ne.s32.totalorder %s229, %s231
      %p238 = scmp.eq.s32.totalorder %s32, 1
      %p239 = por %p237, %p238
      %p240 = scmp.ne.s32.totalorder %s231, %s232
      %p241 = scmp.eq.s32.totalorder %s32, 0
      %p242 = por %p240, %p241
      %p243 = scmp.ne.s32.totalorder %s231, %s232
      %p244 = scmp.eq.s32.totalorder %s33, 1
      %p245 = por %p243, %p244
      %p247 = scmp.ne.s32.totalorder %s232, %s246
      %p248 = scmp.eq.s32.totalorder %s33, 0
      %p249 = por %p247, %p248
      %s251 = sadd.s32 %s250, 1
      %p254 = scmp.eq.s32.totalorder %s27, 1
      %p255 = scmp.ne.s32.totalorder %s250, %s252
      %p256 = scmp.eq.s32.totalorder %s27, 0
      %p257 = por %p255, %p256
      %p258 = scmp.ne.s32.totalorder %s250, %s252
      %p259 = scmp.eq.s32.totalorder %s32, 1
      %p260 = por %p258, %p259
      %p261 = scmp.ne.s32.totalorder %s252, %s253
      %p262 = scmp.eq.s32.totalorder %s32, 0
      %p263 = por %p261, %p262
      %p264 = scmp.ne.s32.totalorder %s252, %s253
      %p265 = scmp.eq.s32.totalorder %s33, 1
      %p266 = por %p264, %p265
      %p268 = scmp.ne.s32.totalorder %s253, %s267
      %p269 = scmp.eq.s32.totalorder %s33, 0
      %p270 = por %p268, %p269
      %s272 = sadd.s32 %s271, 1
      %p275 = scmp.eq.s32.totalorder %s27, 1
      %p276 = scmp.ne.s32.totalorder %s271, %s273
      %p277 = scmp.eq.s32.totalorder %s27, 0
      %p278 = por %p276, %p277
      %p279 = scmp.ne.s32.totalorder %s271, %s273
      %p280 = scmp.eq.s32.totalorder %s32, 1
      %p281 = por %p279, %p280
      %p282 = scmp.ne.s32.totalorder %s273, %s274
      %p283 = scmp.eq.s32.totalorder %s32, 0
      %p284 = por %p282, %p283
      %p285 = scmp.ne.s32.totalorder %s273, %s274
      %p286 = scmp.eq.s32.totalorder %s33, 1
      %p287 = por %p285, %p286
      %p289 = scmp.ne.s32.totalorder %s274, %s288
      %p290 = scmp.eq.s32.totalorder %s33, 0
      %p291 = por %p289, %p290
      %s293 = sadd.s32 %s292, 1
      %p296 = scmp.eq.s32.totalorder %s27, 1
      %p297 = scmp.ne.s32.totalorder %s292, %s294
      %p298 = scmp.eq.s32.totalorder %s27, 0
      %p299 = por %p297, %p298
      %p300 = scmp.ne.s32.totalorder %s292, %s294
      %p301 = scmp.eq.s32.totalorder %s32, 1
      %p302 = por %p300, %p301
      %p303 = scmp.ne.s32.totalorder %s294, %s295
      %p304 = scmp.eq.s32.totalorder %s32, 0
      %p305 = por %p303, %p304
      %p306 = scmp.ne.s32.totalorder %s294, %s295
      %p307 = scmp.eq.s32.totalorder %s33, 1
      %p308 = por %p306, %p307
      %p310 = scmp.ne.s32.totalorder %s295, %s309
      %p311 = scmp.eq.s32.totalorder %s33, 0
      %p312 = por %p310, %p311
      %s313 = ssub.s32 %s27, %s34
      %p314 = scmp.eq.s32.totalorder %s313, 0
      %s316 = sadd.s32 %s315, 1
      %s317 = scalar_select %p314, %s315, %s316
      %p320 = pneg %p314
      %p321 = scmp.eq.s32.totalorder %s27, 1
      %p322 = por %p320, %p321
      %p323 = scmp.ne.s32.totalorder %s315, %s318
      %p324 = scmp.eq.s32.totalorder %s27, 0
      %p325 = por %p323, %p324
      %p326 = scmp.ne.s32.totalorder %s315, %s318
      %p327 = scmp.eq.s32.totalorder %s32, 1
      %p328 = por %p326, %p327
      %p329 = scmp.ne.s32.totalorder %s318, %s319
      %p330 = scmp.eq.s32.totalorder %s32, 0
      %p331 = por %p329, %p330
      %p332 = scmp.ne.s32.totalorder %s318, %s319
      %p333 = scmp.eq.s32.totalorder %s33, 1
      %p334 = por %p332, %p333
      %p336 = scmp.ne.s32.totalorder %s319, %s335
      %p337 = scmp.eq.s32.totalorder %s33, 0
      %p338 = por %p336, %p337
      %s339 = ssub.s32 %s27, %s34
      %p340 = scmp.eq.s32.totalorder %s339, 0
      %s342 = sadd.s32 %s341, 1
      %s343 = scalar_select %p340, %s341, %s342
      %p346 = pneg %p340
      %p347 = scmp.eq.s32.totalorder %s27, 1
      %p348 = por %p346, %p347
      %p349 = scmp.ne.s32.totalorder %s341, %s344
      %p350 = scmp.eq.s32.totalorder %s27, 0
      %p351 = por %p349, %p350
      %p352 = scmp.ne.s32.totalorder %s341, %s344
      %p353 = scmp.eq.s32.totalorder %s32, 1
      %p354 = por %p352, %p353
      %p355 = scmp.ne.s32.totalorder %s344, %s345
      %p356 = scmp.eq.s32.totalorder %s32, 0
      %p357 = por %p355, %p356
      %p358 = scmp.ne.s32.totalorder %s344, %s345
      %p359 = scmp.eq.s32.totalorder %s33, 1
      %p360 = por %p358, %p359
      %p362 = scmp.ne.s32.totalorder %s345, %s361
      %p363 = scmp.eq.s32.totalorder %s33, 0
      %p364 = por %p362, %p363
      %s365 = ssub.s32 %s27, %s34
      %p366 = scmp.eq.s32.totalorder %s365, 0
      %s368 = sadd.s32 %s367, 1
      %s369 = scalar_select %p366, %s367, %s368
      %p372 = pneg %p366
      %p373 = scmp.eq.s32.totalorder %s27, 1
      %p374 = por %p372, %p373
      %p375 = scmp.ne.s32.totalorder %s367, %s370
      %p376 = scmp.eq.s32.totalorder %s27, 0
      %p377 = por %p375, %p376
      %p378 = scmp.ne.s32.totalorder %s367, %s370
      %p379 = scmp.eq.s32.totalorder %s32, 1
      %p380 = por %p378, %p379
      %p381 = scmp.ne.s32.totalorder %s370, %s371
      %p382 = scmp.eq.s32.totalorder %s32, 0
      %p383 = por %p381, %p382
      %p384 = scmp.ne.s32.totalorder %s370, %s371
      %p385 = scmp.eq.s32.totalorder %s33, 1
      %p386 = por %p384, %p385
      %p388 = scmp.ne.s32.totalorder %s371, %s387
      %p389 = scmp.eq.s32.totalorder %s33, 0
      %p390 = por %p388, %p389
      %s391 = ssub.s32 %s27, %s34
      %p392 = scmp.eq.s32.totalorder %s391, 0
      %s394 = sadd.s32 %s393, 1
      %s395 = scalar_select %p392, %s393, %s394
      %p398 = pneg %p392
      %p399 = scmp.eq.s32.totalorder %s27, 1
      %p400 = por %p398, %p399
      %p401 = scmp.ne.s32.totalorder %s393, %s396
      %p402 = scmp.eq.s32.totalorder %s27, 0
      %p403 = por %p401, %p402
      %p404 = scmp.ne.s32.totalorder %s393, %s396
      %p405 = scmp.eq.s32.totalorder %s32, 1
      %p406 = por %p404, %p405
      %p407 = scmp.ne.s32.totalorder %s396, %s397
      %p408 = scmp.eq.s32.totalorder %s32, 0
      %p409 = por %p407, %p408
      %p410 = scmp.ne.s32.totalorder %s396, %s397
      %p411 = scmp.eq.s32.totalorder %s33, 1
      %p412 = por %p410, %p411
      %p414 = scmp.ne.s32.totalorder %s397, %s413
      %p415 = scmp.eq.s32.totalorder %s33, 0
      %p416 = por %p414, %p415
      %p417 = scmp.le.s32.totalorder 1, %s27
      %p418 = scmp.lt.s32.totalorder %s27, 3
      %p419 = pnand %p417, %p418
      %p420 = pneg %p419
      // Predicated region
      $region9: #{decoder_block_forward.2} parent=5 // pred_check
        _
      $region10: #{decoder_block_forward.2} parent=5 // pred_check_branch
        %422 = sbr.rel (%p419) target = $region12
      $region11: #{decoder_block_forward.2} parent=5 // pred_region
        %s423 = ssub.s32 %s27, 1
        // Predicated region
        $region13: #{decoder_block_forward.2} parent=11 // pred_check
          %p424 = pneg %p74
        $region14: #{decoder_block_forward.2} parent=11 // pred_check_branch
          %426 = sbr.rel (%p424) target = $region16
        $region15: #{decoder_block_forward.2} parent=11 // pred_region
          _
        $region16: #{decoder_block_forward.2} parent=11 // pred_fallthru
          _
        // Predicated region
        $region17: #{decoder_block_forward.2} parent=11 // pred_check
          %p427 = pneg %p95
        $region18: #{decoder_block_forward.2} parent=11 // pred_check_branch
          %429 = sbr.rel (%p427) target = $region20
        $region19: #{decoder_block_forward.2} parent=11 // pred_region
          _
        $region20: #{decoder_block_forward.2} parent=11 // pred_fallthru
          _
        // Predicated region
        $region21: #{decoder_block_forward.2} parent=11 // pred_check
          %p430 = pneg %p116
        $region22: #{decoder_block_forward.2} parent=11 // pred_check_branch
          %432 = sbr.rel (%p430) target = $region24
        $region23: #{decoder_block_forward.2} parent=11 // pred_region
          %434 = vsyncadd [#allocation3], 0
          %s435 = sshll.u32 %s3, 4
          %s436 = int_to_ptr.hbm [resolvable:$true] %s435
          %s437 = sshll.u32 [#allocation2], 4
          %s438 = int_to_ptr.vmem [resolvable:$true] %s437
          %443 = dma.hbm_to_vmem [thread:$0]  %s436, 512, %s438, [#allocation3], 64, 64, 4
        $region24: #{decoder_block_forward.2} parent=11 // pred_fallthru
          _
        // Predicated region
        $region25: #{decoder_block_forward.2} parent=11 // pred_check
          %p444 = pneg %p137
        $region26: #{decoder_block_forward.2} parent=11 // pred_check_branch
          %446 = sbr.rel (%p444) target = $region28
        $region27: #{decoder_block_forward.2} parent=11 // pred_region
          %448 = vsyncadd [#allocation5], 0
          %s449 = sshll.u32 %s4, 4
          %s450 = int_to_ptr.hbm [resolvable:$true] %s449
          %s451 = sshll.u32 [#allocation4], 4
          %s452 = int_to_ptr.vmem [resolvable:$true] %s451
          %457 = dma.hbm_to_vmem [thread:$0]  %s450, 512, %s452, [#allocation5], 64, 64, 4
        $region28: #{decoder_block_forward.2} parent=11 // pred_fallthru
          _
        // Predicated region
        $region29: #{decoder_block_forward.2} parent=11 // pred_check
          %p458 = pneg %p158
        $region30: #{decoder_block_forward.2} parent=11 // pred_check_branch
          %460 = sbr.rel (%p458) target = $region32
        $region31: #{decoder_block_forward.2} parent=11 // pred_region
          _
        $region32: #{decoder_block_forward.2} parent=11 // pred_fallthru
          _
        // Predicated region
        $region33: #{decoder_block_forward.2} parent=11 // pred_check
          %p461 = pneg %p179
        $region34: #{decoder_block_forward.2} parent=11 // pred_check_branch
          %463 = sbr.rel (%p461) target = $region36
        $region35: #{decoder_block_forward.2} parent=11 // pred_region
          _
        $region36: #{decoder_block_forward.2} parent=11 // pred_fallthru
          _
        // Predicated region
        $region37: #{decoder_block_forward.2} parent=11 // pred_check
          %p464 = pneg %p200
        $region38: #{decoder_block_forward.2} parent=11 // pred_check_branch
          %466 = sbr.rel (%p464) target = $region40
        $region39: #{decoder_block_forward.2} parent=11 // pred_region
          _
        $region40: #{decoder_block_forward.2} parent=11 // pred_fallthru
          _
        // Predicated region
        $region41: #{decoder_block_forward.2} parent=11 // pred_check
          %p467 = pneg %p221
        $region42: #{decoder_block_forward.2} parent=11 // pred_check_branch
          %469 = sbr.rel (%p467) target = $region44
        $region43: #{decoder_block_forward.2} parent=11 // pred_region
          %471 = vsyncadd [#allocation5], 0
          %s472 = sshll.u32 %s8, 4
          %s473 = int_to_ptr.hbm [resolvable:$true] %s472
          %s474 = sshll.u32 [#allocation6], 4
          %s475 = int_to_ptr.vmem [resolvable:$true] %s474
          %480 = dma.hbm_to_vmem [thread:$0]  %s473, 512, %s475, [#allocation5], 64, 64, 4
        $region44: #{decoder_block_forward.2} parent=11 // pred_fallthru
          _
        // Predicated region
        $region45: #{decoder_block_forward.2} parent=11 // pred_check
          %p481 = pneg %p242
        $region46: #{decoder_block_forward.2} parent=11 // pred_check_branch
          %483 = sbr.rel (%p481) target = $region48
        $region47: #{decoder_block_forward.2} parent=11 // pred_region
          %485 = vsyncadd [#allocation8], 0
          %s486 = sshll.u32 %s9, 4
          %s487 = int_to_ptr.hbm [resolvable:$true] %s486
          %s488 = sshll.u32 [#allocation7], 4
          %s489 = int_to_ptr.vmem [resolvable:$true] %s488
          %494 = dma.hbm_to_vmem [thread:$0]  %s487, 256, %s489, [#allocation8], 128, 128, 8
        $region48: #{decoder_block_forward.2} parent=11 // pred_fallthru
          _
        // Predicated region
        $region49: #{decoder_block_forward.2} parent=11 // pred_check
          %p495 = pneg %p263
        $region50: #{decoder_block_forward.2} parent=11 // pred_check_branch
          %497 = sbr.rel (%p495) target = $region52
        $region51: #{decoder_block_forward.2} parent=11 // pred_region
          %499 = vsyncadd [#allocation8], 0
          %s500 = sshll.u32 %s10, 4
          %s501 = int_to_ptr.hbm [resolvable:$true] %s500
          %s502 = sshll.u32 [#allocation9], 4
          %s503 = int_to_ptr.vmem [resolvable:$true] %s502
          %508 = dma.hbm_to_vmem [thread:$0]  %s501, 256, %s503, [#allocation8], 128, 128, 8
        $region52: #{decoder_block_forward.2} parent=11 // pred_fallthru
          _
        // Predicated region
        $region53: #{decoder_block_forward.2} parent=11 // pred_check
          %p509 = pneg %p284
        $region54: #{decoder_block_forward.2} parent=11 // pred_check_branch
          %511 = sbr.rel (%p509) target = $region56
        $region55: #{decoder_block_forward.2} parent=11 // pred_region
          %513 = vsyncadd [#allocation11], 0
          %s514 = sshll.u32 %s11, 4
          %s515 = int_to_ptr.hbm [resolvable:$true] %s514
          %s516 = sshll.u32 [#allocation10], 4
          %s517 = int_to_ptr.vmem [resolvable:$true] %s516
          %522 = dma.hbm_to_vmem [thread:$0]  %s515, 256, %s517, [#allocation11], 128, 128, 8
        $region56: #{decoder_block_forward.2} parent=11 // pred_fallthru
          _
        // Predicated region
        $region57: #{decoder_block_forward.2} parent=11 // pred_check
          %p523 = pneg %p305
        $region58: #{decoder_block_forward.2} parent=11 // pred_check_branch
          %525 = sbr.rel (%p523) target = $region60
        $region59: #{decoder_block_forward.2} parent=11 // pred_region
          %527 = vsyncadd [#allocation11], 0
          %s528 = sshll.u32 %s12, 4
          %s529 = int_to_ptr.hbm [resolvable:$true] %s528
          %s530 = sshll.u32 [#allocation12], 4
          %s531 = int_to_ptr.vmem [resolvable:$true] %s530
          %536 = dma.hbm_to_vmem [thread:$0]  %s529, 256, %s531, [#allocation11], 128, 128, 8
        $region60: #{decoder_block_forward.2} parent=11 // pred_fallthru
          _
      $region12: #{decoder_block_forward.2} parent=5 // pred_fallthru
        _
      %p537 = scmp.lt.s32.totalorder %s27, 2
      // Predicated region
      $region61: #{decoder_block_forward.2} parent=5 // pred_check
        %p538 = pneg %p537
      $region62: #{decoder_block_forward.2} parent=5 // pred_check_branch
        %540 = sbr.rel (%p538) target = $region64
      $region63: #{decoder_block_forward.2} parent=5 // pred_region
        // Predicated region
        $region65: #{decoder_block_forward.2} parent=63 // pred_check
          %p541 = pneg %p47
        $region66: #{decoder_block_forward.2} parent=63 // pred_check_branch
          %543 = sbr.rel (%p541) target = $region68
        $region67: #{decoder_block_forward.2} parent=63 // pred_region
          %p544 = scmp.lt.s32.totalorder %s27, 1
          %s545 = scalar_select %p544, %s27, 1
          %s546 = smul.addr %s545, 2
          %s547 = smul.addr %s546, 8
          %s548 = scalar_lea.vmem %s0, %s547
        $region68: #{decoder_block_forward.2} parent=63 // pred_fallthru
          _
      $region64: #{decoder_block_forward.2} parent=5 // pred_fallthru
        _
      %p549 = scmp.le.s32.totalorder 1, %s27
      %p550 = scmp.lt.s32.totalorder %s27, 3
      %p551 = pnand %p549, %p550
      %p552 = pneg %p551
      // Predicated region
      $region69: #{decoder_block_forward.2} parent=5 // pred_check
        _
      $region70: #{decoder_block_forward.2} parent=5 // pred_check_branch
        %554 = sbr.rel (%p551) target = $region72
      $region71: #{decoder_block_forward.2} parent=5 // pred_region
        %s555 = ssub.s32 %s27, 1
        // Predicated region
        $region73: #{decoder_block_forward.2} parent=71 // pred_check
          %p556 = pneg %p116
        $region74: #{decoder_block_forward.2} parent=71 // pred_check_branch
          %558 = sbr.rel (%p556) target = $region76
        $region75: #{decoder_block_forward.2} parent=71 // pred_region
          %560 = dma.done [#allocation3], 512
        $region76: #{decoder_block_forward.2} parent=71 // pred_fallthru
          _
        // Predicated region
        $region77: #{decoder_block_forward.2} parent=71 // pred_check
          %p561 = pneg %p137
        $region78: #{decoder_block_forward.2} parent=71 // pred_check_branch
          %563 = sbr.rel (%p561) target = $region80
        $region79: #{decoder_block_forward.2} parent=71 // pred_region
          %565 = dma.done [#allocation5], 512
        $region80: #{decoder_block_forward.2} parent=71 // pred_fallthru
          _
        // Predicated region
        $region81: #{decoder_block_forward.2} parent=71 // pred_check
          %p566 = pneg %p221
        $region82: #{decoder_block_forward.2} parent=71 // pred_check_branch
          %568 = sbr.rel (%p566) target = $region84
        $region83: #{decoder_block_forward.2} parent=71 // pred_region
          %570 = dma.done [#allocation5], 512
        $region84: #{decoder_block_forward.2} parent=71 // pred_fallthru
          _
        // Predicated region
        $region85: #{decoder_block_forward.2} parent=71 // pred_check
          %p571 = pneg %p242
        $region86: #{decoder_block_forward.2} parent=71 // pred_check_branch
          %573 = sbr.rel (%p571) target = $region88
        $region87: #{decoder_block_forward.2} parent=71 // pred_region
          %575 = dma.done [#allocation8], 256
        $region88: #{decoder_block_forward.2} parent=71 // pred_fallthru
          _
        // Predicated region
        $region89: #{decoder_block_forward.2} parent=71 // pred_check
          %p576 = pneg %p263
        $region90: #{decoder_block_forward.2} parent=71 // pred_check_branch
          %578 = sbr.rel (%p576) target = $region92
        $region91: #{decoder_block_forward.2} parent=71 // pred_region
          %580 = dma.done [#allocation8], 256
        $region92: #{decoder_block_forward.2} parent=71 // pred_fallthru
          _
        // Predicated region
        $region93: #{decoder_block_forward.2} parent=71 // pred_check
          %p581 = pneg %p284
        $region94: #{decoder_block_forward.2} parent=71 // pred_check_branch
          %583 = sbr.rel (%p581) target = $region96
        $region95: #{decoder_block_forward.2} parent=71 // pred_region
          %585 = dma.done [#allocation11], 256
        $region96: #{decoder_block_forward.2} parent=71 // pred_fallthru
          _
        // Predicated region
        $region97: #{decoder_block_forward.2} parent=71 // pred_check
          %p586 = pneg %p305
        $region98: #{decoder_block_forward.2} parent=71 // pred_check_branch
          %588 = sbr.rel (%p586) target = $region100
        $region99: #{decoder_block_forward.2} parent=71 // pred_region
          %590 = dma.done [#allocation11], 256
        $region100: #{decoder_block_forward.2} parent=71 // pred_fallthru
          _
        %p591 = scmp.lt.s32.totalorder %s32, 1
        %s592 = scalar_select %p591, %s32, 1
        %s593 = smul.addr %s592, 2
        %s594 = smul.addr %s593, 8
        %s595 = scalar_lea.vmem %s0, %s594
        %p596 = pneg %p53
        %p597 = pneg %p50
        %p598 = pneg %p74
        %p599 = pneg %p71
        %p600 = pneg %p95
        %p601 = pneg %p92
        %p602 = pneg %p116
        %p603 = pneg %p113
        %p604 = pneg %p137
        %p605 = pneg %p134
        %p606 = pneg %p158
        %p607 = pneg %p155
        %p608 = pneg %p179
        %p609 = pneg %p176
        %p610 = pneg %p200
        %p611 = pneg %p197
        %p612 = pneg %p221
        %p613 = pneg %p218
        %p614 = pneg %p242
        %p615 = pneg %p239
        %p616 = pneg %p263
        %p617 = pneg %p260
        %p618 = pneg %p284
        %p619 = pneg %p281
        %p620 = pneg %p305
        %p621 = pneg %p302
        %p622 = pneg %p331
        %p623 = pneg %p328
        %p624 = scmp.lt.s32.totalorder %s32, 1
        %s625 = scalar_select %p624, %s32, 1
        %s626 = smul.addr %s625, 2
        %s627 = smul.addr %s626, 8
        %s628 = scalar_lea.vmem %s13, %s627
        %p629 = pneg %p357
        %p630 = pneg %p354
        %p631 = scmp.lt.s32.totalorder %s32, 1
        %s632 = scalar_select %p631, %s32, 1
        %s633 = smul.addr %s632, 2
        %s634 = smul.addr %s633, 4
        %s635 = scalar_lea.vmem %s14, %s634
        %p636 = pneg %p383
        %p637 = pneg %p380
        %p638 = scmp.lt.s32.totalorder %s32, 1
        %s639 = scalar_select %p638, %s32, 1
        %s640 = smul.addr %s639, 2
        %s641 = smul.addr %s640, 4
        %s642 = scalar_lea.vmem %s15, %s641
        %p643 = pneg %p409
        %p644 = pneg %p406
        %p645 = scmp.lt.s32.totalorder %s32, 1
        %s646 = scalar_select %p645, %s32, 1
        %s647 = smul.addr %s646, 2
        %s648 = smul.addr %s647, 4
        %s649 = scalar_lea.vmem %s16, %s648
        %p650 = scmp.lt.s32.totalorder %s32, 1
        %s651 = scalar_select %p650, %s32, 1
        %s652 = smul.addr %s651, 2
        %s653 = smul.addr %s652, 8
        %s654 = scalar_lea.vmem %s0, %s653
        %p655 = scmp.lt.s32.totalorder %s32, 1
        %s656 = scalar_select %p655, %s32, 1
        %s657 = smul.addr %s656, 2
        %s658 = smul.addr %s657, 8
        %s659 = scalar_lea.vmem %s13, %s658
        %p660 = scmp.lt.s32.totalorder %s32, 1
        %s661 = scalar_select %p660, %s32, 1
        %s662 = smul.addr %s661, 2
        %s663 = smul.addr %s662, 4
        %s664 = scalar_lea.vmem %s14, %s663
        %p665 = scmp.lt.s32.totalorder %s32, 1
        %s666 = scalar_select %p665, %s32, 1
        %s667 = smul.addr %s666, 2
        %s668 = smul.addr %s667, 4
        %s669 = scalar_lea.vmem %s15, %s668
        %p670 = scmp.lt.s32.totalorder %s32, 1
        %s671 = scalar_select %p670, %s32, 1
        %s672 = smul.addr %s671, 2
        %s673 = smul.addr %s672, 4
        %s674 = scalar_lea.vmem %s16, %s673
        %v676 = vld [vmem:[%s654] sm:$0xff]
        %v677 = vld [vmem:[%s654 + $0x8] sm:$0xff]
        %v678 = vmul.f32 %v676, %v676
        %v679 = vmul.f32 %v677, %v677
        %680 = vadd.xlane.f32.xlu0 %v678
        %v681 = vpop.xlane.xlu0 %680
        %682 = vadd.xlane.f32.xlu0 %v679
        %v683 = vpop.xlane.xlu0 %682
        %v684 = vrcp.pop 128.0
        %v685 = vmul.f32 128.0, %v684
        %v686 = vsub.f32 1.0, %v685
        %v687 = vmul.f32 %v684, %v686
        %v688 = vadd.f32 %v684, %v687
        %vm689 = vweird.f32 %v684
        %v690 = vsel %vm689, %v684, %v688
        %v691 = vmul.f32 %v681, %v690
        %v692 = vmul.f32 %v683, %v690
        %v693 = vadd.f32 %v691, 1.1920929e-07
        %v694 = vadd.f32 %v692, 1.1920929e-07
        %v695 = vrsqrt.pop %v693
        %v696 = vmul.f32 %v695, %v693
        %v697 = vmul.f32 %v696, %v695
        %v698 = vmul.f32 0.5, %v697
        %v699 = vsub.f32 1.5, %v698
        %v700 = vmul.f32 %v695, %v699
        %vm701 = vweird.f32 %v693
        %vm702 = vweird.f32 %v695
        %vm703 = vmor %vm701, %vm702
        %v704 = vsel %vm703, %v695, %v700
        %v705 = vrsqrt.pop %v694
        %v706 = vmul.f32 %v705, %v694
        %v707 = vmul.f32 %v706, %v705
        %v708 = vmul.f32 0.5, %v707
        %v709 = vsub.f32 1.5, %v708
        %v710 = vmul.f32 %v705, %v709
        %vm711 = vweird.f32 %v694
        %vm712 = vweird.f32 %v705
        %vm713 = vmor %vm711, %vm712
        %v714 = vsel %vm713, %v705, %v710
        %v715 = vmul.f32 %v676, %v704
        %v716 = vmul.f32 %v677, %v714
        %717 = vst [vmem:[%s659] sm:$0xff] %v715
        %718 = vst [vmem:[%s659 + $0x8] sm:$0xff] %v716
        %v719 = vpack.c.bf16 %v716, %v715
        %v720 = vld [vmem:[%s1] sm:$0xf]
        %v721 = vld [vmem:[%s1 + $0x4] sm:$0xf]
        %v722 = vld [vmem:[%s1 + $0x8] sm:$0xf]
        %v723 = vld [vmem:[%s1 + $0xc] sm:$0xf]
        %v724 = vld [vmem:[%s1 + $0x10] sm:$0xf]
        %v725 = vld [vmem:[%s1 + $0x14] sm:$0xf]
        %v726 = vld [vmem:[%s1 + $0x18] sm:$0xf]
        %v727 = vld [vmem:[%s1 + $0x1c] sm:$0xf]
        %v728 = vld [vmem:[%s1 + $0x20] sm:$0xf]
        %v729 = vld [vmem:[%s1 + $0x24] sm:$0xf]
        %v730 = vld [vmem:[%s1 + $0x28] sm:$0xf]
        %v731 = vld [vmem:[%s1 + $0x2c] sm:$0xf]
        %v732 = vld [vmem:[%s1 + $0x30] sm:$0xf]
        %v733 = vld [vmem:[%s1 + $0x34] sm:$0xf]
        %v734 = vld [vmem:[%s1 + $0x38] sm:$0xf]
        %v735 = vld [vmem:[%s1 + $0x3c] sm:$0xf]
        %v752 = vunpack.c.l.b16 %v720
        %v753 = vunpack.c.l.b16 %v721
        %v754 = vunpack.c.l.b16 %v722
        %v755 = vunpack.c.l.b16 %v723
        %v756 = vunpack.c.l.b16 %v724
        %v757 = vunpack.c.l.b16 %v725
        %v758 = vunpack.c.l.b16 %v726
        %v759 = vunpack.c.l.b16 %v727
        %v760 = vunpack.c.l.b16 %v728
        %v761 = vunpack.c.l.b16 %v729
        %v762 = vunpack.c.l.b16 %v730
        %v763 = vunpack.c.l.b16 %v731
        %v764 = vunpack.c.l.b16 %v732
        %v765 = vunpack.c.l.b16 %v733
        %v766 = vunpack.c.l.b16 %v734
        %v767 = vunpack.c.l.b16 %v735
        %v768 = vpack.c.b16 %v753, %v752
        %v769 = vpack.c.b16 %v755, %v754
        %v770 = vpack.c.b16 %v757, %v756
        %v771 = vpack.c.b16 %v759, %v758
        %v772 = vpack.c.b16 %v761, %v760
        %v773 = vpack.c.b16 %v763, %v762
        %v774 = vpack.c.b16 %v765, %v764
        %v775 = vpack.c.b16 %v767, %v766
        %784 = vmatpush.bf16.msra.mxu0 %v775
        %785 = vmatpush.bf16.msra.mxu0 %v774
        %786 = vmatpush.bf16.msra.mxu0 %v773
        %787 = vmatpush.bf16.msra.mxu0 %v772
        %788 = vmatpush.bf16.msra.mxu0 %v771
        %789 = vmatpush.bf16.msra.mxu0 %v770
        %790 = vmatpush.bf16.msra.mxu0 %v769
        %791 = vmatpush.bf16.msra.mxu0 %v768
        %792 = vmatmul.bf16.gmra.mxu0 %v719
        %v793 = vpop.f32.mrf.mxu0
        %v794 = vadd.f32 0.0, %v793
        %v795 = vpop.f32.mrf.mxu0
        %v796 = vadd.f32 0.0, %v795
        %797 = vdwg.mxu0
        %v798 = vmul.f32 %v794, %v794
        %v799 = vmul.f32 %v796, %v796
        %vm800 = vcmask 523264
        %v801 = vsel %vm800, %v798, 0.0
        %802 = vadd.xlane.f32.xlu0 %v801
        %v803 = vpop.xlane.xlu0 %802
        %v804 = vsel %vm800, %v799, 0.0
        %805 = vadd.xlane.f32.xlu0 %v804
        %v806 = vpop.xlane.xlu0 %805
        %v807 = vrcp.pop 64.0
        %v808 = vmul.f32 64.0, %v807
        %v809 = vsub.f32 1.0, %v808
        %v810 = vmul.f32 %v807, %v809
        %v811 = vadd.f32 %v807, %v810
        %vm812 = vweird.f32 %v807
        %v813 = vsel %vm812, %v807, %v811
        %v814 = vmul.f32 %v803, %v813
        %v815 = vmul.f32 %v806, %v813
        %v816 = vadd.f32 %v814, 1.1920929e-07
        %v817 = vadd.f32 %v815, 1.1920929e-07
        %v818 = vrsqrt.pop %v816
        %v819 = vmul.f32 %v818, %v816
        %v820 = vmul.f32 %v819, %v818
        %v821 = vmul.f32 0.5, %v820
        %v822 = vsub.f32 1.5, %v821
        %v823 = vmul.f32 %v818, %v822
        %vm824 = vweird.f32 %v816
        %vm825 = vweird.f32 %v818
        %vm826 = vmor %vm824, %vm825
        %v827 = vsel %vm826, %v818, %v823
        %v828 = vrsqrt.pop %v817
        %v829 = vmul.f32 %v828, %v817
        %v830 = vmul.f32 %v829, %v828
        %v831 = vmul.f32 0.5, %v830
        %v832 = vsub.f32 1.5, %v831
        %v833 = vmul.f32 %v828, %v832
        %vm834 = vweird.f32 %v817
        %vm835 = vweird.f32 %v828
        %vm836 = vmor %vm834, %vm835
        %v837 = vsel %vm836, %v828, %v833
        %v838 = vmul.f32 %v794, %v827
        %v839 = vmul.f32 %v796, %v837
        %v840 = vpack.c.bf16 %v839, %v838
        %v841 = vld [vmem:[%s2] sm:$0xf]
        %v842 = vld [vmem:[%s2 + $0x4] sm:$0xf]
        %v843 = vld [vmem:[%s2 + $0x8] sm:$0xf]
        %v844 = vld [vmem:[%s2 + $0xc] sm:$0xf]
        %v845 = vld [vmem:[%s2 + $0x10] sm:$0xf]
        %v846 = vld [vmem:[%s2 + $0x14] sm:$0xf]
        %v847 = vld [vmem:[%s2 + $0x18] sm:$0xf]
        %v848 = vld [vmem:[%s2 + $0x1c] sm:$0xf]
        %v857 = vunpack.c.l.b16 %v841
        %v858 = vunpack.c.l.b16 %v842
        %v859 = vunpack.c.l.b16 %v843
        %v860 = vunpack.c.l.b16 %v844
        %v861 = vunpack.c.l.b16 %v845
        %v862 = vunpack.c.l.b16 %v846
        %v863 = vunpack.c.l.b16 %v847
        %v864 = vunpack.c.l.b16 %v848
        %v865 = vpack.c.b16 %v858, %v857
        %v866 = vpack.c.b16 %v860, %v859
        %v867 = vpack.c.b16 %v862, %v861
        %v868 = vpack.c.b16 %v864, %v863
        %v874 = vsel %vm800, %v840, 0
        %876 = vmatpush.bf16.msra.mxu0 0
        %877 = vmatpush.bf16.msra.mxu0 0
        %878 = vmatpush.bf16.msra.mxu0 0
        %879 = vmatpush.bf16.msra.mxu0 0
        %880 = vmatpush.bf16.msra.mxu0 %v868
        %881 = vmatpush.bf16.msra.mxu0 %v867
        %882 = vmatpush.bf16.msra.mxu0 %v866
        %883 = vmatpush.bf16.msra.mxu0 %v865
        %884 = vmatmul.bf16.gmra.mxu0 %v874
        %v885 = vpop.f32.mrf.mxu0
        %v886 = vadd.f32 0.0, %v885
        %v887 = vpop.f32.mrf.mxu0
        %v888 = vadd.f32 0.0, %v887
        %889 = vdwg.mxu0
        %v890 = vpack.c.bf16 %v886, %v886
        %v891 = vpack.c.bf16 %v888, %v888
        %892 = vst [vmem:[%s664] sm:$0xf] %v890
        %893 = vst [vmem:[%s664 + $0x4] sm:$0xf] %v891
        %v894 = vld [vmem:[#allocation2] sm:$0xf]
        %v895 = vld [vmem:[#allocation2 + $0x4] sm:$0xf]
        %v896 = vld [vmem:[#allocation2 + $0x8] sm:$0xf]
        %v897 = vld [vmem:[#allocation2 + $0xc] sm:$0xf]
        %v898 = vld [vmem:[#allocation2 + $0x10] sm:$0xf]
        %v899 = vld [vmem:[#allocation2 + $0x14] sm:$0xf]
        %v900 = vld [vmem:[#allocation2 + $0x18] sm:$0xf]
        %v901 = vld [vmem:[#allocation2 + $0x1c] sm:$0xf]
        %v910 = vunpack.c.l.b16 %v894
        %v911 = vunpack.c.l.b16 %v895
        %v912 = vunpack.c.l.b16 %v896
        %v913 = vunpack.c.l.b16 %v897
        %v914 = vunpack.c.l.b16 %v898
        %v915 = vunpack.c.l.b16 %v899
        %v916 = vunpack.c.l.b16 %v900
        %v917 = vunpack.c.l.b16 %v901
        %v918 = vpack.c.b16 %v911, %v910
        %v919 = vpack.c.b16 %v913, %v912
        %v920 = vpack.c.b16 %v915, %v914
        %v921 = vpack.c.b16 %v917, %v916
        %926 = vmatpush.bf16.msra.mxu0 0
        %927 = vmatpush.bf16.msra.mxu0 0
        %928 = vmatpush.bf16.msra.mxu0 0
        %929 = vmatpush.bf16.msra.mxu0 0
        %930 = vmatpush.bf16.msra.mxu0 %v921
        %931 = vmatpush.bf16.msra.mxu0 %v920
        %932 = vmatpush.bf16.msra.mxu0 %v919
        %933 = vmatpush.bf16.msra.mxu0 %v918
        %934 = vmatmul.bf16.gmra.mxu0 %v874
        %v935 = vpop.f32.mrf.mxu0
        %v936 = vadd.f32 0.0, %v935
        %v937 = vpop.f32.mrf.mxu0
        %v938 = vadd.f32 0.0, %v937
        %939 = vdwg.mxu0
        %v940 = vld [vmem:[#allocation4] sm:$0xf]
        %v941 = vld [vmem:[#allocation4 + $0x4] sm:$0xf]
        %v942 = vld [vmem:[#allocation4 + $0x8] sm:$0xf]
        %v943 = vld [vmem:[#allocation4 + $0xc] sm:$0xf]
        %v944 = vld [vmem:[#allocation4 + $0x10] sm:$0xf]
        %v945 = vld [vmem:[#allocation4 + $0x14] sm:$0xf]
        %v946 = vld [vmem:[#allocation4 + $0x18] sm:$0xf]
        %v947 = vld [vmem:[#allocation4 + $0x1c] sm:$0xf]
        %v956 = vunpack.c.l.b16 %v940
        %v957 = vunpack.c.l.b16 %v941
        %v958 = vunpack.c.l.b16 %v942
        %v959 = vunpack.c.l.b16 %v943
        %v960 = vunpack.c.l.b16 %v944
        %v961 = vunpack.c.l.b16 %v945
        %v962 = vunpack.c.l.b16 %v946
        %v963 = vunpack.c.l.b16 %v947
        %v964 = vpack.c.b16 %v957, %v956
        %v965 = vpack.c.b16 %v959, %v958
        %v966 = vpack.c.b16 %v961, %v960
        %v967 = vpack.c.b16 %v963, %v962
        %972 = vmatpush.bf16.msra.mxu0 0
        %973 = vmatpush.bf16.msra.mxu0 0
        %974 = vmatpush.bf16.msra.mxu0 0
        %975 = vmatpush.bf16.msra.mxu0 0
        %976 = vmatpush.bf16.msra.mxu0 %v967
        %977 = vmatpush.bf16.msra.mxu0 %v966
        %978 = vmatpush.bf16.msra.mxu0 %v965
        %979 = vmatpush.bf16.msra.mxu0 %v964
        %980 = vmatmul.bf16.gmra.mxu0 %v874
        %v981 = vpop.f32.mrf.mxu0
        %v982 = vadd.f32 0.0, %v981
        %v983 = vpop.f32.mrf.mxu0
        %v984 = vadd.f32 0.0, %v983
        %985 = vdwg.mxu0
        %v986 = vld [vmem:[#allocation7] sm:$0xff]
        %v987 = vld [vmem:[#allocation7 + $0x8] sm:$0xff]
        %v988 = vmul.f32 %v936, %v986
        %v989 = vmul.f32 %v938, %v987
        %v990 = vld [vmem:[#allocation9] sm:$0xff]
        %v991 = vld [vmem:[#allocation9 + $0x8] sm:$0xff]
        %v992 = vmul.f32 %v982, %v990
        %v993 = vmul.f32 %v984, %v991
        %v994 = vadd.f32 %v988, %v992
        %v995 = vadd.f32 %v989, %v993
        %v996 = vld [vmem:[%s5] sm:$0xf]
        %v997 = vld [vmem:[%s5 + $0x4] sm:$0xf]
        %v998 = vld [vmem:[%s5 + $0x8] sm:$0xf]
        %v999 = vld [vmem:[%s5 + $0xc] sm:$0xf]
        %v1000 = vld [vmem:[%s5 + $0x10] sm:$0xf]
        %v1001 = vld [vmem:[%s5 + $0x14] sm:$0xf]
        %v1002 = vld [vmem:[%s5 + $0x18] sm:$0xf]
        %v1003 = vld [vmem:[%s5 + $0x1c] sm:$0xf]
        %v1004 = vld [vmem:[%s5 + $0x20] sm:$0xf]
        %v1005 = vld [vmem:[%s5 + $0x24] sm:$0xf]
        %v1006 = vld [vmem:[%s5 + $0x28] sm:$0xf]
        %v1007 = vld [vmem:[%s5 + $0x2c] sm:$0xf]
        %v1008 = vld [vmem:[%s5 + $0x30] sm:$0xf]
        %v1009 = vld [vmem:[%s5 + $0x34] sm:$0xf]
        %v1010 = vld [vmem:[%s5 + $0x38] sm:$0xf]
        %v1011 = vld [vmem:[%s5 + $0x3c] sm:$0xf]
        %v1028 = vunpack.c.l.b16 %v996
        %v1029 = vunpack.c.l.b16 %v997
        %v1030 = vunpack.c.l.b16 %v998
        %v1031 = vunpack.c.l.b16 %v999
        %v1032 = vunpack.c.l.b16 %v1000
        %v1033 = vunpack.c.l.b16 %v1001
        %v1034 = vunpack.c.l.b16 %v1002
        %v1035 = vunpack.c.l.b16 %v1003
        %v1036 = vunpack.c.l.b16 %v1004
        %v1037 = vunpack.c.l.b16 %v1005
        %v1038 = vunpack.c.l.b16 %v1006
        %v1039 = vunpack.c.l.b16 %v1007
        %v1040 = vunpack.c.l.b16 %v1008
        %v1041 = vunpack.c.l.b16 %v1009
        %v1042 = vunpack.c.l.b16 %v1010
        %v1043 = vunpack.c.l.b16 %v1011
        %v1044 = vpack.c.b16 %v1029, %v1028
        %v1045 = vpack.c.b16 %v1031, %v1030
        %v1046 = vpack.c.b16 %v1033, %v1032
        %v1047 = vpack.c.b16 %v1035, %v1034
        %v1048 = vpack.c.b16 %v1037, %v1036
        %v1049 = vpack.c.b16 %v1039, %v1038
        %v1050 = vpack.c.b16 %v1041, %v1040
        %v1051 = vpack.c.b16 %v1043, %v1042
        %1060 = vmatpush.bf16.msra.mxu0 %v1051
        %1061 = vmatpush.bf16.msra.mxu0 %v1050
        %1062 = vmatpush.bf16.msra.mxu0 %v1049
        %1063 = vmatpush.bf16.msra.mxu0 %v1048
        %1064 = vmatpush.bf16.msra.mxu0 %v1047
        %1065 = vmatpush.bf16.msra.mxu0 %v1046
        %1066 = vmatpush.bf16.msra.mxu0 %v1045
        %1067 = vmatpush.bf16.msra.mxu0 %v1044
        %1068 = vmatmul.bf16.gmra.mxu0 %v719
        %v1069 = vpop.f32.mrf.mxu0
        %v1070 = vadd.f32 0.0, %v1069
        %v1071 = vpop.f32.mrf.mxu0
        %v1072 = vadd.f32 0.0, %v1071
        %1073 = vdwg.mxu0
        %v1074 = vmul.f32 %v1070, %v1070
        %v1075 = vmul.f32 %v1072, %v1072
        %v1076 = vsel %vm800, %v1074, 0.0
        %1077 = vadd.xlane.f32.xlu0 %v1076
        %v1078 = vpop.xlane.xlu0 %1077
        %v1079 = vsel %vm800, %v1075, 0.0
        %1080 = vadd.xlane.f32.xlu0 %v1079
        %v1081 = vpop.xlane.xlu0 %1080
        %v1082 = vmul.f32 %v1078, %v813
        %v1083 = vmul.f32 %v1081, %v813
        %v1084 = vadd.f32 %v1082, 1.1920929e-07
        %v1085 = vadd.f32 %v1083, 1.1920929e-07
        %v1086 = vrsqrt.pop %v1084
        %v1087 = vmul.f32 %v1086, %v1084
        %v1088 = vmul.f32 %v1087, %v1086
        %v1089 = vmul.f32 0.5, %v1088
        %v1090 = vsub.f32 1.5, %v1089
        %v1091 = vmul.f32 %v1086, %v1090
        %vm1092 = vweird.f32 %v1084
        %vm1093 = vweird.f32 %v1086
        %vm1094 = vmor %vm1092, %vm1093
        %v1095 = vsel %vm1094, %v1086, %v1091
        %v1096 = vrsqrt.pop %v1085
        %v1097 = vmul.f32 %v1096, %v1085
        %v1098 = vmul.f32 %v1097, %v1096
        %v1099 = vmul.f32 0.5, %v1098
        %v1100 = vsub.f32 1.5, %v1099
        %v1101 = vmul.f32 %v1096, %v1100
        %vm1102 = vweird.f32 %v1085
        %vm1103 = vweird.f32 %v1096
        %vm1104 = vmor %vm1102, %vm1103
        %v1105 = vsel %vm1104, %v1096, %v1101
        %v1106 = vmul.f32 %v1070, %v1095
        %v1107 = vmul.f32 %v1072, %v1105
        %v1108 = vpack.c.bf16 %v1107, %v1106
        %v1109 = vld [vmem:[#allocation6] sm:$0xf]
        %v1110 = vld [vmem:[#allocation6 + $0x4] sm:$0xf]
        %v1111 = vld [vmem:[#allocation6 + $0x8] sm:$0xf]
        %v1112 = vld [vmem:[#allocation6 + $0xc] sm:$0xf]
        %v1113 = vld [vmem:[#allocation6 + $0x10] sm:$0xf]
        %v1114 = vld [vmem:[#allocation6 + $0x14] sm:$0xf]
        %v1115 = vld [vmem:[#allocation6 + $0x18] sm:$0xf]
        %v1116 = vld [vmem:[#allocation6 + $0x1c] sm:$0xf]
        %v1125 = vunpack.c.l.b16 %v1109
        %v1126 = vunpack.c.l.b16 %v1110
        %v1127 = vunpack.c.l.b16 %v1111
        %v1128 = vunpack.c.l.b16 %v1112
        %v1129 = vunpack.c.l.b16 %v1113
        %v1130 = vunpack.c.l.b16 %v1114
        %v1131 = vunpack.c.l.b16 %v1115
        %v1132 = vunpack.c.l.b16 %v1116
        %v1133 = vpack.c.b16 %v1126, %v1125
        %v1134 = vpack.c.b16 %v1128, %v1127
        %v1135 = vpack.c.b16 %v1130, %v1129
        %v1136 = vpack.c.b16 %v1132, %v1131
        %v1142 = vsel %vm800, %v1108, 0
        %1144 = vmatpush.bf16.msra.mxu0 0
        %1145 = vmatpush.bf16.msra.mxu0 0
        %1146 = vmatpush.bf16.msra.mxu0 0
        %1147 = vmatpush.bf16.msra.mxu0 0
        %1148 = vmatpush.bf16.msra.mxu0 %v1136
        %1149 = vmatpush.bf16.msra.mxu0 %v1135
        %1150 = vmatpush.bf16.msra.mxu0 %v1134
        %1151 = vmatpush.bf16.msra.mxu0 %v1133
        %1152 = vmatmul.bf16.gmra.mxu0 %v1142
        %v1153 = vpop.f32.mrf.mxu0
        %v1154 = vadd.f32 0.0, %v1153
        %v1155 = vpop.f32.mrf.mxu0
        %v1156 = vadd.f32 0.0, %v1155
        %1157 = vdwg.mxu0
        %v1158 = vpack.c.bf16 %v1154, %v1154
        %v1159 = vpack.c.bf16 %v1156, %v1156
        %1160 = vst [vmem:[%s669] sm:$0xf] %v1158
        %1161 = vst [vmem:[%s669 + $0x4] sm:$0xf] %v1159
        %v1162 = vld [vmem:[%s6] sm:$0xf]
        %v1163 = vld [vmem:[%s6 + $0x4] sm:$0xf]
        %v1164 = vld [vmem:[%s6 + $0x8] sm:$0xf]
        %v1165 = vld [vmem:[%s6 + $0xc] sm:$0xf]
        %v1166 = vld [vmem:[%s6 + $0x10] sm:$0xf]
        %v1167 = vld [vmem:[%s6 + $0x14] sm:$0xf]
        %v1168 = vld [vmem:[%s6 + $0x18] sm:$0xf]
        %v1169 = vld [vmem:[%s6 + $0x1c] sm:$0xf]
        %v1170 = vld [vmem:[%s6 + $0x20] sm:$0xf]
        %v1171 = vld [vmem:[%s6 + $0x24] sm:$0xf]
        %v1172 = vld [vmem:[%s6 + $0x28] sm:$0xf]
        %v1173 = vld [vmem:[%s6 + $0x2c] sm:$0xf]
        %v1174 = vld [vmem:[%s6 + $0x30] sm:$0xf]
        %v1175 = vld [vmem:[%s6 + $0x34] sm:$0xf]
        %v1176 = vld [vmem:[%s6 + $0x38] sm:$0xf]
        %v1177 = vld [vmem:[%s6 + $0x3c] sm:$0xf]
        %v1194 = vunpack.c.l.b16 %v1162
        %v1195 = vunpack.c.l.b16 %v1163
        %v1196 = vunpack.c.l.b16 %v1164
        %v1197 = vunpack.c.l.b16 %v1165
        %v1198 = vunpack.c.l.b16 %v1166
        %v1199 = vunpack.c.l.b16 %v1167
        %v1200 = vunpack.c.l.b16 %v1168
        %v1201 = vunpack.c.l.b16 %v1169
        %v1202 = vunpack.c.l.b16 %v1170
        %v1203 = vunpack.c.l.b16 %v1171
        %v1204 = vunpack.c.l.b16 %v1172
        %v1205 = vunpack.c.l.b16 %v1173
        %v1206 = vunpack.c.l.b16 %v1174
        %v1207 = vunpack.c.l.b16 %v1175
        %v1208 = vunpack.c.l.b16 %v1176
        %v1209 = vunpack.c.l.b16 %v1177
        %v1210 = vpack.c.b16 %v1195, %v1194
        %v1211 = vpack.c.b16 %v1197, %v1196
        %v1212 = vpack.c.b16 %v1199, %v1198
        %v1213 = vpack.c.b16 %v1201, %v1200
        %v1214 = vpack.c.b16 %v1203, %v1202
        %v1215 = vpack.c.b16 %v1205, %v1204
        %v1216 = vpack.c.b16 %v1207, %v1206
        %v1217 = vpack.c.b16 %v1209, %v1208
        %1226 = vmatpush.bf16.msra.mxu0 %v1217
        %1227 = vmatpush.bf16.msra.mxu0 %v1216
        %1228 = vmatpush.bf16.msra.mxu0 %v1215
        %1229 = vmatpush.bf16.msra.mxu0 %v1214
        %1230 = vmatpush.bf16.msra.mxu0 %v1213
        %1231 = vmatpush.bf16.msra.mxu0 %v1212
        %1232 = vmatpush.bf16.msra.mxu0 %v1211
        %1233 = vmatpush.bf16.msra.mxu0 %v1210
        %1234 = vmatmul.bf16.gmra.mxu0 %v719
        %v1235 = vpop.f32.mrf.mxu0
        %v1236 = vadd.f32 0.0, %v1235
        %v1237 = vpop.f32.mrf.mxu0
        %v1238 = vadd.f32 0.0, %v1237
        %1239 = vdwg.mxu0
        %v1240 = vld [vmem:[%s7] sm:$0xf]
        %v1241 = vld [vmem:[%s7 + $0x4] sm:$0xf]
        %v1242 = vld [vmem:[%s7 + $0x8] sm:$0xf]
        %v1243 = vld [vmem:[%s7 + $0xc] sm:$0xf]
        %v1244 = vld [vmem:[%s7 + $0x10] sm:$0xf]
        %v1245 = vld [vmem:[%s7 + $0x14] sm:$0xf]
        %v1246 = vld [vmem:[%s7 + $0x18] sm:$0xf]
        %v1247 = vld [vmem:[%s7 + $0x1c] sm:$0xf]
        %v1248 = vld [vmem:[%s7 + $0x20] sm:$0xf]
        %v1249 = vld [vmem:[%s7 + $0x24] sm:$0xf]
        %v1250 = vld [vmem:[%s7 + $0x28] sm:$0xf]
        %v1251 = vld [vmem:[%s7 + $0x2c] sm:$0xf]
        %v1252 = vld [vmem:[%s7 + $0x30] sm:$0xf]
        %v1253 = vld [vmem:[%s7 + $0x34] sm:$0xf]
        %v1254 = vld [vmem:[%s7 + $0x38] sm:$0xf]
        %v1255 = vld [vmem:[%s7 + $0x3c] sm:$0xf]
        %v1272 = vunpack.c.l.b16 %v1240
        %v1273 = vunpack.c.l.b16 %v1241
        %v1274 = vunpack.c.l.b16 %v1242
        %v1275 = vunpack.c.l.b16 %v1243
        %v1276 = vunpack.c.l.b16 %v1244
        %v1277 = vunpack.c.l.b16 %v1245
        %v1278 = vunpack.c.l.b16 %v1246
        %v1279 = vunpack.c.l.b16 %v1247
        %v1280 = vunpack.c.l.b16 %v1248
        %v1281 = vunpack.c.l.b16 %v1249
        %v1282 = vunpack.c.l.b16 %v1250
        %v1283 = vunpack.c.l.b16 %v1251
        %v1284 = vunpack.c.l.b16 %v1252
        %v1285 = vunpack.c.l.b16 %v1253
        %v1286 = vunpack.c.l.b16 %v1254
        %v1287 = vunpack.c.l.b16 %v1255
        %v1288 = vpack.c.b16 %v1273, %v1272
        %v1289 = vpack.c.b16 %v1275, %v1274
        %v1290 = vpack.c.b16 %v1277, %v1276
        %v1291 = vpack.c.b16 %v1279, %v1278
        %v1292 = vpack.c.b16 %v1281, %v1280
        %v1293 = vpack.c.b16 %v1283, %v1282
        %v1294 = vpack.c.b16 %v1285, %v1284
        %v1295 = vpack.c.b16 %v1287, %v1286
        %1304 = vmatpush.bf16.msra.mxu0 %v1295
        %1305 = vmatpush.bf16.msra.mxu0 %v1294
        %1306 = vmatpush.bf16.msra.mxu0 %v1293
        %1307 = vmatpush.bf16.msra.mxu0 %v1292
        %1308 = vmatpush.bf16.msra.mxu0 %v1291
        %1309 = vmatpush.bf16.msra.mxu0 %v1290
        %1310 = vmatpush.bf16.msra.mxu0 %v1289
        %1311 = vmatpush.bf16.msra.mxu0 %v1288
        %1312 = vmatmul.bf16.gmra.mxu0 %v719
        %v1313 = vpop.f32.mrf.mxu0
        %v1314 = vadd.f32 0.0, %v1313
        %v1315 = vpop.f32.mrf.mxu0
        %v1316 = vadd.f32 0.0, %v1315
        %1317 = vdwg.mxu0
        %v1318 = vld [vmem:[#allocation10] sm:$0xff]
        %v1319 = vld [vmem:[#allocation10 + $0x8] sm:$0xff]
        %v1320 = vmul.f32 %v1236, %v1318
        %v1321 = vmul.f32 %v1238, %v1319
        %v1322 = vld [vmem:[#allocation12] sm:$0xff]
        %v1323 = vld [vmem:[#allocation12 + $0x8] sm:$0xff]
        %v1324 = vmul.f32 %v1314, %v1322
        %v1325 = vmul.f32 %v1316, %v1323
        %v1326 = vadd.f32 %v1320, %v1324
        %v1327 = vadd.f32 %v1321, %v1325
        %1330 = vrot.lane.b32.xlu0 %v1326, 64
        %v1331 = vpop.permute.xlu0 %1330
        %1332 = vrot.lane.b32.xlu0 %v1327, 64
        %v1333 = vpop.permute.xlu0 %1332
        %v1336 = vsel %vm800, %v994, %v1331
        %v1337 = vsel %vm800, %v995, %v1333
        %vm1338 = vcmask 654336
        %v1339 = vsel %vm1338, %v1336, 0.0
        %v1340 = vsel %vm1338, %v1337, 0.0
        %v1341 = vpack.c.bf16 %v1339, %v1339
        %v1342 = vpack.c.bf16 %v1340, %v1340
        %1343 = vst [vmem:[%s674] sm:$0xf] %v1341
        %1344 = vst [vmem:[%s674 + $0x4] sm:$0xf] %v1342
        %p1345 = scmp.lt.s32.totalorder %s32, 1
        %s1346 = scalar_select %p1345, %s32, 1
        %s1347 = smul.addr %s1346, 2
        %s1348 = smul.addr %s1347, 8
        %s1349 = scalar_lea.vmem %s13, %s1348
        %p1350 = scmp.lt.s32.totalorder %s32, 1
        %s1351 = scalar_select %p1350, %s32, 1
        %s1352 = smul.addr %s1351, 2
        %s1353 = smul.addr %s1352, 4
        %s1354 = scalar_lea.vmem %s14, %s1353
        %p1355 = scmp.lt.s32.totalorder %s32, 1
        %s1356 = scalar_select %p1355, %s32, 1
        %s1357 = smul.addr %s1356, 2
        %s1358 = smul.addr %s1357, 4
        %s1359 = scalar_lea.vmem %s15, %s1358
        %p1360 = scmp.lt.s32.totalorder %s32, 1
        %s1361 = scalar_select %p1360, %s32, 1
        %s1362 = smul.addr %s1361, 2
        %s1363 = smul.addr %s1362, 4
        %s1364 = scalar_lea.vmem %s16, %s1363
        // Predicated region
        $region101: #{decoder_block_forward.2} parent=71 // pred_check
          %p1365 = pneg %p328
        $region102: #{decoder_block_forward.2} parent=71 // pred_check_branch
          %1367 = sbr.rel (%p1365) target = $region104
        $region103: #{decoder_block_forward.2} parent=71 // pred_region
          _
        $region104: #{decoder_block_forward.2} parent=71 // pred_fallthru
          _
        // Predicated region
        $region105: #{decoder_block_forward.2} parent=71 // pred_check
          %p1368 = pneg %p354
        $region106: #{decoder_block_forward.2} parent=71 // pred_check_branch
          %1370 = sbr.rel (%p1368) target = $region108
        $region107: #{decoder_block_forward.2} parent=71 // pred_region
          _
        $region108: #{decoder_block_forward.2} parent=71 // pred_fallthru
          _
        // Predicated region
        $region109: #{decoder_block_forward.2} parent=71 // pred_check
          %p1371 = pneg %p380
        $region110: #{decoder_block_forward.2} parent=71 // pred_check_branch
          %1373 = sbr.rel (%p1371) target = $region112
        $region111: #{decoder_block_forward.2} parent=71 // pred_region
          _
        $region112: #{decoder_block_forward.2} parent=71 // pred_fallthru
          _
        // Predicated region
        $region113: #{decoder_block_forward.2} parent=71 // pred_check
          %p1374 = pneg %p406
        $region114: #{decoder_block_forward.2} parent=71 // pred_check_branch
          %1376 = sbr.rel (%p1374) target = $region116
        $region115: #{decoder_block_forward.2} parent=71 // pred_region
          _
        $region116: #{decoder_block_forward.2} parent=71 // pred_fallthru
          _
      $region72: #{decoder_block_forward.2} parent=5 // pred_fallthru
        _
      %p1377 = scmp.le.s32.totalorder 2, %s27
      // Predicated region
      $region117: #{decoder_block_forward.2} parent=5 // pred_check
        %p1378 = pneg %p1377
      $region118: #{decoder_block_forward.2} parent=5 // pred_check_branch
        %1380 = sbr.rel (%p1378) target = $region120
      $region119: #{decoder_block_forward.2} parent=5 // pred_region
        %s1381 = ssub.s32 %s27, 2
        // Predicated region
        $region121: #{decoder_block_forward.2} parent=119 // pred_check
          %p1382 = pneg %p334
        $region122: #{decoder_block_forward.2} parent=119 // pred_check_branch
          %1384 = sbr.rel (%p1382) target = $region124
        $region123: #{decoder_block_forward.2} parent=119 // pred_region
          %p1385 = scmp.lt.s32.totalorder %s33, 1
          %s1386 = scalar_select %p1385, %s33, 1
          %s1387 = smul.addr %s1386, 2
          %s1388 = smul.addr %s1387, 8
          %s1389 = scalar_lea.vmem %s13, %s1388
        $region124: #{decoder_block_forward.2} parent=119 // pred_fallthru
          _
        // Predicated region
        $region125: #{decoder_block_forward.2} parent=119 // pred_check
          %p1390 = pneg %p360
        $region126: #{decoder_block_forward.2} parent=119 // pred_check_branch
          %1392 = sbr.rel (%p1390) target = $region128
        $region127: #{decoder_block_forward.2} parent=119 // pred_region
          %p1393 = scmp.lt.s32.totalorder %s33, 1
          %s1394 = scalar_select %p1393, %s33, 1
          %s1395 = smul.addr %s1394, 2
          %s1396 = smul.addr %s1395, 4
          %s1397 = scalar_lea.vmem %s14, %s1396
        $region128: #{decoder_block_forward.2} parent=119 // pred_fallthru
          _
        // Predicated region
        $region129: #{decoder_block_forward.2} parent=119 // pred_check
          %p1398 = pneg %p386
        $region130: #{decoder_block_forward.2} parent=119 // pred_check_branch
          %1400 = sbr.rel (%p1398) target = $region132
        $region131: #{decoder_block_forward.2} parent=119 // pred_region
          %p1401 = scmp.lt.s32.totalorder %s33, 1
          %s1402 = scalar_select %p1401, %s33, 1
          %s1403 = smul.addr %s1402, 2
          %s1404 = smul.addr %s1403, 4
          %s1405 = scalar_lea.vmem %s15, %s1404
        $region132: #{decoder_block_forward.2} parent=119 // pred_fallthru
          _
        // Predicated region
        $region133: #{decoder_block_forward.2} parent=119 // pred_check
          %p1406 = pneg %p412
        $region134: #{decoder_block_forward.2} parent=119 // pred_check_branch
          %1408 = sbr.rel (%p1406) target = $region136
        $region135: #{decoder_block_forward.2} parent=119 // pred_region
          %p1409 = scmp.lt.s32.totalorder %s33, 1
          %s1410 = scalar_select %p1409, %s33, 1
          %s1411 = smul.addr %s1410, 2
          %s1412 = smul.addr %s1411, 4
          %s1413 = scalar_lea.vmem %s16, %s1412
        $region136: #{decoder_block_forward.2} parent=119 // pred_fallthru
          _
      $region120: #{decoder_block_forward.2} parent=5 // pred_fallthru
        _
    $region6: #{decoder_block_forward.2} parent=1 // loop_footer
      %s31 = sadd.s32 1, %s27
    $region7: #{decoder_block_forward.2} parent=1 // loop_footer_branch
      %26 = sbr.rel target = $region3
    $region8: #{decoder_block_forward.2} parent=1 // loop_exit
      _
    %1414 = vsyncpa [#allocation3], 1
    %s1415 = scalar_lea.sflag [#allocation3], 1
    %1416 = vsyncpa %s1415, 1
    %1417 = vsyncpa [#allocation5], 1
    %1418 = vsyncpa [#allocation8], 1
    %1419 = vsyncpa [#allocation11], 1

// kernel: decoder_block_forward.3
$region0: #{decoder_block_forward.3}
  #allocation0 [shape = 'u32[]', space=smem, size = 0x4, offset = 0x4, fixed_abs, tag = 'smem constant byte address 0x4 - core index']
  #allocation1 [shape = 'u32[72,128]{1,0:T(1,128)}', space=vmem, size = 0x9000, scoped, tag = 'internal scratch']
  #allocation2 [shape = 'f32[16,128]{1,0:T(8,128)}', space=vmem, size = 0x2000, scoped, tag = 'scratch operand']
  %s0 = inlined_call_operand.vmem [shape: bf16[2,16,128], index: 0, kind: input, shape index: {}]
  %s1 = inlined_call_operand.vmem [shape: bf16[2,16,128], index: 1, kind: input, shape index: {}]
  %s2 = inlined_call_operand.vmem [shape: bf16[2,16,128], index: 2, kind: input, shape index: {}]
  %s3 = inlined_call_operand.vmem [shape: f32[2,16,128], index: 3, kind: input, shape index: {}]
  %s4 = inlined_call_operand.vmem [shape: bf16[128,128], index: 4, kind: input, shape index: {}]
  %s5 = inlined_call_operand.vmem [shape: bf16[128,256], index: 5, kind: input, shape index: {}]
  %s6 = inlined_call_operand.hbm [shape: bf16[256,128], index: 6, kind: input, shape index: {}]
  %s7 = inlined_call_operand.hbm [shape: f32[2,16,128], index: 7, kind: output, shape index: {}]
  %s8 = sld [smem:[#allocation0]]
  $region65: #{decoder_block_forward.3} parent=0
    _
  %s10 = ssub.s32 1, %s8
  %s11 = scalar_select 0, %s10, %s8
  $region1: #{decoder_block_forward.3} parent=0
    #allocation3 [shape = 'u8[65536]{0}', space=vmem, size = 0x10000, scoped, tag = 'input window, operand 6, single buffered']
    #allocation4 [shape = 's32[2]{0}', space=sflag, size = 0x8, scoped, tag = 'scoped memory for decoder_block_forward.3']
    #allocation5 [shape = 's32[2]{0}', space=sflag, size = 0x8, scoped, tag = 'scoped memory for decoder_block_forward.3']
    #allocation6 [shape = 'u8[16384]{0}', space=vmem, size = 0x4000, scoped, tag = 'output window, operand 0']
    %12 = vsyncpa [#allocation4], 0
    %13 = vsyncpa [#allocation5], 0
    %s14 = scalar_lea.sflag [#allocation5], 1
    %15 = vsyncpa %s14, 0
    loop: start=0, step=1, limit=4
    $region2: #{decoder_block_forward.3} parent=1 // loop_pre_header
      _
    $region3: #{decoder_block_forward.3} parent=1 // loop_header
      %s17 = sphi 0, %s21
      %p18 = scmp.ge.s32.totalorder %s17, 4
      %s27 = sphi 0, %s29
      %s30 = sphi 0, %s27
      %s31 = sphi 0, %s30
      %s47 = sphi 0, %s31
      %s53 = sphi 0, %s55
      %s56 = sphi 0, %s53
      %s57 = sphi 0, %s56
      %s73 = sphi 0, %s57
      %s79 = sphi 0, %s81
      %s82 = sphi 0, %s79
      %s83 = sphi 0, %s82
      %s99 = sphi 0, %s83
      %s105 = sphi 0, %s107
      %s108 = sphi 0, %s105
      %s109 = sphi 0, %s108
      %s125 = sphi 0, %s109
      %s129 = sphi 0, %s129
      %s131 = sphi 0, %s129
      %s132 = sphi 0, %s131
      %s146 = sphi 0, %s132
      %s150 = sphi 0, %s150
      %s152 = sphi 0, %s150
      %s153 = sphi 0, %s152
      %s167 = sphi 0, %s153
      %s171 = sphi 0, %s171
      %s173 = sphi 0, %s171
      %s174 = sphi 0, %s173
      %s188 = sphi 0, %s174
      %s194 = sphi 0, %s196
      %s197 = sphi 0, %s194
      %s198 = sphi 0, %s197
      %s214 = sphi 0, %s198
    $region4: #{decoder_block_forward.3} parent=1 // loop_header_branch
      %20 = sbr.rel (%p18) target = $region8
    $region5: #{decoder_block_forward.3} parent=1 // loop_body
      %s22 = ssub.s32 %s17, 1
      %s23 = ssub.s32 %s17, 2
      %s24 = sadd.s32 %s17, 1
      %s25 = ssub.s32 %s17, %s24
      %p26 = scmp.eq.s32.totalorder %s25, 0
      %s28 = sadd.s32 %s27, 1
      %s29 = scalar_select %p26, %s27, %s28
      %p32 = pneg %p26
      %p33 = scmp.eq.s32.totalorder %s17, 1
      %p34 = por %p32, %p33
      %p35 = scmp.ne.s32.totalorder %s27, %s30
      %p36 = scmp.eq.s32.totalorder %s17, 0
      %p37 = por %p35, %p36
      %p38 = scmp.ne.s32.totalorder %s27, %s30
      %p39 = scmp.eq.s32.totalorder %s22, 1
      %p40 = por %p38, %p39
      %p41 = scmp.ne.s32.totalorder %s30, %s31
      %p42 = scmp.eq.s32.totalorder %s22, 0
      %p43 = por %p41, %p42
      %p44 = scmp.ne.s32.totalorder %s30, %s31
      %p45 = scmp.eq.s32.totalorder %s23, 1
      %p46 = por %p44, %p45
      %p48 = scmp.ne.s32.totalorder %s31, %s47
      %p49 = scmp.eq.s32.totalorder %s23, 0
      %p50 = por %p48, %p49
      %s51 = ssub.s32 %s17, %s24
      %p52 = scmp.eq.s32.totalorder %s51, 0
      %s54 = sadd.s32 %s53, 1
      %s55 = scalar_select %p52, %s53, %s54
      %p58 = pneg %p52
      %p59 = scmp.eq.s32.totalorder %s17, 1
      %p60 = por %p58, %p59
      %p61 = scmp.ne.s32.totalorder %s53, %s56
      %p62 = scmp.eq.s32.totalorder %s17, 0
      %p63 = por %p61, %p62
      %p64 = scmp.ne.s32.totalorder %s53, %s56
      %p65 = scmp.eq.s32.totalorder %s22, 1
      %p66 = por %p64, %p65
      %p67 = scmp.ne.s32.totalorder %s56, %s57
      %p68 = scmp.eq.s32.totalorder %s22, 0
      %p69 = por %p67, %p68
      %p70 = scmp.ne.s32.totalorder %s56, %s57
      %p71 = scmp.eq.s32.totalorder %s23, 1
      %p72 = por %p70, %p71
      %p74 = scmp.ne.s32.totalorder %s57, %s73
      %p75 = scmp.eq.s32.totalorder %s23, 0
      %p76 = por %p74, %p75
      %s77 = ssub.s32 %s17, %s24
      %p78 = scmp.eq.s32.totalorder %s77, 0
      %s80 = sadd.s32 %s79, 1
      %s81 = scalar_select %p78, %s79, %s80
      %p84 = pneg %p78
      %p85 = scmp.eq.s32.totalorder %s17, 1
      %p86 = por %p84, %p85
      %p87 = scmp.ne.s32.totalorder %s79, %s82
      %p88 = scmp.eq.s32.totalorder %s17, 0
      %p89 = por %p87, %p88
      %p90 = scmp.ne.s32.totalorder %s79, %s82
      %p91 = scmp.eq.s32.totalorder %s22, 1
      %p92 = por %p90, %p91
      %p93 = scmp.ne.s32.totalorder %s82, %s83
      %p94 = scmp.eq.s32.totalorder %s22, 0
      %p95 = por %p93, %p94
      %p96 = scmp.ne.s32.totalorder %s82, %s83
      %p97 = scmp.eq.s32.totalorder %s23, 1
      %p98 = por %p96, %p97
      %p100 = scmp.ne.s32.totalorder %s83, %s99
      %p101 = scmp.eq.s32.totalorder %s23, 0
      %p102 = por %p100, %p101
      %s103 = ssub.s32 %s17, %s24
      %p104 = scmp.eq.s32.totalorder %s103, 0
      %s106 = sadd.s32 %s105, 1
      %s107 = scalar_select %p104, %s105, %s106
      %p110 = pneg %p104
      %p111 = scmp.eq.s32.totalorder %s17, 1
      %p112 = por %p110, %p111
      %p113 = scmp.ne.s32.totalorder %s105, %s108
      %p114 = scmp.eq.s32.totalorder %s17, 0
      %p115 = por %p113, %p114
      %p116 = scmp.ne.s32.totalorder %s105, %s108
      %p117 = scmp.eq.s32.totalorder %s22, 1
      %p118 = por %p116, %p117
      %p119 = scmp.ne.s32.totalorder %s108, %s109
      %p120 = scmp.eq.s32.totalorder %s22, 0
      %p121 = por %p119, %p120
      %p122 = scmp.ne.s32.totalorder %s108, %s109
      %p123 = scmp.eq.s32.totalorder %s23, 1
      %p124 = por %p122, %p123
      %p126 = scmp.ne.s32.totalorder %s109, %s125
      %p127 = scmp.eq.s32.totalorder %s23, 0
      %p128 = por %p126, %p127
      %s130 = sadd.s32 %s129, 1
      %p133 = scmp.eq.s32.totalorder %s17, 1
      %p134 = scmp.ne.s32.totalorder %s129, %s131
      %p135 = scmp.eq.s32.totalorder %s17, 0
      %p136 = por %p134, %p135
      %p137 = scmp.ne.s32.totalorder %s129, %s131
      %p138 = scmp.eq.s32.totalorder %s22, 1
      %p139 = por %p137, %p138
      %p140 = scmp.ne.s32.totalorder %s131, %s132
      %p141 = scmp.eq.s32.totalorder %s22, 0
      %p142 = por %p140, %p141
      %p143 = scmp.ne.s32.totalorder %s131, %s132
      %p144 = scmp.eq.s32.totalorder %s23, 1
      %p145 = por %p143, %p144
      %p147 = scmp.ne.s32.totalorder %s132, %s146
      %p148 = scmp.eq.s32.totalorder %s23, 0
      %p149 = por %p147, %p148
      %s151 = sadd.s32 %s150, 1
      %p154 = scmp.eq.s32.totalorder %s17, 1
      %p155 = scmp.ne.s32.totalorder %s150, %s152
      %p156 = scmp.eq.s32.totalorder %s17, 0
      %p157 = por %p155, %p156
      %p158 = scmp.ne.s32.totalorder %s150, %s152
      %p159 = scmp.eq.s32.totalorder %s22, 1
      %p160 = por %p158, %p159
      %p161 = scmp.ne.s32.totalorder %s152, %s153
      %p162 = scmp.eq.s32.totalorder %s22, 0
      %p163 = por %p161, %p162
      %p164 = scmp.ne.s32.totalorder %s152, %s153
      %p165 = scmp.eq.s32.totalorder %s23, 1
      %p166 = por %p164, %p165
      %p168 = scmp.ne.s32.totalorder %s153, %s167
      %p169 = scmp.eq.s32.totalorder %s23, 0
      %p170 = por %p168, %p169
      %s172 = sadd.s32 %s171, 1
      %p175 = scmp.eq.s32.totalorder %s17, 1
      %p176 = scmp.ne.s32.totalorder %s171, %s173
      %p177 = scmp.eq.s32.totalorder %s17, 0
      %p178 = por %p176, %p177
      %p179 = scmp.ne.s32.totalorder %s171, %s173
      %p180 = scmp.eq.s32.totalorder %s22, 1
      %p181 = por %p179, %p180
      %p182 = scmp.ne.s32.totalorder %s173, %s174
      %p183 = scmp.eq.s32.totalorder %s22, 0
      %p184 = por %p182, %p183
      %p185 = scmp.ne.s32.totalorder %s173, %s174
      %p186 = scmp.eq.s32.totalorder %s23, 1
      %p187 = por %p185, %p186
      %p189 = scmp.ne.s32.totalorder %s174, %s188
      %p190 = scmp.eq.s32.totalorder %s23, 0
      %p191 = por %p189, %p190
      %s192 = ssub.s32 %s17, %s24
      %p193 = scmp.eq.s32.totalorder %s192, 0
      %s195 = sadd.s32 %s194, 1
      %s196 = scalar_select %p193, %s194, %s195
      %p199 = pneg %p193
      %p200 = scmp.eq.s32.totalorder %s17, 1
      %p201 = por %p199, %p200
      %p202 = scmp.ne.s32.totalorder %s194, %s197
      %p203 = scmp.eq.s32.totalorder %s17, 0
      %p204 = por %p202, %p203
      %p205 = scmp.ne.s32.totalorder %s194, %s197
      %p206 = scmp.eq.s32.totalorder %s22, 1
      %p207 = por %p205, %p206
      %p208 = scmp.ne.s32.totalorder %s197, %s198
      %p209 = scmp.eq.s32.totalorder %s22, 0
      %p210 = por %p208, %p209
      %p211 = scmp.ne.s32.totalorder %s197, %s198
      %p212 = scmp.eq.s32.totalorder %s23, 1
      %p213 = por %p211, %p212
      %p215 = scmp.ne.s32.totalorder %s198, %s214
      %p216 = scmp.eq.s32.totalorder %s23, 0
      %p217 = por %p215, %p216
      %p218 = scmp.le.s32.totalorder 1, %s17
      %p219 = scmp.lt.s32.totalorder %s17, 3
      %p220 = pnand %p218, %p219
      %p221 = pneg %p220
      // Predicated region
      $region9: #{decoder_block_forward.3} parent=5 // pred_check
        _
      $region10: #{decoder_block_forward.3} parent=5 // pred_check_branch
        %223 = sbr.rel (%p220) target = $region12
      $region11: #{decoder_block_forward.3} parent=5 // pred_region
        %s224 = ssub.s32 %s17, 1
        // Predicated region
        $region13: #{decoder_block_forward.3} parent=11 // pred_check
          %p225 = pneg %p142
        $region14: #{decoder_block_forward.3} parent=11 // pred_check_branch
          %227 = sbr.rel (%p225) target = $region16
        $region15: #{decoder_block_forward.3} parent=11 // pred_region
          _
        $region16: #{decoder_block_forward.3} parent=11 // pred_fallthru
          _
        // Predicated region
        $region17: #{decoder_block_forward.3} parent=11 // pred_check
          %p228 = pneg %p163
        $region18: #{decoder_block_forward.3} parent=11 // pred_check_branch
          %230 = sbr.rel (%p228) target = $region20
        $region19: #{decoder_block_forward.3} parent=11 // pred_region
          _
        $region20: #{decoder_block_forward.3} parent=11 // pred_fallthru
          _
        // Predicated region
        $region21: #{decoder_block_forward.3} parent=11 // pred_check
          %p231 = pneg %p184
        $region22: #{decoder_block_forward.3} parent=11 // pred_check_branch
          %233 = sbr.rel (%p231) target = $region24
        $region23: #{decoder_block_forward.3} parent=11 // pred_region
          %235 = vsyncadd [#allocation4], 0
          %s236 = sshll.u32 %s6, 4
          %s237 = int_to_ptr.hbm [resolvable:$true] %s236
          %s238 = sshll.u32 [#allocation3], 4
          %s239 = int_to_ptr.vmem [resolvable:$true] %s238
          %244 = dma.hbm_to_vmem [thread:$0]  %s237, 2048, %s239, [#allocation4], 64, 64, 4
        $region24: #{decoder_block_forward.3} parent=11 // pred_fallthru
          _
      $region12: #{decoder_block_forward.3} parent=5 // pred_fallthru
        _
      %p245 = scmp.lt.s32.totalorder %s17, 2
      // Predicated region
      $region25: #{decoder_block_forward.3} parent=5 // pred_check
        %p246 = pneg %p245
      $region26: #{decoder_block_forward.3} parent=5 // pred_check_branch
        %248 = sbr.rel (%p246) target = $region28
      $region27: #{decoder_block_forward.3} parent=5 // pred_region
        // Predicated region
        $region29: #{decoder_block_forward.3} parent=27 // pred_check
          %p249 = pneg %p37
        $region30: #{decoder_block_forward.3} parent=27 // pred_check_branch
          %251 = sbr.rel (%p249) target = $region32
        $region31: #{decoder_block_forward.3} parent=27 // pred_region
          %p252 = scmp.lt.s32.totalorder %s17, 1
          %s253 = scalar_select %p252, %s17, 1
          %s254 = smul.addr %s253, 2
          %s255 = smul.addr %s254, 4
          %s256 = scalar_lea.vmem %s0, %s255
        $region32: #{decoder_block_forward.3} parent=27 // pred_fallthru
          _
        // Predicated region
        $region33: #{decoder_block_forward.3} parent=27 // pred_check
          %p257 = pneg %p63
        $region34: #{decoder_block_forward.3} parent=27 // pred_check_branch
          %259 = sbr.rel (%p257) target = $region36
        $region35: #{decoder_block_forward.3} parent=27 // pred_region
          %p260 = scmp.lt.s32.totalorder %s17, 1
          %s261 = scalar_select %p260, %s17, 1
          %s262 = smul.addr %s261, 2
          %s263 = smul.addr %s262, 4
          %s264 = scalar_lea.vmem %s1, %s263
        $region36: #{decoder_block_forward.3} parent=27 // pred_fallthru
          _
        // Predicated region
        $region37: #{decoder_block_forward.3} parent=27 // pred_check
          %p265 = pneg %p89
        $region38: #{decoder_block_forward.3} parent=27 // pred_check_branch
          %267 = sbr.rel (%p265) target = $region40
        $region39: #{decoder_block_forward.3} parent=27 // pred_region
          %p268 = scmp.lt.s32.totalorder %s17, 1
          %s269 = scalar_select %p268, %s17, 1
          %s270 = smul.addr %s269, 2
          %s271 = smul.addr %s270, 4
          %s272 = scalar_lea.vmem %s2, %s271
        $region40: #{decoder_block_forward.3} parent=27 // pred_fallthru
          _
        // Predicated region
        $region41: #{decoder_block_forward.3} parent=27 // pred_check
          %p273 = pneg %p115
        $region42: #{decoder_block_forward.3} parent=27 // pred_check_branch
          %275 = sbr.rel (%p273) target = $region44
        $region43: #{decoder_block_forward.3} parent=27 // pred_region
          %p276 = scmp.lt.s32.totalorder %s17, 1
          %s277 = scalar_select %p276, %s17, 1
          %s278 = smul.addr %s277, 2
          %s279 = smul.addr %s278, 8
          %s280 = scalar_lea.vmem %s3, %s279
        $region44: #{decoder_block_forward.3} parent=27 // pred_fallthru
          _
      $region28: #{decoder_block_forward.3} parent=5 // pred_fallthru
        _
      %p281 = scmp.le.s32.totalorder 1, %s17
      %p282 = scmp.lt.s32.totalorder %s17, 3
      %p283 = pnand %p281, %p282
      %p284 = pneg %p283
      // Predicated region
      $region45: #{decoder_block_forward.3} parent=5 // pred_check
        _
      $region46: #{decoder_block_forward.3} parent=5 // pred_check_branch
        %286 = sbr.rel (%p283) target = $region48
      $region47: #{decoder_block_forward.3} parent=5 // pred_region
        %s287 = ssub.s32 %s17, 1
        // Predicated region
        $region49: #{decoder_block_forward.3} parent=47 // pred_check
          %p288 = pneg %p184
        $region50: #{decoder_block_forward.3} parent=47 // pred_check_branch
          %290 = sbr.rel (%p288) target = $region52
        $region51: #{decoder_block_forward.3} parent=47 // pred_region
          %292 = dma.done [#allocation4], 2048
        $region52: #{decoder_block_forward.3} parent=47 // pred_fallthru
          _
        %p293 = scmp.lt.s32.totalorder %s22, 1
        %s294 = scalar_select %p293, %s22, 1
        %s295 = smul.addr %s294, 2
        %s296 = smul.addr %s295, 4
        %s297 = scalar_lea.vmem %s0, %s296
        %p298 = pneg %p43
        %p299 = pneg %p40
        %p300 = scmp.lt.s32.totalorder %s22, 1
        %s301 = scalar_select %p300, %s22, 1
        %s302 = smul.addr %s301, 2
        %s303 = smul.addr %s302, 4
        %s304 = scalar_lea.vmem %s1, %s303
        %p305 = pneg %p69
        %p306 = pneg %p66
        %p307 = scmp.lt.s32.totalorder %s22, 1
        %s308 = scalar_select %p307, %s22, 1
        %s309 = smul.addr %s308, 2
        %s310 = smul.addr %s309, 4
        %s311 = scalar_lea.vmem %s2, %s310
        %p312 = pneg %p95
        %p313 = pneg %p92
        %p314 = scmp.lt.s32.totalorder %s22, 1
        %s315 = scalar_select %p314, %s22, 1
        %s316 = smul.addr %s315, 2
        %s317 = smul.addr %s316, 8
        %s318 = scalar_lea.vmem %s3, %s317
        %p319 = pneg %p121
        %p320 = pneg %p118
        %p321 = pneg %p142
        %p322 = pneg %p139
        %p323 = pneg %p163
        %p324 = pneg %p160
        %p325 = pneg %p184
        %p326 = pneg %p181
        %p327 = pneg %p210
        %p328 = pneg %p207
        %s329 = sand.u32 %s197, 1
        %s330 = scalar_lea.sflag [#allocation5], %s329
        %s331 = sand.u32 %s197, 1
        %s332 = smul.addr %s331, 16
        %s333 = scalar_lea.vmem [#allocation6], %s332
        %p334 = scmp.lt.s32.totalorder %s22, 1
        %s335 = scalar_select %p334, %s22, 1
        %s336 = smul.addr %s335, 2
        %s337 = smul.addr %s336, 4
        %s338 = scalar_lea.vmem %s0, %s337
        %p339 = scmp.lt.s32.totalorder %s22, 1
        %s340 = scalar_select %p339, %s22, 1
        %s341 = smul.addr %s340, 2
        %s342 = smul.addr %s341, 4
        %s343 = scalar_lea.vmem %s1, %s342
        %p344 = scmp.lt.s32.totalorder %s22, 1
        %s345 = scalar_select %p344, %s22, 1
        %s346 = smul.addr %s345, 2
        %s347 = smul.addr %s346, 4
        %s348 = scalar_lea.vmem %s2, %s347
        %p349 = scmp.lt.s32.totalorder %s22, 1
        %s350 = scalar_select %p349, %s22, 1
        %s351 = smul.addr %s350, 2
        %s352 = smul.addr %s351, 8
        %s353 = scalar_lea.vmem %s3, %s352
        %v355 = vld [vmem:[%s343] sm:$0xf]
        %v356 = vld [vmem:[%s343 + $0x4] sm:$0xf]
        %v357 = vlaneseq
        %v358 = vshrl.u32 %v357, 7
        %v359 = vadd.s32 %v358, 8
        %v360 = vlaneseq
        %v361 = vand.u32 %v360, 127
        %vm362 = vcmp.le.s32.totalorder %v361, %v358
        %vm363 = vcmp.le.s32.totalorder %v361, %v359
        %v364 = vld [vmem:[%s348] sm:$0xf]
        %v365 = vld [vmem:[%s348 + $0x4] sm:$0xf]
        %v366 = vld [vmem:[%s338] sm:$0xf]
        %v367 = vld [vmem:[%s338 + $0x4] sm:$0xf]
        %v370 = vunpack.c.l.b16 %v355
        %v371 = vunpack.c.l.b16 %v356
        %v372 = vpack.c.b16 %v371, %v370
        %373 = vrot.lane.b32.xlu0 %v372, 64
        %v374 = vpop.permute.xlu0 %373
        %vm375 = vcmask 130048
        %v377 = vsel %vm375, %v372, 0
        %v380 = vsel %vm375, %v374, 0
        %382 = vmatpush.bf16.xpose.msra.mxu0 0
        %383 = vmatpush.bf16.xpose.msra.mxu0 0
        %384 = vmatpush.bf16.xpose.msra.mxu0 0
        %385 = vmatpush.bf16.xpose.msra.mxu0 0
        %386 = vmatpush.bf16.xpose.msra.mxu0 0
        %387 = vmatpush.bf16.xpose.msra.mxu0 0
        %388 = vmatpush.bf16.xpose.msra.mxu0 0
        %389 = vmatpush.bf16.xpose.msra.mxu0 %v380
        %390 = vmatmul.bf16.gmra.mxu0 %v377
        %v391 = vpop.f32.mrf.mxu0
        %v392 = vadd.f32 0.0, %v391
        %v393 = vpop.f32.mrf.mxu0
        %v394 = vadd.f32 0.0, %v393
        %395 = vdwg.mxu0
        %v398 = vunpack.c.l.b16 %v366
        %v399 = vunpack.c.l.b16 %v367
        %v400 = vpack.c.b16 %v399, %v398
        %v403 = vunpack.c.l.b16 %v364
        %v404 = vunpack.c.l.b16 %v365
        %v405 = vpack.c.b16 %v404, %v403
        %vm406 = vcmask 261120
        %v408 = vsel %vm406, %v400, 0
        %v411 = vsel %vm406, %v405, 0
        %413 = vmatpush.bf16.xpose.msra.mxu0 0
        %414 = vmatpush.bf16.xpose.msra.mxu0 0
        %415 = vmatpush.bf16.xpose.msra.mxu0 0
        %416 = vmatpush.bf16.xpose.msra.mxu0 0
        %417 = vmatpush.bf16.xpose.msra.mxu0 0
        %418 = vmatpush.bf16.xpose.msra.mxu0 0
        %419 = vmatpush.bf16.xpose.msra.mxu0 0
        %420 = vmatpush.bf16.xpose.msra.mxu0 %v411
        %421 = vmatmul.bf16.gmra.mxu0 %v408
        %v422 = vpop.f32.mrf.mxu0
        %v423 = vadd.f32 %v392, %v422
        %v424 = vpop.f32.mrf.mxu0
        %v425 = vadd.f32 %v394, %v424
        %426 = vdwg.mxu0
        %v427 = vmul.f32 %v423, 0.14433756
        %v428 = vmul.f32 %v425, 0.14433756
        %v429 = vsel %vm362, %v427, -inf
        %v430 = vsel %vm363, %v428, -inf
        %v431 = vsel %vm375, %v429, -inf
        %432 = vmax.xlane.f32.xlu0 %v431
        %v433 = vpop.xlane.xlu0 %432
        %v434 = vsel %vm375, %v430, -inf
        %435 = vmax.xlane.f32.xlu0 %v434
        %v436 = vpop.xlane.xlu0 %435
        %v437 = vsub.f32 %v429, %v433
        %v438 = vsub.f32 %v430, %v436
        %v439 = vmul.f32 %v437, 1.442695
        %v440 = vpow.pop %v439
        %v441 = vmul.f32 %v438, 1.442695
        %v442 = vpow.pop %v441
        %v443 = vsel %vm375, %v440, 0.0
        %444 = vadd.xlane.f32.xlu0 %v443
        %v445 = vpop.xlane.xlu0 %444
        %v446 = vsel %vm375, %v442, 0.0
        %447 = vadd.xlane.f32.xlu0 %v446
        %v448 = vpop.xlane.xlu0 %447
        %v449 = vpack.c.bf16 %v442, %v440
        %450 = vrot.lane.b32.xlu0 %v405, 96
        %v451 = vpop.permute.xlu0 %450
        %v454 = vsel %vm375, %v449, 0
        %456 = vmatpush.bf16.msra.mxu0 0
        %457 = vmatpush.bf16.msra.mxu0 0
        %458 = vmatpush.bf16.msra.mxu0 0
        %459 = vmatpush.bf16.msra.mxu0 0
        %460 = vmatpush.bf16.msra.mxu0 0
        %461 = vmatpush.bf16.msra.mxu0 0
        %462 = vmatpush.bf16.msra.mxu0 0
        %463 = vmatpush.bf16.msra.mxu0 %v451
        %464 = vmatmul.bf16.gmra.mxu0 %v454
        %v465 = vpop.f32.mrf.mxu0
        %v466 = vadd.f32 0.0, %v465
        %v467 = vpop.f32.mrf.mxu0
        %v468 = vadd.f32 0.0, %v467
        %469 = vdwg.mxu0
        %v470 = vrcp.pop %v445
        %v471 = vmul.f32 %v445, %v470
        %v472 = vsub.f32 1.0, %v471
        %v473 = vmul.f32 %v470, %v472
        %v474 = vadd.f32 %v470, %v473
        %vm475 = vweird.f32 %v445
        %vm476 = vweird.f32 %v470
        %vm477 = vmor %vm475, %vm476
        %v478 = vsel %vm477, %v470, %v474
        %v479 = vand.u32 2147483647, %v445
        %vm480 = vcmp.eq.f32.partialorder %v479, 8.507059e+37
        %v481 = vand.u32 %v445, 2147483648
        %v482 = vor.u32 1.1754944e-38, %v481
        %v483 = vsel %vm480, %v482, %v478
        %v484 = vmul.f32 %v466, %v483
        %v485 = vrcp.pop %v448
        %v486 = vmul.f32 %v448, %v485
        %v487 = vsub.f32 1.0, %v486
        %v488 = vmul.f32 %v485, %v487
        %v489 = vadd.f32 %v485, %v488
        %vm490 = vweird.f32 %v448
        %vm491 = vweird.f32 %v485
        %vm492 = vmor %vm490, %vm491
        %v493 = vsel %vm492, %v485, %v489
        %v494 = vand.u32 2147483647, %v448
        %vm495 = vcmp.eq.f32.partialorder %v494, 8.507059e+37
        %v496 = vand.u32 %v448, 2147483648
        %v497 = vor.u32 1.1754944e-38, %v496
        %v498 = vsel %vm495, %v497, %v493
        %v499 = vmul.f32 %v468, %v498
        %500 = vst.msk [vmem:[#allocation2] sm:$0xff] %vm406, %v484
        %501 = vst.msk [vmem:[#allocation2 + $0x8] sm:$0xff] %vm406, %v499
        %v502 = vld [vmem:[%s338] sm:$0xf]
        %v503 = vld [vmem:[%s338 + $0x4] sm:$0xf]
        %v504 = vld [vmem:[%s343] sm:$0xf]
        %v505 = vld [vmem:[%s343 + $0x4] sm:$0xf]
        %v508 = vunpack.c.l.b16 %v504
        %v509 = vunpack.c.l.b16 %v505
        %v510 = vpack.c.b16 %v509, %v508
        %511 = vrot.lane.b32.xlu0 %v510, 112
        %v512 = vpop.permute.xlu0 %511
        %v514 = vsel %vm375, %v512, 0
        %516 = vmatpush.bf16.xpose.msra.mxu0 0
        %517 = vmatpush.bf16.xpose.msra.mxu0 0
        %518 = vmatpush.bf16.xpose.msra.mxu0 0
        %519 = vmatpush.bf16.xpose.msra.mxu0 0
        %520 = vmatpush.bf16.xpose.msra.mxu0 0
        %521 = vmatpush.bf16.xpose.msra.mxu0 0
        %522 = vmatpush.bf16.xpose.msra.mxu0 0
        %523 = vmatpush.bf16.xpose.msra.mxu0 %v380
        %524 = vmatmul.bf16.gmra.mxu0 %v514
        %v525 = vpop.f32.mrf.mxu0
        %v526 = vadd.f32 0.0, %v525
        %v527 = vpop.f32.mrf.mxu0
        %v528 = vadd.f32 0.0, %v527
        %529 = vdwg.mxu0
        %v532 = vunpack.c.l.b16 %v502
        %v533 = vunpack.c.l.b16 %v503
        %v534 = vpack.c.b16 %v533, %v532
        %535 = vrot.lane.b32.xlu0 %v534, 96
        %v536 = vpop.permute.xlu0 %535
        %v538 = vsel %vm406, %v536, 0
        %540 = vmatpush.bf16.xpose.msra.mxu0 0
        %541 = vmatpush.bf16.xpose.msra.mxu0 0
        %542 = vmatpush.bf16.xpose.msra.mxu0 0
        %543 = vmatpush.bf16.xpose.msra.mxu0 0
        %544 = vmatpush.bf16.xpose.msra.mxu0 0
        %545 = vmatpush.bf16.xpose.msra.mxu0 0
        %546 = vmatpush.bf16.xpose.msra.mxu0 0
        %547 = vmatpush.bf16.xpose.msra.mxu0 %v411
        %548 = vmatmul.bf16.gmra.mxu0 %v538
        %v549 = vpop.f32.mrf.mxu0
        %v550 = vadd.f32 %v526, %v549
        %v551 = vpop.f32.mrf.mxu0
        %v552 = vadd.f32 %v528, %v551
        %553 = vdwg.mxu0
        %v554 = vmul.f32 %v550, 0.14433756
        %v555 = vmul.f32 %v552, 0.14433756
        %v556 = vsel %vm362, %v554, -inf
        %v557 = vsel %vm363, %v555, -inf
        %v558 = vsel %vm375, %v556, -inf
        %559 = vmax.xlane.f32.xlu0 %v558
        %v560 = vpop.xlane.xlu0 %559
        %v561 = vsel %vm375, %v557, -inf
        %562 = vmax.xlane.f32.xlu0 %v561
        %v563 = vpop.xlane.xlu0 %562
        %v564 = vsub.f32 %v556, %v560
        %v565 = vsub.f32 %v557, %v563
        %v566 = vmul.f32 %v564, 1.442695
        %v567 = vpow.pop %v566
        %v568 = vmul.f32 %v565, 1.442695
        %v569 = vpow.pop %v568
        %v570 = vsel %vm375, %v567, 0.0
        %571 = vadd.xlane.f32.xlu0 %v570
        %v572 = vpop.xlane.xlu0 %571
        %v573 = vsel %vm375, %v569, 0.0
        %574 = vadd.xlane.f32.xlu0 %v573
        %v575 = vpop.xlane.xlu0 %574
        %v576 = vpack.c.bf16 %v569, %v567
        %v578 = vsel %vm375, %v576, 0
        %580 = vmatpush.bf16.msra.mxu0 0
        %581 = vmatpush.bf16.msra.mxu0 0
        %582 = vmatpush.bf16.msra.mxu0 0
        %583 = vmatpush.bf16.msra.mxu0 0
        %584 = vmatpush.bf16.msra.mxu0 0
        %585 = vmatpush.bf16.msra.mxu0 0
        %586 = vmatpush.bf16.msra.mxu0 0
        %587 = vmatpush.bf16.msra.mxu0 %v451
        %588 = vmatmul.bf16.gmra.mxu0 %v578
        %v589 = vpop.f32.mrf.mxu0
        %v590 = vadd.f32 0.0, %v589
        %v591 = vpop.f32.mrf.mxu0
        %v592 = vadd.f32 0.0, %v591
        %593 = vdwg.mxu0
        %v594 = vrcp.pop %v572
        %v595 = vmul.f32 %v572, %v594
        %v596 = vsub.f32 1.0, %v595
        %v597 = vmul.f32 %v594, %v596
        %v598 = vadd.f32 %v594, %v597
        %vm599 = vweird.f32 %v572
        %vm600 = vweird.f32 %v594
        %vm601 = vmor %vm599, %vm600
        %v602 = vsel %vm601, %v594, %v598
        %v603 = vand.u32 2147483647, %v572
        %vm604 = vcmp.eq.f32.partialorder %v603, 8.507059e+37
        %v605 = vand.u32 %v572, 2147483648
        %v606 = vor.u32 1.1754944e-38, %v605
        %v607 = vsel %vm604, %v606, %v602
        %v608 = vmul.f32 %v590, %v607
        %v609 = vrcp.pop %v575
        %v610 = vmul.f32 %v575, %v609
        %v611 = vsub.f32 1.0, %v610
        %v612 = vmul.f32 %v609, %v611
        %v613 = vadd.f32 %v609, %v612
        %vm614 = vweird.f32 %v575
        %vm615 = vweird.f32 %v609
        %vm616 = vmor %vm614, %vm615
        %v617 = vsel %vm616, %v609, %v613
        %v618 = vand.u32 2147483647, %v575
        %vm619 = vcmp.eq.f32.partialorder %v618, 8.507059e+37
        %v620 = vand.u32 %v575, 2147483648
        %v621 = vor.u32 1.1754944e-38, %v620
        %v622 = vsel %vm619, %v621, %v617
        %v623 = vmul.f32 %v592, %v622
        %626 = vrot.lane.b32.xlu0 %v608, 32
        %v627 = vpop.permute.xlu0 %626
        %628 = vrot.lane.b32.xlu0 %v623, 32
        %v629 = vpop.permute.xlu0 %628
        %vm632 = vcmask 523520
        %633 = vst.msk [vmem:[#allocation2] sm:$0xff] %vm632, %v627
        %634 = vst.msk [vmem:[#allocation2 + $0x8] sm:$0xff] %vm632, %v629
        %v635 = vld [vmem:[%s348] sm:$0xf]
        %v636 = vld [vmem:[%s348 + $0x4] sm:$0xf]
        %v637 = vld [vmem:[%s338] sm:$0xf]
        %v638 = vld [vmem:[%s338 + $0x4] sm:$0xf]
        %v639 = vld [vmem:[%s343] sm:$0xf]
        %v640 = vld [vmem:[%s343 + $0x4] sm:$0xf]
        %v643 = vunpack.c.l.b16 %v639
        %v644 = vunpack.c.l.b16 %v640
        %v645 = vpack.c.b16 %v644, %v643
        %646 = vrot.lane.b32.xlu0 %v645, 96
        %v647 = vpop.permute.xlu0 %646
        %v649 = vsel %vm375, %v647, 0
        %651 = vmatpush.bf16.xpose.msra.mxu0 0
        %652 = vmatpush.bf16.xpose.msra.mxu0 0
        %653 = vmatpush.bf16.xpose.msra.mxu0 0
        %654 = vmatpush.bf16.xpose.msra.mxu0 0
        %655 = vmatpush.bf16.xpose.msra.mxu0 0
        %656 = vmatpush.bf16.xpose.msra.mxu0 0
        %657 = vmatpush.bf16.xpose.msra.mxu0 0
        %658 = vmatpush.bf16.xpose.msra.mxu0 %v380
        %659 = vmatmul.bf16.gmra.mxu0 %v649
        %v660 = vpop.f32.mrf.mxu0
        %v661 = vadd.f32 0.0, %v660
        %v662 = vpop.f32.mrf.mxu0
        %v663 = vadd.f32 0.0, %v662
        %664 = vdwg.mxu0
        %v667 = vunpack.c.l.b16 %v637
        %v668 = vunpack.c.l.b16 %v638
        %v669 = vpack.c.b16 %v668, %v667
        %670 = vrot.lane.b32.xlu0 %v669, 64
        %v671 = vpop.permute.xlu0 %670
        %v674 = vunpack.c.l.b16 %v635
        %v675 = vunpack.c.l.b16 %v636
        %v676 = vpack.c.b16 %v675, %v674
        %677 = vrot.lane.b32.xlu0 %v676, 64
        %v678 = vpop.permute.xlu0 %677
        %v680 = vsel %vm406, %v671, 0
        %v683 = vsel %vm406, %v678, 0
        %685 = vmatpush.bf16.xpose.msra.mxu0 0
        %686 = vmatpush.bf16.xpose.msra.mxu0 0
        %687 = vmatpush.bf16.xpose.msra.mxu0 0
        %688 = vmatpush.bf16.xpose.msra.mxu0 0
        %689 = vmatpush.bf16.xpose.msra.mxu0 0
        %690 = vmatpush.bf16.xpose.msra.mxu0 0
        %691 = vmatpush.bf16.xpose.msra.mxu0 0
        %692 = vmatpush.bf16.xpose.msra.mxu0 %v683
        %693 = vmatmul.bf16.gmra.mxu0 %v680
        %v694 = vpop.f32.mrf.mxu0
        %v695 = vadd.f32 %v661, %v694
        %v696 = vpop.f32.mrf.mxu0
        %v697 = vadd.f32 %v663, %v696
        %698 = vdwg.mxu0
        %v699 = vmul.f32 %v695, 0.14433756
        %v700 = vmul.f32 %v697, 0.14433756
        %v701 = vsel %vm362, %v699, -inf
        %v702 = vsel %vm363, %v700, -inf
        %v703 = vsel %vm375, %v701, -inf
        %704 = vmax.xlane.f32.xlu0 %v703
        %v705 = vpop.xlane.xlu0 %704
        %v706 = vsel %vm375, %v702, -inf
        %707 = vmax.xlane.f32.xlu0 %v706
        %v708 = vpop.xlane.xlu0 %707
        %v709 = vsub.f32 %v701, %v705
        %v710 = vsub.f32 %v702, %v708
        %v711 = vmul.f32 %v709, 1.442695
        %v712 = vpow.pop %v711
        %v713 = vmul.f32 %v710, 1.442695
        %v714 = vpow.pop %v713
        %v715 = vsel %vm375, %v712, 0.0
        %716 = vadd.xlane.f32.xlu0 %v715
        %v717 = vpop.xlane.xlu0 %716
        %v718 = vsel %vm375, %v714, 0.0
        %719 = vadd.xlane.f32.xlu0 %v718
        %v720 = vpop.xlane.xlu0 %719
        %v721 = vpack.c.bf16 %v714, %v712
        %722 = vrot.lane.b32.xlu0 %v676, 32
        %v723 = vpop.permute.xlu0 %722
        %v726 = vsel %vm375, %v721, 0
        %728 = vmatpush.bf16.msra.mxu0 0
        %729 = vmatpush.bf16.msra.mxu0 0
        %730 = vmatpush.bf16.msra.mxu0 0
        %731 = vmatpush.bf16.msra.mxu0 0
        %732 = vmatpush.bf16.msra.mxu0 0
        %733 = vmatpush.bf16.msra.mxu0 0
        %734 = vmatpush.bf16.msra.mxu0 0
        %735 = vmatpush.bf16.msra.mxu0 %v723
        %736 = vmatmul.bf16.gmra.mxu0 %v726
        %v737 = vpop.f32.mrf.mxu0
        %v738 = vadd.f32 0.0, %v737
        %v739 = vpop.f32.mrf.mxu0
        %v740 = vadd.f32 0.0, %v739
        %741 = vdwg.mxu0
        %v742 = vrcp.pop %v717
        %v743 = vmul.f32 %v717, %v742
        %v744 = vsub.f32 1.0, %v743
        %v745 = vmul.f32 %v742, %v744
        %v746 = vadd.f32 %v742, %v745
        %vm747 = vweird.f32 %v717
        %vm748 = vweird.f32 %v742
        %vm749 = vmor %vm747, %vm748
        %v750 = vsel %vm749, %v742, %v746
        %v751 = vand.u32 2147483647, %v717
        %vm752 = vcmp.eq.f32.partialorder %v751, 8.507059e+37
        %v753 = vand.u32 %v717, 2147483648
        %v754 = vor.u32 1.1754944e-38, %v753
        %v755 = vsel %vm752, %v754, %v750
        %v756 = vmul.f32 %v738, %v755
        %v757 = vrcp.pop %v720
        %v758 = vmul.f32 %v720, %v757
        %v759 = vsub.f32 1.0, %v758
        %v760 = vmul.f32 %v757, %v759
        %v761 = vadd.f32 %v757, %v760
        %vm762 = vweird.f32 %v720
        %vm763 = vweird.f32 %v757
        %vm764 = vmor %vm762, %vm763
        %v765 = vsel %vm764, %v757, %v761
        %v766 = vand.u32 2147483647, %v720
        %vm767 = vcmp.eq.f32.partialorder %v766, 8.507059e+37
        %v768 = vand.u32 %v720, 2147483648
        %v769 = vor.u32 1.1754944e-38, %v768
        %v770 = vsel %vm767, %v769, %v765
        %v771 = vmul.f32 %v740, %v770
        %774 = vrot.lane.b32.xlu0 %v756, 64
        %v775 = vpop.permute.xlu0 %774
        %776 = vrot.lane.b32.xlu0 %v771, 64
        %v777 = vpop.permute.xlu0 %776
        %vm780 = vcmask 785920
        %781 = vst.msk [vmem:[#allocation2] sm:$0xff] %vm780, %v775
        %782 = vst.msk [vmem:[#allocation2 + $0x8] sm:$0xff] %vm780, %v777
        %v783 = vld [vmem:[%s338] sm:$0xf]
        %v784 = vld [vmem:[%s338 + $0x4] sm:$0xf]
        %v785 = vld [vmem:[%s343] sm:$0xf]
        %v786 = vld [vmem:[%s343 + $0x4] sm:$0xf]
        %v789 = vunpack.c.l.b16 %v785
        %v790 = vunpack.c.l.b16 %v786
        %v791 = vpack.c.b16 %v790, %v789
        %792 = vrot.lane.b32.xlu0 %v791, 80
        %v793 = vpop.permute.xlu0 %792
        %v795 = vsel %vm375, %v793, 0
        %797 = vmatpush.bf16.xpose.msra.mxu0 0
        %798 = vmatpush.bf16.xpose.msra.mxu0 0
        %799 = vmatpush.bf16.xpose.msra.mxu0 0
        %800 = vmatpush.bf16.xpose.msra.mxu0 0
        %801 = vmatpush.bf16.xpose.msra.mxu0 0
        %802 = vmatpush.bf16.xpose.msra.mxu0 0
        %803 = vmatpush.bf16.xpose.msra.mxu0 0
        %804 = vmatpush.bf16.xpose.msra.mxu0 %v380
        %805 = vmatmul.bf16.gmra.mxu0 %v795
        %v806 = vpop.f32.mrf.mxu0
        %v807 = vadd.f32 0.0, %v806
        %v808 = vpop.f32.mrf.mxu0
        %v809 = vadd.f32 0.0, %v808
        %810 = vdwg.mxu0
        %v813 = vunpack.c.l.b16 %v783
        %v814 = vunpack.c.l.b16 %v784
        %v815 = vpack.c.b16 %v814, %v813
        %816 = vrot.lane.b32.xlu0 %v815, 32
        %v817 = vpop.permute.xlu0 %816
        %v819 = vsel %vm406, %v817, 0
        %821 = vmatpush.bf16.xpose.msra.mxu0 0
        %822 = vmatpush.bf16.xpose.msra.mxu0 0
        %823 = vmatpush.bf16.xpose.msra.mxu0 0
        %824 = vmatpush.bf16.xpose.msra.mxu0 0
        %825 = vmatpush.bf16.xpose.msra.mxu0 0
        %826 = vmatpush.bf16.xpose.msra.mxu0 0
        %827 = vmatpush.bf16.xpose.msra.mxu0 0
        %828 = vmatpush.bf16.xpose.msra.mxu0 %v683
        %829 = vmatmul.bf16.gmra.mxu0 %v819
        %v830 = vpop.f32.mrf.mxu0
        %v831 = vadd.f32 %v807, %v830
        %v832 = vpop.f32.mrf.mxu0
        %v833 = vadd.f32 %v809, %v832
        %834 = vdwg.mxu0
        %v835 = vmul.f32 %v831, 0.14433756
        %v836 = vmul.f32 %v833, 0.14433756
        %v837 = vsel %vm362, %v835, -inf
        %v838 = vsel %vm363, %v836, -inf
        %v839 = vsel %vm375, %v837, -inf
        %840 = vmax.xlane.f32.xlu0 %v839
        %v841 = vpop.xlane.xlu0 %840
        %v842 = vsel %vm375, %v838, -inf
        %843 = vmax.xlane.f32.xlu0 %v842
        %v844 = vpop.xlane.xlu0 %843
        %v845 = vsub.f32 %v837, %v841
        %v846 = vsub.f32 %v838, %v844
        %v847 = vmul.f32 %v845, 1.442695
        %v848 = vpow.pop %v847
        %v849 = vmul.f32 %v846, 1.442695
        %v850 = vpow.pop %v849
        %v851 = vsel %vm375, %v848, 0.0
        %852 = vadd.xlane.f32.xlu0 %v851
        %v853 = vpop.xlane.xlu0 %852
        %v854 = vsel %vm375, %v850, 0.0
        %855 = vadd.xlane.f32.xlu0 %v854
        %v856 = vpop.xlane.xlu0 %855
        %v857 = vpack.c.bf16 %v850, %v848
        %v859 = vsel %vm375, %v857, 0
        %861 = vmatpush.bf16.msra.mxu0 0
        %862 = vmatpush.bf16.msra.mxu0 0
        %863 = vmatpush.bf16.msra.mxu0 0
        %864 = vmatpush.bf16.msra.mxu0 0
        %865 = vmatpush.bf16.msra.mxu0 0
        %866 = vmatpush.bf16.msra.mxu0 0
        %867 = vmatpush.bf16.msra.mxu0 0
        %868 = vmatpush.bf16.msra.mxu0 %v723
        %869 = vmatmul.bf16.gmra.mxu0 %v859
        %v870 = vpop.f32.mrf.mxu0
        %v871 = vadd.f32 0.0, %v870
        %v872 = vpop.f32.mrf.mxu0
        %v873 = vadd.f32 0.0, %v872
        %874 = vdwg.mxu0
        %v875 = vrcp.pop %v853
        %v876 = vmul.f32 %v853, %v875
        %v877 = vsub.f32 1.0, %v876
        %v878 = vmul.f32 %v875, %v877
        %v879 = vadd.f32 %v875, %v878
        %vm880 = vweird.f32 %v853
        %vm881 = vweird.f32 %v875
        %vm882 = vmor %vm880, %vm881
        %v883 = vsel %vm882, %v875, %v879
        %v884 = vand.u32 2147483647, %v853
        %vm885 = vcmp.eq.f32.partialorder %v884, 8.507059e+37
        %v886 = vand.u32 %v853, 2147483648
        %v887 = vor.u32 1.1754944e-38, %v886
        %v888 = vsel %vm885, %v887, %v883
        %v889 = vmul.f32 %v871, %v888
        %v890 = vrcp.pop %v856
        %v891 = vmul.f32 %v856, %v890
        %v892 = vsub.f32 1.0, %v891
        %v893 = vmul.f32 %v890, %v892
        %v894 = vadd.f32 %v890, %v893
        %vm895 = vweird.f32 %v856
        %vm896 = vweird.f32 %v890
        %vm897 = vmor %vm895, %vm896
        %v898 = vsel %vm897, %v890, %v894
        %v899 = vand.u32 2147483647, %v856
        %vm900 = vcmp.eq.f32.partialorder %v899, 8.507059e+37
        %v901 = vand.u32 %v856, 2147483648
        %v902 = vor.u32 1.1754944e-38, %v901
        %v903 = vsel %vm900, %v902, %v898
        %v904 = vmul.f32 %v873, %v903
        %907 = vrot.lane.b32.xlu0 %v889, 96
        %v908 = vpop.permute.xlu0 %907
        %909 = vrot.lane.b32.xlu0 %v904, 96
        %v910 = vpop.permute.xlu0 %909
        %vm913 = vcmask 1048320
        %914 = vst.msk [vmem:[#allocation2] sm:$0xff] %vm913, %v908
        %915 = vst.msk [vmem:[#allocation2 + $0x8] sm:$0xff] %vm913, %v910
        %v916 = vld [vmem:[#allocation2] sm:$0xff]
        %v917 = vld [vmem:[#allocation2 + $0x8] sm:$0xff]
        %v918 = vpack.c.bf16 %v917, %v916
        %v919 = vld [vmem:[%s4] sm:$0xf]
        %v920 = vld [vmem:[%s4 + $0x4] sm:$0xf]
        %v921 = vld [vmem:[%s4 + $0x8] sm:$0xf]
        %v922 = vld [vmem:[%s4 + $0xc] sm:$0xf]
        %v923 = vld [vmem:[%s4 + $0x10] sm:$0xf]
        %v924 = vld [vmem:[%s4 + $0x14] sm:$0xf]
        %v925 = vld [vmem:[%s4 + $0x18] sm:$0xf]
        %v926 = vld [vmem:[%s4 + $0x1c] sm:$0xf]
        %v927 = vld [vmem:[%s4 + $0x20] sm:$0xf]
        %v928 = vld [vmem:[%s4 + $0x24] sm:$0xf]
        %v929 = vld [vmem:[%s4 + $0x28] sm:$0xf]
        %v930 = vld [vmem:[%s4 + $0x2c] sm:$0xf]
        %v931 = vld [vmem:[%s4 + $0x30] sm:$0xf]
        %v932 = vld [vmem:[%s4 + $0x34] sm:$0xf]
        %v933 = vld [vmem:[%s4 + $0x38] sm:$0xf]
        %v934 = vld [vmem:[%s4 + $0x3c] sm:$0xf]
        %v951 = vunpack.c.l.b16 %v919
        %v952 = vunpack.c.l.b16 %v920
        %v953 = vunpack.c.l.b16 %v921
        %v954 = vunpack.c.l.b16 %v922
        %v955 = vunpack.c.l.b16 %v923
        %v956 = vunpack.c.l.b16 %v924
        %v957 = vunpack.c.l.b16 %v925
        %v958 = vunpack.c.l.b16 %v926
        %v959 = vunpack.c.l.b16 %v927
        %v960 = vunpack.c.l.b16 %v928
        %v961 = vunpack.c.l.b16 %v929
        %v962 = vunpack.c.l.b16 %v930
        %v963 = vunpack.c.l.b16 %v931
        %v964 = vunpack.c.l.b16 %v932
        %v965 = vunpack.c.l.b16 %v933
        %v966 = vunpack.c.l.b16 %v934
        %v967 = vpack.c.b16 %v952, %v951
        %v968 = vpack.c.b16 %v954, %v953
        %v969 = vpack.c.b16 %v956, %v955
        %v970 = vpack.c.b16 %v958, %v957
        %v971 = vpack.c.b16 %v960, %v959
        %v972 = vpack.c.b16 %v962, %v961
        %v973 = vpack.c.b16 %v964, %v963
        %v974 = vpack.c.b16 %v966, %v965
        %983 = vmatpush.bf16.msra.mxu0 %v974
        %984 = vmatpush.bf16.msra.mxu0 %v973
        %985 = vmatpush.bf16.msra.mxu0 %v972
        %986 = vmatpush.bf16.msra.mxu0 %v971
        %987 = vmatpush.bf16.msra.mxu0 %v970
        %988 = vmatpush.bf16.msra.mxu0 %v969
        %989 = vmatpush.bf16.msra.mxu0 %v968
        %990 = vmatpush.bf16.msra.mxu0 %v967
        %991 = vmatmul.bf16.gmra.mxu0 %v918
        %v992 = vpop.f32.mrf.mxu0
        %v993 = vadd.f32 0.0, %v992
        %v994 = vpop.f32.mrf.mxu0
        %v995 = vadd.f32 0.0, %v994
        %996 = vdwg.mxu0
        %v997 = vld [vmem:[%s353] sm:$0xff]
        %v998 = vld [vmem:[%s353 + $0x8] sm:$0xff]
        %v999 = vadd.f32 %v997, %v993
        %v1000 = vadd.f32 %v998, %v995
        %v1001 = vmul.f32 %v999, %v999
        %v1002 = vmul.f32 %v1000, %v1000
        %1003 = vadd.xlane.f32.xlu0 %v1001
        %v1004 = vpop.xlane.xlu0 %1003
        %1005 = vadd.xlane.f32.xlu0 %v1002
        %v1006 = vpop.xlane.xlu0 %1005
        %v1007 = vrcp.pop 128.0
        %v1008 = vmul.f32 128.0, %v1007
        %v1009 = vsub.f32 1.0, %v1008
        %v1010 = vmul.f32 %v1007, %v1009
        %v1011 = vadd.f32 %v1007, %v1010
        %vm1012 = vweird.f32 %v1007
        %v1013 = vsel %vm1012, %v1007, %v1011
        %v1014 = vmul.f32 %v1004, %v1013
        %v1015 = vmul.f32 %v1006, %v1013
        %v1016 = vadd.f32 %v1014, 1.1920929e-07
        %v1017 = vadd.f32 %v1015, 1.1920929e-07
        %v1018 = vrsqrt.pop %v1016
        %v1019 = vmul.f32 %v1018, %v1016
        %v1020 = vmul.f32 %v1019, %v1018
        %v1021 = vmul.f32 0.5, %v1020
        %v1022 = vsub.f32 1.5, %v1021
        %v1023 = vmul.f32 %v1018, %v1022
        %vm1024 = vweird.f32 %v1016
        %vm1025 = vweird.f32 %v1018
        %vm1026 = vmor %vm1024, %vm1025
        %v1027 = vsel %vm1026, %v1018, %v1023
        %v1028 = vrsqrt.pop %v1017
        %v1029 = vmul.f32 %v1028, %v1017
        %v1030 = vmul.f32 %v1029, %v1028
        %v1031 = vmul.f32 0.5, %v1030
        %v1032 = vsub.f32 1.5, %v1031
        %v1033 = vmul.f32 %v1028, %v1032
        %vm1034 = vweird.f32 %v1017
        %vm1035 = vweird.f32 %v1028
        %vm1036 = vmor %vm1034, %vm1035
        %v1037 = vsel %vm1036, %v1028, %v1033
        %v1038 = vmul.f32 %v999, %v1027
        %v1039 = vmul.f32 %v1000, %v1037
        %v1040 = vpack.c.bf16 %v1039, %v1038
        %v1041 = vld [vmem:[%s5] sm:$0xff]
        %v1042 = vld [vmem:[%s5 + $0x8] sm:$0xff]
        %v1043 = vld [vmem:[%s5 + $0x10] sm:$0xff]
        %v1044 = vld [vmem:[%s5 + $0x18] sm:$0xff]
        %v1045 = vld [vmem:[%s5 + $0x20] sm:$0xff]
        %v1046 = vld [vmem:[%s5 + $0x28] sm:$0xff]
        %v1047 = vld [vmem:[%s5 + $0x30] sm:$0xff]
        %v1048 = vld [vmem:[%s5 + $0x38] sm:$0xff]
        %v1049 = vld [vmem:[%s5 + $0x40] sm:$0xff]
        %v1050 = vld [vmem:[%s5 + $0x48] sm:$0xff]
        %v1051 = vld [vmem:[%s5 + $0x50] sm:$0xff]
        %v1052 = vld [vmem:[%s5 + $0x58] sm:$0xff]
        %v1053 = vld [vmem:[%s5 + $0x60] sm:$0xff]
        %v1054 = vld [vmem:[%s5 + $0x68] sm:$0xff]
        %v1055 = vld [vmem:[%s5 + $0x70] sm:$0xff]
        %v1056 = vld [vmem:[%s5 + $0x78] sm:$0xff]
        %v1073 = vunpack.c.l.b16 %v1041
        %v1074 = vunpack.c.h.b16 %v1041
        %v1075 = vunpack.c.l.b16 %v1042
        %v1076 = vunpack.c.h.b16 %v1042
        %v1077 = vunpack.c.l.b16 %v1043
        %v1078 = vunpack.c.h.b16 %v1043
        %v1079 = vunpack.c.l.b16 %v1044
        %v1080 = vunpack.c.h.b16 %v1044
        %v1081 = vunpack.c.l.b16 %v1045
        %v1082 = vunpack.c.h.b16 %v1045
        %v1083 = vunpack.c.l.b16 %v1046
        %v1084 = vunpack.c.h.b16 %v1046
        %v1085 = vunpack.c.l.b16 %v1047
        %v1086 = vunpack.c.h.b16 %v1047
        %v1087 = vunpack.c.l.b16 %v1048
        %v1088 = vunpack.c.h.b16 %v1048
        %v1089 = vunpack.c.l.b16 %v1049
        %v1090 = vunpack.c.h.b16 %v1049
        %v1091 = vunpack.c.l.b16 %v1050
        %v1092 = vunpack.c.h.b16 %v1050
        %v1093 = vunpack.c.l.b16 %v1051
        %v1094 = vunpack.c.h.b16 %v1051
        %v1095 = vunpack.c.l.b16 %v1052
        %v1096 = vunpack.c.h.b16 %v1052
        %v1097 = vunpack.c.l.b16 %v1053
        %v1098 = vunpack.c.h.b16 %v1053
        %v1099 = vunpack.c.l.b16 %v1054
        %v1100 = vunpack.c.h.b16 %v1054
        %v1101 = vunpack.c.l.b16 %v1055
        %v1102 = vunpack.c.h.b16 %v1055
        %v1103 = vunpack.c.l.b16 %v1056
        %v1104 = vunpack.c.h.b16 %v1056
        %v1105 = vpack.c.b16 %v1075, %v1073
        %v1106 = vpack.c.b16 %v1076, %v1074
        %v1107 = vpack.c.b16 %v1079, %v1077
        %v1108 = vpack.c.b16 %v1080, %v1078
        %v1109 = vpack.c.b16 %v1083, %v1081
        %v1110 = vpack.c.b16 %v1084, %v1082
        %v1111 = vpack.c.b16 %v1087, %v1085
        %v1112 = vpack.c.b16 %v1088, %v1086
        %v1113 = vpack.c.b16 %v1091, %v1089
        %v1114 = vpack.c.b16 %v1092, %v1090
        %v1115 = vpack.c.b16 %v1095, %v1093
        %v1116 = vpack.c.b16 %v1096, %v1094
        %v1117 = vpack.c.b16 %v1099, %v1097
        %v1118 = vpack.c.b16 %v1100, %v1098
        %v1119 = vpack.c.b16 %v1103, %v1101
        %v1120 = vpack.c.b16 %v1104, %v1102
        %1137 = vmatpush.bf16.msra.mxu0 %v1119
        %1138 = vmatpush.bf16.msra.mxu0 %v1117
        %1139 = vmatpush.bf16.msra.mxu0 %v1115
        %1140 = vmatpush.bf16.msra.mxu0 %v1113
        %1141 = vmatpush.bf16.msra.mxu0 %v1111
        %1142 = vmatpush.bf16.msra.mxu0 %v1109
        %1143 = vmatpush.bf16.msra.mxu0 %v1107
        %1144 = vmatpush.bf16.msra.mxu0 %v1105
        %1145 = vmatmul.bf16.gmra.mxu0 %v1040
        %v1146 = vpop.f32.mrf.mxu0
        %v1147 = vadd.f32 0.0, %v1146
        %v1148 = vpop.f32.mrf.mxu0
        %v1149 = vadd.f32 0.0, %v1148
        %1150 = vdwg.mxu0
        %1151 = vmatpush.bf16.msra.mxu0 %v1120
        %1152 = vmatpush.bf16.msra.mxu0 %v1118
        %1153 = vmatpush.bf16.msra.mxu0 %v1116
        %1154 = vmatpush.bf16.msra.mxu0 %v1114
        %1155 = vmatpush.bf16.msra.mxu0 %v1112
        %1156 = vmatpush.bf16.msra.mxu0 %v1110
        %1157 = vmatpush.bf16.msra.mxu0 %v1108
        %1158 = vmatpush.bf16.msra.mxu0 %v1106
        %1159 = vmatmul.bf16.gmra.mxu0 %v1040
        %v1160 = vpop.f32.mrf.mxu0
        %v1161 = vadd.f32 0.0, %v1160
        %v1162 = vpop.f32.mrf.mxu0
        %v1163 = vadd.f32 0.0, %v1162
        %1164 = vdwg.mxu0
        %v1165 = vmax.f32 %v1147, 0.0
        %v1166 = vmax.f32 %v1161, 0.0
        %v1167 = vmax.f32 %v1149, 0.0
        %v1168 = vmax.f32 %v1163, 0.0
        %v1169 = vmul.f32 %v1165, %v1165
        %v1170 = vmul.f32 %v1166, %v1166
        %v1171 = vmul.f32 %v1167, %v1167
        %v1172 = vmul.f32 %v1168, %v1168
        %v1173 = vpack.c.bf16 %v1171, %v1169
        %v1174 = vpack.c.bf16 %v1172, %v1170
        %v1175 = vld [vmem:[#allocation3] sm:$0xf]
        %v1176 = vld [vmem:[#allocation3 + $0x4] sm:$0xf]
        %v1177 = vld [vmem:[#allocation3 + $0x8] sm:$0xf]
        %v1178 = vld [vmem:[#allocation3 + $0xc] sm:$0xf]
        %v1179 = vld [vmem:[#allocation3 + $0x10] sm:$0xf]
        %v1180 = vld [vmem:[#allocation3 + $0x14] sm:$0xf]
        %v1181 = vld [vmem:[#allocation3 + $0x18] sm:$0xf]
        %v1182 = vld [vmem:[#allocation3 + $0x1c] sm:$0xf]
        %v1183 = vld [vmem:[#allocation3 + $0x20] sm:$0xf]
        %v1184 = vld [vmem:[#allocation3 + $0x24] sm:$0xf]
        %v1185 = vld [vmem:[#allocation3 + $0x28] sm:$0xf]
        %v1186 = vld [vmem:[#allocation3 + $0x2c] sm:$0xf]
        %v1187 = vld [vmem:[#allocation3 + $0x30] sm:$0xf]
        %v1188 = vld [vmem:[#allocation3 + $0x34] sm:$0xf]
        %v1189 = vld [vmem:[#allocation3 + $0x38] sm:$0xf]
        %v1190 = vld [vmem:[#allocation3 + $0x3c] sm:$0xf]
        %v1191 = vld [vmem:[#allocation3 + $0x40] sm:$0xf]
        %v1192 = vld [vmem:[#allocation3 + $0x44] sm:$0xf]
        %v1193 = vld [vmem:[#allocation3 + $0x48] sm:$0xf]
        %v1194 = vld [vmem:[#allocation3 + $0x4c] sm:$0xf]
        %v1195 = vld [vmem:[#allocation3 + $0x50] sm:$0xf]
        %v1196 = vld [vmem:[#allocation3 + $0x54] sm:$0xf]
        %v1197 = vld [vmem:[#allocation3 + $0x58] sm:$0xf]
        %v1198 = vld [vmem:[#allocation3 + $0x5c] sm:$0xf]
        %v1199 = vld [vmem:[#allocation3 + $0x60] sm:$0xf]
        %v1200 = vld [vmem:[#allocation3 + $0x64] sm:$0xf]
        %v1201 = vld [vmem:[#allocation3 + $0x68] sm:$0xf]
        %v1202 = vld [vmem:[#allocation3 + $0x6c] sm:$0xf]
        %v1203 = vld [vmem:[#allocation3 + $0x70] sm:$0xf]
        %v1204 = vld [vmem:[#allocation3 + $0x74] sm:$0xf]
        %v1205 = vld [vmem:[#allocation3 + $0x78] sm:$0xf]
        %v1206 = vld [vmem:[#allocation3 + $0x7c] sm:$0xf]
        %v1239 = vunpack.c.l.b16 %v1175
        %v1240 = vunpack.c.l.b16 %v1176
        %v1241 = vunpack.c.l.b16 %v1177
        %v1242 = vunpack.c.l.b16 %v1178
        %v1243 = vunpack.c.l.b16 %v1179
        %v1244 = vunpack.c.l.b16 %v1180
        %v1245 = vunpack.c.l.b16 %v1181
        %v1246 = vunpack.c.l.b16 %v1182
        %v1247 = vunpack.c.l.b16 %v1183
        %v1248 = vunpack.c.l.b16 %v1184
        %v1249 = vunpack.c.l.b16 %v1185
        %v1250 = vunpack.c.l.b16 %v1186
        %v1251 = vunpack.c.l.b16 %v1187
        %v1252 = vunpack.c.l.b16 %v1188
        %v1253 = vunpack.c.l.b16 %v1189
        %v1254 = vunpack.c.l.b16 %v1190
        %v1255 = vunpack.c.l.b16 %v1191
        %v1256 = vunpack.c.l.b16 %v1192
        %v1257 = vunpack.c.l.b16 %v1193
        %v1258 = vunpack.c.l.b16 %v1194
        %v1259 = vunpack.c.l.b16 %v1195
        %v1260 = vunpack.c.l.b16 %v1196
        %v1261 = vunpack.c.l.b16 %v1197
        %v1262 = vunpack.c.l.b16 %v1198
        %v1263 = vunpack.c.l.b16 %v1199
        %v1264 = vunpack.c.l.b16 %v1200
        %v1265 = vunpack.c.l.b16 %v1201
        %v1266 = vunpack.c.l.b16 %v1202
        %v1267 = vunpack.c.l.b16 %v1203
        %v1268 = vunpack.c.l.b16 %v1204
        %v1269 = vunpack.c.l.b16 %v1205
        %v1270 = vunpack.c.l.b16 %v1206
        %v1271 = vpack.c.b16 %v1240, %v1239
        %v1272 = vpack.c.b16 %v1242, %v1241
        %v1273 = vpack.c.b16 %v1244, %v1243
        %v1274 = vpack.c.b16 %v1246, %v1245
        %v1275 = vpack.c.b16 %v1248, %v1247
        %v1276 = vpack.c.b16 %v1250, %v1249
        %v1277 = vpack.c.b16 %v1252, %v1251
        %v1278 = vpack.c.b16 %v1254, %v1253
        %v1279 = vpack.c.b16 %v1256, %v1255
        %v1280 = vpack.c.b16 %v1258, %v1257
        %v1281 = vpack.c.b16 %v1260, %v1259
        %v1282 = vpack.c.b16 %v1262, %v1261
        %v1283 = vpack.c.b16 %v1264, %v1263
        %v1284 = vpack.c.b16 %v1266, %v1265
        %v1285 = vpack.c.b16 %v1268, %v1267
        %v1286 = vpack.c.b16 %v1270, %v1269
        %1303 = vmatpush.bf16.msra.mxu0 %v1278
        %1304 = vmatpush.bf16.msra.mxu0 %v1277
        %1305 = vmatpush.bf16.msra.mxu0 %v1276
        %1306 = vmatpush.bf16.msra.mxu0 %v1275
        %1307 = vmatpush.bf16.msra.mxu0 %v1274
        %1308 = vmatpush.bf16.msra.mxu0 %v1273
        %1309 = vmatpush.bf16.msra.mxu0 %v1272
        %1310 = vmatpush.bf16.msra.mxu0 %v1271
        %1311 = vmatmul.bf16.gmra.mxu0 %v1173
        %v1312 = vpop.f32.mrf.mxu0
        %v1313 = vadd.f32 0.0, %v1312
        %v1314 = vpop.f32.mrf.mxu0
        %v1315 = vadd.f32 0.0, %v1314
        %1316 = vdwg.mxu0
        %1317 = vmatpush.bf16.msra.mxu0 %v1286
        %1318 = vmatpush.bf16.msra.mxu0 %v1285
        %1319 = vmatpush.bf16.msra.mxu0 %v1284
        %1320 = vmatpush.bf16.msra.mxu0 %v1283
        %1321 = vmatpush.bf16.msra.mxu0 %v1282
        %1322 = vmatpush.bf16.msra.mxu0 %v1281
        %1323 = vmatpush.bf16.msra.mxu0 %v1280
        %1324 = vmatpush.bf16.msra.mxu0 %v1279
        %1325 = vmatmul.bf16.gmra.mxu0 %v1174
        %v1326 = vpop.f32.mrf.mxu0
        %v1327 = vadd.f32 %v1313, %v1326
        %v1328 = vpop.f32.mrf.mxu0
        %v1329 = vadd.f32 %v1315, %v1328
        %1330 = vdwg.mxu0
        %v1331 = vadd.f32 %v1038, %v1327
        %v1332 = vadd.f32 %v1039, %v1329
        %1333 = vst [vmem:[%s333] sm:$0xff] %v1331
        %1334 = vst [vmem:[%s333 + $0x8] sm:$0xff] %v1332
        %s1335 = sand.u32 %s197, 1
        %s1336 = scalar_lea.sflag [#allocation5], %s1335
        %s1337 = sand.u32 %s197, 1
        %s1338 = smul.addr %s1337, 16
        %s1339 = scalar_lea.vmem [#allocation6], %s1338
        // Predicated region
        $region53: #{decoder_block_forward.3} parent=47 // pred_check
          %p1340 = pneg %p207
        $region54: #{decoder_block_forward.3} parent=47 // pred_check_branch
          %1342 = sbr.rel (%p1340) target = $region56
        $region55: #{decoder_block_forward.3} parent=47 // pred_region
          %1344 = vsyncadd %s1336, 0
          %s1345 = smul.addr %s22, 2
          %s1346 = smul.addr %s1345, 8
          %s1347 = scalar_lea.hbm %s7, %s1346
          %s1348 = sshll.u32 %s1339, 4
          %s1349 = int_to_ptr.vmem [resolvable:$true] %s1348
          %s1350 = sshll.u32 %s1347, 4
          %s1351 = int_to_ptr.hbm [resolvable:$true] %s1350
          %1356 = dma.vmem_to_hbm [thread:$0]  %s1349, 256, %s1351, %s1336, 128, 128, 8
        $region56: #{decoder_block_forward.3} parent=47 // pred_fallthru
          _
      $region48: #{decoder_block_forward.3} parent=5 // pred_fallthru
        _
      %p1357 = scmp.le.s32.totalorder 2, %s17
      // Predicated region
      $region57: #{decoder_block_forward.3} parent=5 // pred_check
        %p1358 = pneg %p1357
      $region58: #{decoder_block_forward.3} parent=5 // pred_check_branch
        %1360 = sbr.rel (%p1358) target = $region60
      $region59: #{decoder_block_forward.3} parent=5 // pred_region
        %s1361 = ssub.s32 %s17, 2
        // Predicated region
        $region61: #{decoder_block_forward.3} parent=59 // pred_check
          %p1362 = pneg %p213
        $region62: #{decoder_block_forward.3} parent=59 // pred_check_branch
          %1364 = sbr.rel (%p1362) target = $region64
        $region63: #{decoder_block_forward.3} parent=59 // pred_region
          %s1365 = sand.u32 %s198, 1
          %s1366 = scalar_lea.sflag [#allocation5], %s1365
          %s1367 = sand.u32 %s198, 1
          %s1368 = smul.addr %s1367, 16
          %s1369 = scalar_lea.vmem [#allocation6], %s1368
          %1371 = dma.done %s1366, 256
        $region64: #{decoder_block_forward.3} parent=59 // pred_fallthru
          _
      $region60: #{decoder_block_forward.3} parent=5 // pred_fallthru
        _
    $region6: #{decoder_block_forward.3} parent=1 // loop_footer
      %s21 = sadd.s32 1, %s17
    $region7: #{decoder_block_forward.3} parent=1 // loop_footer_branch
      %16 = sbr.rel target = $region3
    $region8: #{decoder_block_forward.3} parent=1 // loop_exit
      _
    %1372 = vsyncpa [#allocation4], 1
    %s1373 = scalar_lea.sflag [#allocation4], 1
    %1374 = vsyncpa %s1373, 1
    %1375 = vsyncpa [#allocation5], 1
    %s1376 = scalar_lea.sflag [#allocation5], 1
    %1377 = vsyncpa %s1376, 1

</llo_original>
